<compile_context>
chip_gen: v6e
topology: v6e:2x2x1
jax: 0.10.0
libtpu: 0.0.40
codegen_flags: <defaults>
</compile_context>

<pallas_src>
import jax
import jax.numpy as jnp
from jax.experimental import pallas as pl
from jax.experimental.pallas import tpu as pltpu


# ---------------------------------------------------------------------------
# padding helpers (zero padding is exact for this model)
# ---------------------------------------------------------------------------
def _round_up(n, m):
    return ((n + m - 1) // m) * m


def _pad_to(a, axis, new_size):
    pad = [(0, 0)] * a.ndim
    pad[axis] = (0, new_size - a.shape[axis])
    return jnp.pad(a, pad)


def _pad_blocked(a, axis, blk, blk_pad, n_blk):
    """Split `axis` into n_blk blocks of size blk and zero-pad each to blk_pad."""
    parts = jnp.split(a, n_blk, axis=axis)
    pad = [(0, 0)] * a.ndim
    pad[axis] = (0, blk_pad - blk)
    return jnp.concatenate([jnp.pad(p, pad) for p in parts], axis=axis)


def _pack_gates(w, H, Hp, axis):
    """PyTorch gate order [i,f,g,o] -> lane-padded [i,f,o,g].

    The first 3 blocks take sigmoid, the last block takes tanh, so the kernel
    can issue one wide sigmoid + one tanh per step.
    """
    i, f, g, o = jnp.split(w, 4, axis=axis)

    def p(a):
        pad = [(0, 0)] * a.ndim
        pad[axis] = (0, Hp - H)
        return jnp.pad(a, pad)

    return jnp.concatenate([p(i), p(f), p(o), p(g)], axis=axis)


# ---------------------------------------------------------------------------
# Fused kernel: BiLSTM (length-masked) -> sim_head MLP -> L2 norm -> affinity
# one grid step == one block of Bblk batch elements
# ---------------------------------------------------------------------------
def cclusterer_kernel(lens_ref,                    # SMEM (Bpad,) int32 (scalar prefetch)
                      x_ref,                       # (Bblk, Tp, Dp)  bf16
                      wih_ref,                     # (Dp, 8*Hp)      bf16  [fwd | bwd]
                      bg_ref,                      # (1, 8*Hp)       f32   (b_ih+b_hh)
                      whh_f_ref, whh_b_ref,        # (Hp, 4*Hp)      bf16
                      w1_ref, b1_ref,              # (2*Hp, Dm) bf16, (1, Dm) f32
                      w2_ref, b2_ref,              # (Dm, Hp)  bf16,  (1, Hp) f32
                      sn_ref,                      # (Bblk, Tp, Hp)  f32 out
                      aff_ref,                     # (Bblk, Tp, Tl)  f32 out (lane-dense)
                      g_scr,                       # (Bblk, Tp, 8*Hp) f32 VMEM scratch
                      y_scr,                       # (Bblk, Tp, 2*Hp) f32 VMEM scratch
                      gram_scr):                   # (Tl, Hp)         f32 VMEM scratch
    Bblk, Tp, Dp = x_ref.shape
    Hp = whh_f_ref.shape[0]
    Tl = aff_ref.shape[2]
    H4 = 4 * Hp

    b0 = pl.program_id(0) * Bblk

    # per-row valid lengths (scalar when Bblk == 1; broadcasts in jnp.where)
    if Bblk == 1:
        lens_vec = lens_ref[b0]
    else:
        lens_vec = jnp.concatenate(
            [jnp.full((1, 1), lens_ref[b0 + r], jnp.int32) for r in range(Bblk)],
            axis=0)                                                   # (Bblk, 1)

    # ---- hoisted input projection: one big MXU matmul, biases folded in ----
    x2 = x_ref[...].reshape(Bblk * Tp, Dp)                            # bf16
    g = jnp.dot(x2, wih_ref[...], preferred_element_type=jnp.float32) + bg_ref[...]
    g_scr[...] = g.reshape(Bblk, Tp, 8 * Hp)                          # f32

    # ---- fused fwd/bwd recurrence over 8-step chunks ----
    def lstm_step(gates, c):
        # gate layout [i, f, o, g]: one wide sigmoid + one tanh
        sig = jax.nn.sigmoid(gates[:, 0:3 * Hp])
        g_t = jnp.tanh(gates[:, 3 * Hp:4 * Hp])
        c_new = sig[:, Hp:2 * Hp] * c + sig[:, 0:Hp] * g_t
        h_new = sig[:, 2 * Hp:3 * Hp] * jnp.tanh(c_new)
        return h_new, c_new

    def chunk_body(ck, carry):
        h_f, c_f, h_b, c_b = carry                 # each (Bblk, Hp) f32
        t0f = pl.multiple_of(ck * 8, 8)            # fwd chunk start
        t0b = pl.multiple_of(Tp - 8 - ck * 8, 8)   # bwd chunk start
        # weights re-read per chunk (not held live across the whole loop)
        whh_f = whh_f_ref[...]
        whh_b = whh_b_ref[...]
        # one aligned gate load per direction per chunk
        gf = g_scr[:, pl.ds(t0f, 8), 0:H4]         # (Bblk, 8, 4Hp)
        gb = g_scr[:, pl.ds(t0b, 8), H4:2 * H4]    # (Bblk, 8, 4Hp)
        yf_rows = [None] * 8
        yb_rows = [None] * 8
        for j in range(8):                         # static inner unroll
            tf = t0f + j
            tb = t0b + (7 - j)
            # --- forward chain ---
            gates_f = gf[:, j, :] + jnp.dot(h_f.astype(jnp.bfloat16), whh_f,
                                            preferred_element_type=jnp.float32)
            h_new_f, c_new_f = lstm_step(gates_f, c_f)
            valid_f = tf < lens_vec
            h_f = jnp.where(valid_f, h_new_f, h_f)           # carry frozen past L
            c_f = jnp.where(valid_f, c_new_f, c_f)
            yf_rows[j] = jnp.where(valid_f, h_new_f, 0.0)    # padded steps emit 0
            # --- backward chain (independent -> latency overlap) ---
            gates_b = gb[:, 7 - j, :] + jnp.dot(h_b.astype(jnp.bfloat16), whh_b,
                                                preferred_element_type=jnp.float32)
            h_new_b, c_new_b = lstm_step(gates_b, c_b)
            valid_b = tb < lens_vec
            h_b = jnp.where(valid_b, h_new_b, h_b)
            c_b = jnp.where(valid_b, c_new_b, c_b)
            yb_rows[7 - j] = jnp.where(valid_b, h_new_b, 0.0)
        # one aligned (Bblk, 8, Hp) store per direction per chunk
        y_scr[:, pl.ds(t0f, 8), 0:Hp] = jnp.stack(yf_rows, axis=1)
        y_scr[:, pl.ds(t0b, 8), Hp:2 * Hp] = jnp.stack(yb_rows, axis=1)
        return h_f, c_f, h_b, c_b

    zeros = jnp.zeros((Bblk, Hp), jnp.float32)
    jax.lax.fori_loop(0, Tp // 8, chunk_body, (zeros, zeros, zeros, zeros))

    # ---- sim_head: Linear -> ReLU -> Linear, all Bblk*Tp rows in one matmul ----
    y2 = y_scr[...].reshape(Bblk * Tp, 2 * Hp).astype(jnp.bfloat16)
    h1 = jnp.dot(y2, w1_ref[...], preferred_element_type=jnp.float32) + b1_ref[...]
    h1 = jnp.maximum(h1, 0.0)
    s = (jnp.dot(h1.astype(jnp.bfloat16), w2_ref[...],
                 preferred_element_type=jnp.float32) + b2_ref[...])   # (Bblk*Tp, Hp)

    # F.normalize(dim=-1), eps=1e-12  ->  s / max(||s||, 1e-12), via rsqrt (EUP)
    ssq = jnp.sum(s * s, axis=-1, keepdims=True)
    s_n = s * jax.lax.rsqrt(jnp.maximum(ssq, 1e-24))
    sn_ref[...] = s_n.reshape(Bblk, Tp, Hp)

    # ---- per-sequence affinity = (S S^T + 1)/2, lane-dense (Tp, Tl), f32 Gram ----
    if Tl > Tp:                                           # zero padded rows once
        gram_scr[Tp:, :] = jnp.zeros((Tl - Tp, Hp), jnp.float32)
    for r in range(Bblk):                                 # static per-sequence loop
        s_r = s_n[r * Tp:(r + 1) * Tp, :]                 # (Tp, Hp) f32
        gram_scr[0:Tp, :] = s_r
        aff = jax.lax.dot_general(s_r, gram_scr[...], (((1,), (1,)), ((), ())),
                                  preferred_element_type=jnp.float32)  # (Tp, Tl)
        aff_ref[r] = (aff + 1.0) * 0.5


# ---------------------------------------------------------------------------
# Parameters at logical (unpadded) sizes, PyTorch layout transposed to (in, out),
# gate order along the 4H axis is PyTorch's [i, f, g, o].
# ---------------------------------------------------------------------------
def init_params(key, dim):
    H = dim // 2
    ks = jax.random.split(key, 12)
    sc = 1.0 / jnp.sqrt(jnp.float32(H))

    def u(k, shape):
        return jax.random.uniform(k, shape, jnp.float32, -sc, sc)

    return dict(
        wih_f=u(ks[0], (dim, 4 * H)),
        whh_f=u(ks[1], (H, 4 * H)),
        b_f=u(ks[2], (1, 4 * H)) + u(ks[3], (1, 4 * H)),   # b_ih + b_hh
        wih_b=u(ks[4], (dim, 4 * H)),
        whh_b=u(ks[5], (H, 4 * H)),
        b_b=u(ks[6], (1, 4 * H)) + u(ks[7], (1, 4 * H)),
        w1=u(ks[8], (dim, dim)),
        b1=u(ks[9], (1, dim)),
        w2=u(ks[10], (dim, H)),
        b2=u(ks[11], (1, H)),
    )


# ---------------------------------------------------------------------------
# Wrapper: pad to lane/sublane-friendly sizes, call the fused kernel, un-pad
# ---------------------------------------------------------------------------
@jax.jit
def cclusterer_forward(x, context_mask, speakers, params):
    """x: (B, T, D) f32, context_mask: (B, T) bool (contiguous prefix), speakers: (B, T) i32."""
    B, T, D = x.shape
    H = D // 2
    Hp = _round_up(H, 128)          # hidden size, lane aligned
    Dp = _round_up(D, 128)          # LSTM input size, lane aligned
    Dm = _round_up(D, 128)          # sim_head hidden width, lane aligned
    Tp = _round_up(T, 8)            # sublane-aligned recurrence length
    Tl = _round_up(T, 128)          # lane-aligned affinity width (unmasked stores)

    # Batch blocking: batch rows into the recurrent matmul when B is large,
    # but keep >=2 grid steps where possible (v7x has 2 TensorCores).
    if B >= 16:
        Bblk = 8
    else:
        Bblk = max(1, B // 2)
    Bpad = _round_up(B, Bblk)

    # NOTE: assumes context_mask is a contiguous prefix per sequence.
    lens = jnp.sum(context_mask.astype(jnp.int32), axis=-1)             # (B,)
    lens_p = _pad_to(lens, 0, Bpad)                                      # padded rows: len 0

    xp = _pad_to(_pad_to(_pad_to(x.astype(jnp.float32), 2, Dp), 1, Tp), 0, Bpad)
    xp = xp.astype(jnp.bfloat16)                                         # (Bpad, Tp, Dp)

    # weights: gate blocks padded + reordered to [i,f,o,g]; zero padding is exact
    wih = jnp.concatenate(
        [_pad_to(_pack_gates(params["wih_f"], H, Hp, 1), 0, Dp),
         _pad_to(_pack_gates(params["wih_b"], H, Hp, 1), 0, Dp)],
        axis=1).astype(jnp.bfloat16)                                     # (Dp, 8Hp)
    bg = jnp.concatenate(
        [_pack_gates(params["b_f"], H, Hp, 1),
         _pack_gates(params["b_b"], H, Hp, 1)],
        axis=1).astype(jnp.float32)                                      # (1, 8Hp)
    whh_f = _pad_to(_pack_gates(params["whh_f"], H, Hp, 1), 0, Hp).astype(jnp.bfloat16)
    whh_b = _pad_to(_pack_gates(params["whh_b"], H, Hp, 1), 0, Hp).astype(jnp.bfloat16)

    w1 = _pad_to(_pad_blocked(params["w1"], 0, H, Hp, 2), 1, Dm).astype(jnp.bfloat16)
    b1 = _pad_to(params["b1"], 1, Dm).astype(jnp.float32)
    w2 = _pad_to(_pad_to(params["w2"], 0, Dm), 1, Hp).astype(jnp.bfloat16)
    b2 = _pad_to(params["b2"], 1, Hp).astype(jnp.float32)

    grid_spec = pltpu.PrefetchScalarGridSpec(
        num_scalar_prefetch=1,                       # lens -> SMEM
        grid=(Bpad // Bblk,),
        in_specs=[
            pl.BlockSpec((Bblk, Tp, Dp), lambda i, _: (i, 0, 0)),        # x
            pl.BlockSpec((Dp, 8 * Hp), lambda i, _: (0, 0)),             # wih (fwd|bwd)
            pl.BlockSpec((1, 8 * Hp), lambda i, _: (0, 0)),              # gate bias
            pl.BlockSpec((Hp, 4 * Hp), lambda i, _: (0, 0)),             # whh_f
            pl.BlockSpec((Hp, 4 * Hp), lambda i, _: (0, 0)),             # whh_b
            pl.BlockSpec((2 * Hp, Dm), lambda i, _: (0, 0)),             # w1
            pl.BlockSpec((1, Dm), lambda i, _: (0, 0)),                  # b1
            pl.BlockSpec((Dm, Hp), lambda i, _: (0, 0)),                 # w2
            pl.BlockSpec((1, Hp), lambda i, _: (0, 0)),                  # b2
        ],
        out_specs=(
            pl.BlockSpec((Bblk, Tp, Hp), lambda i, _: (i, 0, 0)),        # s_norm
            pl.BlockSpec((Bblk, Tp, Tl), lambda i, _: (i, 0, 0)),        # affinity
        ),
        scratch_shapes=[
            pltpu.VMEM((Bblk, Tp, 8 * Hp), jnp.float32),                 # precomputed gates
            pltpu.VMEM((Bblk, Tp, 2 * Hp), jnp.float32),                 # BiLSTM output
            pltpu.VMEM((Tl, Hp), jnp.float32),                           # Gram rhs (padded rows)
        ],
    )

    s_norm_p, aff_p = pl.pallas_call(
        cclusterer_kernel,
        grid_spec=grid_spec,
        out_shape=(jax.ShapeDtypeStruct((Bpad, Tp, Hp), jnp.float32),
                   jax.ShapeDtypeStruct((Bpad, Tp, Tl), jnp.float32)),
        compiler_params=pltpu.CompilerParams(
            dimension_semantics=("parallel",)),
    )(lens_p, xp, wih, bg, whh_f, whh_b, w1, b1, w2, b2)

    s_norm = s_norm_p[:B, :T, :H]
    affinity = aff_p[:B, :T, :T]

    # TODO(synk): SupConLoss / SpectralClusterer are not defined in the module
    # source; return 0 loss and zero pred_speakers plus the kernel-computed
    # normalized embeddings and affinity matrices.  Rows/cols at masked-out
    # positions are not meaningful; the valid affinity sub-block for batch i is
    # affinity[i][mask_i][:, mask_i].
    pred_speakers = jnp.zeros_like(speakers)
    loss = jnp.zeros((), jnp.float32)
    return pred_speakers, loss, s_norm, affinity


if __name__ == "__main__":
    B, T, D = 2, 8, 32
    key = jax.random.PRNGKey(0)
    k_x, k_spk, k_par = jax.random.split(key, 3)

    x = jax.random.normal(k_x, (B, T, D), jnp.float32)
    lengths = jnp.array([8, 5], jnp.int32)
    context_mask = jnp.arange(T)[None, :] < lengths[:, None]             # (B, T) bool
    speakers = jax.random.randint(k_spk, (B, T), 0, 3, jnp.int32)

    params = init_params(k_par, D)

    pred_speakers, loss, s_norm, affinity = cclusterer_forward(
        x, context_mask, speakers, params)
    jax.block_until_ready((pred_speakers, loss, s_norm, affinity))

    assert pred_speakers.shape == (B, T)
    assert s_norm.shape == (B, T, D // 2)
    assert affinity.shape == (B, T, T)
    assert bool(jnp.all(jnp.isfinite(s_norm)))
    assert bool(jnp.all(jnp.isfinite(affinity)))
    print("KERNEL_OK")
</pallas_src>

<mosaic_0001>
module attributes {stable_mosaic.version = 11 : i64} {
  func.func @cclusterer_kernel(%arg0: i32, %arg1: memref<2xi32, #tpu.memory_space<smem>>, %arg2: memref<1x8x128xbf16, #tpu.memory_space<vmem>>, %arg3: memref<128x1024xbf16, #tpu.memory_space<vmem>>, %arg4: memref<1x1024xf32, #tpu.memory_space<vmem>>, %arg5: memref<128x512xbf16, #tpu.memory_space<vmem>>, %arg6: memref<128x512xbf16, #tpu.memory_space<vmem>>, %arg7: memref<256x128xbf16, #tpu.memory_space<vmem>>, %arg8: memref<1x128xf32, #tpu.memory_space<vmem>>, %arg9: memref<128x128xbf16, #tpu.memory_space<vmem>>, %arg10: memref<1x128xf32, #tpu.memory_space<vmem>>, %arg11: memref<1x8x128xf32, #tpu.memory_space<vmem>>, %arg12: memref<1x8x128xf32, #tpu.memory_space<vmem>>, %arg13: memref<1x8x1024xf32, #tpu.memory_space<vmem>>, %arg14: memref<1x8x256xf32, #tpu.memory_space<vmem>>, %arg15: memref<128x128xf32, #tpu.memory_space<vmem>>) attributes {dimension_semantics = [#tpu.dimension_semantics<parallel>], iteration_bounds = array<i64: 2>, scalar_prefetch = 1 : i64, scratch_operands = 3 : i64, tpu.core_type = #tpu.core_type<tc>, window_params = [{transform_indices = @transform_0, window_bounds = array<i64: 1, 8, 128>}, {pipeline_mode = #tpu.pipeline_mode<synchronous>, transform_indices = @transform_1, window_bounds = array<i64: 128, 1024>}, {pipeline_mode = #tpu.pipeline_mode<synchronous>, transform_indices = @transform_2, window_bounds = array<i64: 1, 1024>}, {pipeline_mode = #tpu.pipeline_mode<synchronous>, transform_indices = @transform_3, window_bounds = array<i64: 128, 512>}, {pipeline_mode = #tpu.pipeline_mode<synchronous>, transform_indices = @transform_4, window_bounds = array<i64: 128, 512>}, {pipeline_mode = #tpu.pipeline_mode<synchronous>, transform_indices = @transform_5, window_bounds = array<i64: 256, 128>}, {pipeline_mode = #tpu.pipeline_mode<synchronous>, transform_indices = @transform_6, window_bounds = array<i64: 1, 128>}, {pipeline_mode = #tpu.pipeline_mode<synchronous>, transform_indices = @transform_7, window_bounds = array<i64: 128, 128>}, {pipeline_mode = #tpu.pipeline_mode<synchronous>, transform_indices = @transform_8, window_bounds = array<i64: 1, 128>}, {transform_indices = @transform_9, window_bounds = array<i64: 1, 8, 128>}, {transform_indices = @transform_10, window_bounds = array<i64: 1, 8, 128>}]} {
    %c1_i32 = arith.constant 1 : i32
    %0 = arith.muli %arg0, %c1_i32 : i32
    %1 = arith.index_cast %0 : i32 to index
    %2 = memref.load %arg1[%1] : memref<2xi32, #tpu.memory_space<smem>>
    %c0 = arith.constant 0 : index
    %c0_0 = arith.constant 0 : index
    %c0_1 = arith.constant 0 : index
    %3 = vector.load %arg2[%c0, %c0_0, %c0_1] : memref<1x8x128xbf16, #tpu.memory_space<vmem>>, vector<1x8x128xbf16>
    %4 = vector.shape_cast %3 : vector<1x8x128xbf16> to vector<8x128xbf16>
    %c0_2 = arith.constant 0 : index
    %c0_3 = arith.constant 0 : index
    %5 = vector.load %arg3[%c0_2, %c0_3] : memref<128x1024xbf16, #tpu.memory_space<vmem>>, vector<128x1024xbf16>
    %cst = arith.constant dense<0.000000e+00> : vector<8x1024xf32>
    %6 = tpu.matmul %4, %5, %cst {dimension_numbers = #tpu.dot_dimension_numbers<[1], [0], [0], [1], [0, 0, 1, 1], [], []>} : vector<8x128xbf16>, vector<128x1024xbf16>, vector<8x1024xf32> -> vector<8x1024xf32>
    %c0_4 = arith.constant 0 : index
    %c0_5 = arith.constant 0 : index
    %7 = vector.load %arg4[%c0_4, %c0_5] : memref<1x1024xf32, #tpu.memory_space<vmem>>, vector<1x1024xf32>
    %8 = vector.broadcast %7 : vector<1x1024xf32> to vector<8x1024xf32>
    %9 = arith.addf %6, %8 : vector<8x1024xf32>
    %10 = vector.shape_cast %9 : vector<8x1024xf32> to vector<1x8x1024xf32>
    %c0_6 = arith.constant 0 : index
    %c0_7 = arith.constant 0 : index
    %c0_8 = arith.constant 0 : index
    %11 = vector.load %arg13[%c0_6, %c0_7, %c0_8] : memref<1x8x1024xf32, #tpu.memory_space<vmem>>, vector<1x8x1024xf32>
    tpu.vector_store %arg13[%c0_6, %c0_7, %c0_8], %10 {strides = array<i32>} : memref<1x8x1024xf32, #tpu.memory_space<vmem>>, vector<1x8x1024xf32>,
    %cst_9 = arith.constant 0.000000e+00 : f32
    %12 = vector.broadcast %cst_9 : f32 to vector<1x128xf32>
    %c0_i32 = arith.constant 0 : i32
    %c8_i32 = arith.constant 8 : i32
    %13 = arith.muli %c0_i32, %c8_i32 : i32
    %14 = tpu.assume_multiple %13, 8 : i32
    %c8_i32_10 = arith.constant 8 : i32
    %15 = arith.muli %c0_i32, %c8_i32_10 : i32
    %c0_i32_11 = arith.constant 0 : i32
    %16 = arith.subi %c0_i32_11, %15 : i32
    %17 = tpu.assume_multiple %16, 8 : i32
    %c0_12 = arith.constant 0 : index
    %c0_13 = arith.constant 0 : index
    %18 = vector.load %arg5[%c0_12, %c0_13] : memref<128x512xbf16, #tpu.memory_space<vmem>>, vector<128x512xbf16>
    %c0_14 = arith.constant 0 : index
    %c0_15 = arith.constant 0 : index
    %19 = vector.load %arg6[%c0_14, %c0_15] : memref<128x512xbf16, #tpu.memory_space<vmem>>, vector<128x512xbf16>
    %c0_16 = arith.constant 0 : index
    %20 = arith.index_cast %14 : i32 to index
    %c0_17 = arith.constant 0 : index
    %21 = vector.load %arg13[%c0_16, %20, %c0_17] : memref<1x8x1024xf32, #tpu.memory_space<vmem>>, vector<1x8x512xf32>
    %c0_18 = arith.constant 0 : index
    %22 = arith.index_cast %17 : i32 to index
    %c512 = arith.constant 512 : index
    %23 = vector.load %arg13[%c0_18, %22, %c512] : memref<1x8x1024xf32, #tpu.memory_space<vmem>>, vector<1x8x512xf32>
    %c0_i32_19 = arith.constant 0 : i32
    %24 = arith.addi %14, %c0_i32_19 : i32
    %c7_i32 = arith.constant 7 : i32
    %25 = arith.addi %17, %c7_i32 : i32
    %26 = vector.extract_strided_slice %21 {offsets = [0, 0, 0], sizes = [1, 1, 512], strides = [1, 1, 1]} : vector<1x8x512xf32> to vector<1x1x512xf32>
    %27 = vector.shape_cast %26 : vector<1x1x512xf32> to vector<1x512xf32>
    %28 = arith.truncf %12 : vector<1x128xf32> to vector<1x128xbf16>
    %cst_20 = arith.constant dense<0.000000e+00> : vector<1x512xf32>
    %29 = tpu.matmul %28, %18, %cst_20 {dimension_numbers = #tpu.dot_dimension_numbers<[1], [0], [0], [1], [0, 0, 1, 1], [], []>} : vector<1x128xbf16>, vector<128x512xbf16>, vector<1x512xf32> -> vector<1x512xf32>
    %30 = arith.addf %27, %29 : vector<1x512xf32>
    %31 = vector.extract_strided_slice %30 {offsets = [0, 0], sizes = [1, 384], strides = [1, 1]} : vector<1x512xf32> to vector<1x384xf32>
    %32 = arith.negf %31 : vector<1x384xf32>
    %33 = math.exp %32 : vector<1x384xf32>
    %cst_21 = arith.constant 1.000000e+00 : f32
    %34 = vector.broadcast %cst_21 : f32 to vector<1x384xf32>
    %35 = arith.addf %34, %33 : vector<1x384xf32>
    %36 = arith.divf %34, %35 : vector<1x384xf32>
    %37 = vector.extract_strided_slice %30 {offsets = [0, 384], sizes = [1, 128], strides = [1, 1]} : vector<1x512xf32> to vector<1x128xf32>
    %38 = math.tanh %37 : vector<1x128xf32>
    %39 = vector.extract_strided_slice %36 {offsets = [0, 128], sizes = [1, 128], strides = [1, 1]} : vector<1x384xf32> to vector<1x128xf32>
    %40 = arith.mulf %39, %12 : vector<1x128xf32>
    %41 = vector.extract_strided_slice %36 {offsets = [0, 0], sizes = [1, 128], strides = [1, 1]} : vector<1x384xf32> to vector<1x128xf32>
    %42 = arith.mulf %41, %38 : vector<1x128xf32>
    %43 = arith.addf %40, %42 : vector<1x128xf32>
    %44 = vector.extract_strided_slice %36 {offsets = [0, 256], sizes = [1, 128], strides = [1, 1]} : vector<1x384xf32> to vector<1x128xf32>
    %45 = math.tanh %43 : vector<1x128xf32>
    %46 = arith.mulf %44, %45 : vector<1x128xf32>
    %47 = arith.cmpi slt, %24, %2 : i32
    %48 = arith.select %47, %46, %12 : vector<1x128xf32>
    %49 = arith.select %47, %43, %12 : vector<1x128xf32>
    %cst_22 = arith.constant 0.000000e+00 : f32
    %50 = vector.broadcast %cst_22 : f32 to vector<1x128xf32>
    %51 = arith.select %47, %46, %50 : vector<1x128xf32>
    %52 = vector.extract_strided_slice %23 {offsets = [0, 7, 0], sizes = [1, 1, 512], strides = [1, 1, 1]} : vector<1x8x512xf32> to vector<1x1x512xf32>
    %53 = vector.shape_cast %52 : vector<1x1x512xf32> to vector<1x512xf32>
    %54 = arith.truncf %12 : vector<1x128xf32> to vector<1x128xbf16>
    %cst_23 = arith.constant dense<0.000000e+00> : vector<1x512xf32>
    %55 = tpu.matmul %54, %19, %cst_23 {dimension_numbers = #tpu.dot_dimension_numbers<[1], [0], [0], [1], [0, 0, 1, 1], [], []>} : vector<1x128xbf16>, vector<128x512xbf16>, vector<1x512xf32> -> vector<1x512xf32>
    %56 = arith.addf %53, %55 : vector<1x512xf32>
    %57 = vector.extract_strided_slice %56 {offsets = [0, 0], sizes = [1, 384], strides = [1, 1]} : vector<1x512xf32> to vector<1x384xf32>
    %58 = arith.negf %57 : vector<1x384xf32>
    %59 = math.exp %58 : vector<1x384xf32>
    %cst_24 = arith.constant 1.000000e+00 : f32
    %60 = vector.broadcast %cst_24 : f32 to vector<1x384xf32>
    %61 = arith.addf %60, %59 : vector<1x384xf32>
    %62 = arith.divf %60, %61 : vector<1x384xf32>
    %63 = vector.extract_strided_slice %56 {offsets = [0, 384], sizes = [1, 128], strides = [1, 1]} : vector<1x512xf32> to vector<1x128xf32>
    %64 = math.tanh %63 : vector<1x128xf32>
    %65 = vector.extract_strided_slice %62 {offsets = [0, 128], sizes = [1, 128], strides = [1, 1]} : vector<1x384xf32> to vector<1x128xf32>
    %66 = arith.mulf %65, %12 : vector<1x128xf32>
    %67 = vector.extract_strided_slice %62 {offsets = [0, 0], sizes = [1, 128], strides = [1, 1]} : vector<1x384xf32> to vector<1x128xf32>
    %68 = arith.mulf %67, %64 : vector<1x128xf32>
    %69 = arith.addf %66, %68 : vector<1x128xf32>
    %70 = vector.extract_strided_slice %62 {offsets = [0, 256], sizes = [1, 128], strides = [1, 1]} : vector<1x384xf32> to vector<1x128xf32>
    %71 = math.tanh %69 : vector<1x128xf32>
    %72 = arith.mulf %70, %71 : vector<1x128xf32>
    %73 = arith.cmpi slt, %25, %2 : i32
    %74 = arith.select %73, %72, %12 : vector<1x128xf32>
    %75 = arith.select %73, %69, %12 : vector<1x128xf32>
    %cst_25 = arith.constant 0.000000e+00 : f32
    %76 = vector.broadcast %cst_25 : f32 to vector<1x128xf32>
    %77 = arith.select %73, %72, %76 : vector<1x128xf32>
    %c1_i32_26 = arith.constant 1 : i32
    %78 = arith.addi %14, %c1_i32_26 : i32
    %c6_i32 = arith.constant 6 : i32
    %79 = arith.addi %17, %c6_i32 : i32
    %80 = vector.extract_strided_slice %21 {offsets = [0, 1, 0], sizes = [1, 1, 512], strides = [1, 1, 1]} : vector<1x8x512xf32> to vector<1x1x512xf32>
    %81 = vector.shape_cast %80 : vector<1x1x512xf32> to vector<1x512xf32>
    %82 = arith.truncf %48 : vector<1x128xf32> to vector<1x128xbf16>
    %cst_27 = arith.constant dense<0.000000e+00> : vector<1x512xf32>
    %83 = tpu.matmul %82, %18, %cst_27 {dimension_numbers = #tpu.dot_dimension_numbers<[1], [0], [0], [1], [0, 0, 1, 1], [], []>} : vector<1x128xbf16>, vector<128x512xbf16>, vector<1x512xf32> -> vector<1x512xf32>
    %84 = arith.addf %81, %83 : vector<1x512xf32>
    %85 = vector.extract_strided_slice %84 {offsets = [0, 0], sizes = [1, 384], strides = [1, 1]} : vector<1x512xf32> to vector<1x384xf32>
    %86 = arith.negf %85 : vector<1x384xf32>
    %87 = math.exp %86 : vector<1x384xf32>
    %cst_28 = arith.constant 1.000000e+00 : f32
    %88 = vector.broadcast %cst_28 : f32 to vector<1x384xf32>
    %89 = arith.addf %88, %87 : vector<1x384xf32>
    %90 = arith.divf %88, %89 : vector<1x384xf32>
    %91 = vector.extract_strided_slice %84 {offsets = [0, 384], sizes = [1, 128], strides = [1, 1]} : vector<1x512xf32> to vector<1x128xf32>
    %92 = math.tanh %91 : vector<1x128xf32>
    %93 = vector.extract_strided_slice %90 {offsets = [0, 128], sizes = [1, 128], strides = [1, 1]} : vector<1x384xf32> to vector<1x128xf32>
    %94 = arith.mulf %93, %49 : vector<1x128xf32>
    %95 = vector.extract_strided_slice %90 {offsets = [0, 0], sizes = [1, 128], strides = [1, 1]} : vector<1x384xf32> to vector<1x128xf32>
    %96 = arith.mulf %95, %92 : vector<1x128xf32>
    %97 = arith.addf %94, %96 : vector<1x128xf32>
    %98 = vector.extract_strided_slice %90 {offsets = [0, 256], sizes = [1, 128], strides = [1, 1]} : vector<1x384xf32> to vector<1x128xf32>
    %99 = math.tanh %97 : vector<1x128xf32>
    %100 = arith.mulf %98, %99 : vector<1x128xf32>
    %101 = arith.cmpi slt, %78, %2 : i32
    %102 = arith.select %101, %100, %48 : vector<1x128xf32>
    %103 = arith.select %101, %97, %49 : vector<1x128xf32>
    %cst_29 = arith.constant 0.000000e+00 : f32
    %104 = vector.broadcast %cst_29 : f32 to vector<1x128xf32>
    %105 = arith.select %101, %100, %104 : vector<1x128xf32>
    %106 = vector.extract_strided_slice %23 {offsets = [0, 6, 0], sizes = [1, 1, 512], strides = [1, 1, 1]} : vector<1x8x512xf32> to vector<1x1x512xf32>
    %107 = vector.shape_cast %106 : vector<1x1x512xf32> to vector<1x512xf32>
    %108 = arith.truncf %74 : vector<1x128xf32> to vector<1x128xbf16>
    %cst_30 = arith.constant dense<0.000000e+00> : vector<1x512xf32>
    %109 = tpu.matmul %108, %19, %cst_30 {dimension_numbers = #tpu.dot_dimension_numbers<[1], [0], [0], [1], [0, 0, 1, 1], [], []>} : vector<1x128xbf16>, vector<128x512xbf16>, vector<1x512xf32> -> vector<1x512xf32>
    %110 = arith.addf %107, %109 : vector<1x512xf32>
    %111 = vector.extract_strided_slice %110 {offsets = [0, 0], sizes = [1, 384], strides = [1, 1]} : vector<1x512xf32> to vector<1x384xf32>
    %112 = arith.negf %111 : vector<1x384xf32>
    %113 = math.exp %112 : vector<1x384xf32>
    %cst_31 = arith.constant 1.000000e+00 : f32
    %114 = vector.broadcast %cst_31 : f32 to vector<1x384xf32>
    %115 = arith.addf %114, %113 : vector<1x384xf32>
    %116 = arith.divf %114, %115 : vector<1x384xf32>
    %117 = vector.extract_strided_slice %110 {offsets = [0, 384], sizes = [1, 128], strides = [1, 1]} : vector<1x512xf32> to vector<1x128xf32>
    %118 = math.tanh %117 : vector<1x128xf32>
    %119 = vector.extract_strided_slice %116 {offsets = [0, 128], sizes = [1, 128], strides = [1, 1]} : vector<1x384xf32> to vector<1x128xf32>
    %120 = arith.mulf %119, %75 : vector<1x128xf32>
    %121 = vector.extract_strided_slice %116 {offsets = [0, 0], sizes = [1, 128], strides = [1, 1]} : vector<1x384xf32> to vector<1x128xf32>
    %122 = arith.mulf %121, %118 : vector<1x128xf32>
    %123 = arith.addf %120, %122 : vector<1x128xf32>
    %124 = vector.extract_strided_slice %116 {offsets = [0, 256], sizes = [1, 128], strides = [1, 1]} : vector<1x384xf32> to vector<1x128xf32>
    %125 = math.tanh %123 : vector<1x128xf32>
    %126 = arith.mulf %124, %125 : vector<1x128xf32>
    %127 = arith.cmpi slt, %79, %2 : i32
    %128 = arith.select %127, %126, %74 : vector<1x128xf32>
    %129 = arith.select %127, %123, %75 : vector<1x128xf32>
    %cst_32 = arith.constant 0.000000e+00 : f32
    %130 = vector.broadcast %cst_32 : f32 to vector<1x128xf32>
    %131 = arith.select %127, %126, %130 : vector<1x128xf32>
    %c2_i32 = arith.constant 2 : i32
    %132 = arith.addi %14, %c2_i32 : i32
    %c5_i32 = arith.constant 5 : i32
    %133 = arith.addi %17, %c5_i32 : i32
    %134 = vector.extract_strided_slice %21 {offsets = [0, 2, 0], sizes = [1, 1, 512], strides = [1, 1, 1]} : vector<1x8x512xf32> to vector<1x1x512xf32>
    %135 = vector.shape_cast %134 : vector<1x1x512xf32> to vector<1x512xf32>
    %136 = arith.truncf %102 : vector<1x128xf32> to vector<1x128xbf16>
    %cst_33 = arith.constant dense<0.000000e+00> : vector<1x512xf32>
    %137 = tpu.matmul %136, %18, %cst_33 {dimension_numbers = #tpu.dot_dimension_numbers<[1], [0], [0], [1], [0, 0, 1, 1], [], []>} : vector<1x128xbf16>, vector<128x512xbf16>, vector<1x512xf32> -> vector<1x512xf32>
    %138 = arith.addf %135, %137 : vector<1x512xf32>
    %139 = vector.extract_strided_slice %138 {offsets = [0, 0], sizes = [1, 384], strides = [1, 1]} : vector<1x512xf32> to vector<1x384xf32>
    %140 = arith.negf %139 : vector<1x384xf32>
    %141 = math.exp %140 : vector<1x384xf32>
    %cst_34 = arith.constant 1.000000e+00 : f32
    %142 = vector.broadcast %cst_34 : f32 to vector<1x384xf32>
    %143 = arith.addf %142, %141 : vector<1x384xf32>
    %144 = arith.divf %142, %143 : vector<1x384xf32>
    %145 = vector.extract_strided_slice %138 {offsets = [0, 384], sizes = [1, 128], strides = [1, 1]} : vector<1x512xf32> to vector<1x128xf32>
    %146 = math.tanh %145 : vector<1x128xf32>
    %147 = vector.extract_strided_slice %144 {offsets = [0, 128], sizes = [1, 128], strides = [1, 1]} : vector<1x384xf32> to vector<1x128xf32>
    %148 = arith.mulf %147, %103 : vector<1x128xf32>
    %149 = vector.extract_strided_slice %144 {offsets = [0, 0], sizes = [1, 128], strides = [1, 1]} : vector<1x384xf32> to vector<1x128xf32>
    %150 = arith.mulf %149, %146 : vector<1x128xf32>
    %151 = arith.addf %148, %150 : vector<1x128xf32>
    %152 = vector.extract_strided_slice %144 {offsets = [0, 256], sizes = [1, 128], strides = [1, 1]} : vector<1x384xf32> to vector<1x128xf32>
    %153 = math.tanh %151 : vector<1x128xf32>
    %154 = arith.mulf %152, %153 : vector<1x128xf32>
    %155 = arith.cmpi slt, %132, %2 : i32
    %156 = arith.select %155, %154, %102 : vector<1x128xf32>
    %157 = arith.select %155, %151, %103 : vector<1x128xf32>
    %cst_35 = arith.constant 0.000000e+00 : f32
    %158 = vector.broadcast %cst_35 : f32 to vector<1x128xf32>
    %159 = arith.select %155, %154, %158 : vector<1x128xf32>
    %160 = vector.extract_strided_slice %23 {offsets = [0, 5, 0], sizes = [1, 1, 512], strides = [1, 1, 1]} : vector<1x8x512xf32> to vector<1x1x512xf32>
    %161 = vector.shape_cast %160 : vector<1x1x512xf32> to vector<1x512xf32>
    %162 = arith.truncf %128 : vector<1x128xf32> to vector<1x128xbf16>
    %cst_36 = arith.constant dense<0.000000e+00> : vector<1x512xf32>
    %163 = tpu.matmul %162, %19, %cst_36 {dimension_numbers = #tpu.dot_dimension_numbers<[1], [0], [0], [1], [0, 0, 1, 1], [], []>} : vector<1x128xbf16>, vector<128x512xbf16>, vector<1x512xf32> -> vector<1x512xf32>
    %164 = arith.addf %161, %163 : vector<1x512xf32>
    %165 = vector.extract_strided_slice %164 {offsets = [0, 0], sizes = [1, 384], strides = [1, 1]} : vector<1x512xf32> to vector<1x384xf32>
    %166 = arith.negf %165 : vector<1x384xf32>
    %167 = math.exp %166 : vector<1x384xf32>
    %cst_37 = arith.constant 1.000000e+00 : f32
    %168 = vector.broadcast %cst_37 : f32 to vector<1x384xf32>
    %169 = arith.addf %168, %167 : vector<1x384xf32>
    %170 = arith.divf %168, %169 : vector<1x384xf32>
    %171 = vector.extract_strided_slice %164 {offsets = [0, 384], sizes = [1, 128], strides = [1, 1]} : vector<1x512xf32> to vector<1x128xf32>
    %172 = math.tanh %171 : vector<1x128xf32>
    %173 = vector.extract_strided_slice %170 {offsets = [0, 128], sizes = [1, 128], strides = [1, 1]} : vector<1x384xf32> to vector<1x128xf32>
    %174 = arith.mulf %173, %129 : vector<1x128xf32>
    %175 = vector.extract_strided_slice %170 {offsets = [0, 0], sizes = [1, 128], strides = [1, 1]} : vector<1x384xf32> to vector<1x128xf32>
    %176 = arith.mulf %175, %172 : vector<1x128xf32>
    %177 = arith.addf %174, %176 : vector<1x128xf32>
    %178 = vector.extract_strided_slice %170 {offsets = [0, 256], sizes = [1, 128], strides = [1, 1]} : vector<1x384xf32> to vector<1x128xf32>
    %179 = math.tanh %177 : vector<1x128xf32>
    %180 = arith.mulf %178, %179 : vector<1x128xf32>
    %181 = arith.cmpi slt, %133, %2 : i32
    %182 = arith.select %181, %180, %128 : vector<1x128xf32>
    %183 = arith.select %181, %177, %129 : vector<1x128xf32>
    %cst_38 = arith.constant 0.000000e+00 : f32
    %184 = vector.broadcast %cst_38 : f32 to vector<1x128xf32>
    %185 = arith.select %181, %180, %184 : vector<1x128xf32>
    %c3_i32 = arith.constant 3 : i32
    %186 = arith.addi %14, %c3_i32 : i32
    %c4_i32 = arith.constant 4 : i32
    %187 = arith.addi %17, %c4_i32 : i32
    %188 = vector.extract_strided_slice %21 {offsets = [0, 3, 0], sizes = [1, 1, 512], strides = [1, 1, 1]} : vector<1x8x512xf32> to vector<1x1x512xf32>
    %189 = vector.shape_cast %188 : vector<1x1x512xf32> to vector<1x512xf32>
    %190 = arith.truncf %156 : vector<1x128xf32> to vector<1x128xbf16>
    %cst_39 = arith.constant dense<0.000000e+00> : vector<1x512xf32>
    %191 = tpu.matmul %190, %18, %cst_39 {dimension_numbers = #tpu.dot_dimension_numbers<[1], [0], [0], [1], [0, 0, 1, 1], [], []>} : vector<1x128xbf16>, vector<128x512xbf16>, vector<1x512xf32> -> vector<1x512xf32>
    %192 = arith.addf %189, %191 : vector<1x512xf32>
    %193 = vector.extract_strided_slice %192 {offsets = [0, 0], sizes = [1, 384], strides = [1, 1]} : vector<1x512xf32> to vector<1x384xf32>
    %194 = arith.negf %193 : vector<1x384xf32>
    %195 = math.exp %194 : vector<1x384xf32>
    %cst_40 = arith.constant 1.000000e+00 : f32
    %196 = vector.broadcast %cst_40 : f32 to vector<1x384xf32>
    %197 = arith.addf %196, %195 : vector<1x384xf32>
    %198 = arith.divf %196, %197 : vector<1x384xf32>
    %199 = vector.extract_strided_slice %192 {offsets = [0, 384], sizes = [1, 128], strides = [1, 1]} : vector<1x512xf32> to vector<1x128xf32>
    %200 = math.tanh %199 : vector<1x128xf32>
    %201 = vector.extract_strided_slice %198 {offsets = [0, 128], sizes = [1, 128], strides = [1, 1]} : vector<1x384xf32> to vector<1x128xf32>
    %202 = arith.mulf %201, %157 : vector<1x128xf32>
    %203 = vector.extract_strided_slice %198 {offsets = [0, 0], sizes = [1, 128], strides = [1, 1]} : vector<1x384xf32> to vector<1x128xf32>
    %204 = arith.mulf %203, %200 : vector<1x128xf32>
    %205 = arith.addf %202, %204 : vector<1x128xf32>
    %206 = vector.extract_strided_slice %198 {offsets = [0, 256], sizes = [1, 128], strides = [1, 1]} : vector<1x384xf32> to vector<1x128xf32>
    %207 = math.tanh %205 : vector<1x128xf32>
    %208 = arith.mulf %206, %207 : vector<1x128xf32>
    %209 = arith.cmpi slt, %186, %2 : i32
    %210 = arith.select %209, %208, %156 : vector<1x128xf32>
    %211 = arith.select %209, %205, %157 : vector<1x128xf32>
    %cst_41 = arith.constant 0.000000e+00 : f32
    %212 = vector.broadcast %cst_41 : f32 to vector<1x128xf32>
    %213 = arith.select %209, %208, %212 : vector<1x128xf32>
    %214 = vector.extract_strided_slice %23 {offsets = [0, 4, 0], sizes = [1, 1, 512], strides = [1, 1, 1]} : vector<1x8x512xf32> to vector<1x1x512xf32>
    %215 = vector.shape_cast %214 : vector<1x1x512xf32> to vector<1x512xf32>
    %216 = arith.truncf %182 : vector<1x128xf32> to vector<1x128xbf16>
    %cst_42 = arith.constant dense<0.000000e+00> : vector<1x512xf32>
    %217 = tpu.matmul %216, %19, %cst_42 {dimension_numbers = #tpu.dot_dimension_numbers<[1], [0], [0], [1], [0, 0, 1, 1], [], []>} : vector<1x128xbf16>, vector<128x512xbf16>, vector<1x512xf32> -> vector<1x512xf32>
    %218 = arith.addf %215, %217 : vector<1x512xf32>
    %219 = vector.extract_strided_slice %218 {offsets = [0, 0], sizes = [1, 384], strides = [1, 1]} : vector<1x512xf32> to vector<1x384xf32>
    %220 = arith.negf %219 : vector<1x384xf32>
    %221 = math.exp %220 : vector<1x384xf32>
    %cst_43 = arith.constant 1.000000e+00 : f32
    %222 = vector.broadcast %cst_43 : f32 to vector<1x384xf32>
    %223 = arith.addf %222, %221 : vector<1x384xf32>
    %224 = arith.divf %222, %223 : vector<1x384xf32>
    %225 = vector.extract_strided_slice %218 {offsets = [0, 384], sizes = [1, 128], strides = [1, 1]} : vector<1x512xf32> to vector<1x128xf32>
    %226 = math.tanh %225 : vector<1x128xf32>
    %227 = vector.extract_strided_slice %224 {offsets = [0, 128], sizes = [1, 128], strides = [1, 1]} : vector<1x384xf32> to vector<1x128xf32>
    %228 = arith.mulf %227, %183 : vector<1x128xf32>
    %229 = vector.extract_strided_slice %224 {offsets = [0, 0], sizes = [1, 128], strides = [1, 1]} : vector<1x384xf32> to vector<1x128xf32>
    %230 = arith.mulf %229, %226 : vector<1x128xf32>
    %231 = arith.addf %228, %230 : vector<1x128xf32>
    %232 = vector.extract_strided_slice %224 {offsets = [0, 256], sizes = [1, 128], strides = [1, 1]} : vector<1x384xf32> to vector<1x128xf32>
    %233 = math.tanh %231 : vector<1x128xf32>
    %234 = arith.mulf %232, %233 : vector<1x128xf32>
    %235 = arith.cmpi slt, %187, %2 : i32
    %236 = arith.select %235, %234, %182 : vector<1x128xf32>
    %237 = arith.select %235, %231, %183 : vector<1x128xf32>
    %cst_44 = arith.constant 0.000000e+00 : f32
    %238 = vector.broadcast %cst_44 : f32 to vector<1x128xf32>
    %239 = arith.select %235, %234, %238 : vector<1x128xf32>
    %c4_i32_45 = arith.constant 4 : i32
    %240 = arith.addi %14, %c4_i32_45 : i32
    %c3_i32_46 = arith.constant 3 : i32
    %241 = arith.addi %17, %c3_i32_46 : i32
    %242 = vector.extract_strided_slice %21 {offsets = [0, 4, 0], sizes = [1, 1, 512], strides = [1, 1, 1]} : vector<1x8x512xf32> to vector<1x1x512xf32>
    %243 = vector.shape_cast %242 : vector<1x1x512xf32> to vector<1x512xf32>
    %244 = arith.truncf %210 : vector<1x128xf32> to vector<1x128xbf16>
    %cst_47 = arith.constant dense<0.000000e+00> : vector<1x512xf32>
    %245 = tpu.matmul %244, %18, %cst_47 {dimension_numbers = #tpu.dot_dimension_numbers<[1], [0], [0], [1], [0, 0, 1, 1], [], []>} : vector<1x128xbf16>, vector<128x512xbf16>, vector<1x512xf32> -> vector<1x512xf32>
    %246 = arith.addf %243, %245 : vector<1x512xf32>
    %247 = vector.extract_strided_slice %246 {offsets = [0, 0], sizes = [1, 384], strides = [1, 1]} : vector<1x512xf32> to vector<1x384xf32>
    %248 = arith.negf %247 : vector<1x384xf32>
    %249 = math.exp %248 : vector<1x384xf32>
    %cst_48 = arith.constant 1.000000e+00 : f32
    %250 = vector.broadcast %cst_48 : f32 to vector<1x384xf32>
    %251 = arith.addf %250, %249 : vector<1x384xf32>
    %252 = arith.divf %250, %251 : vector<1x384xf32>
    %253 = vector.extract_strided_slice %246 {offsets = [0, 384], sizes = [1, 128], strides = [1, 1]} : vector<1x512xf32> to vector<1x128xf32>
    %254 = math.tanh %253 : vector<1x128xf32>
    %255 = vector.extract_strided_slice %252 {offsets = [0, 128], sizes = [1, 128], strides = [1, 1]} : vector<1x384xf32> to vector<1x128xf32>
    %256 = arith.mulf %255, %211 : vector<1x128xf32>
    %257 = vector.extract_strided_slice %252 {offsets = [0, 0], sizes = [1, 128], strides = [1, 1]} : vector<1x384xf32> to vector<1x128xf32>
    %258 = arith.mulf %257, %254 : vector<1x128xf32>
    %259 = arith.addf %256, %258 : vector<1x128xf32>
    %260 = vector.extract_strided_slice %252 {offsets = [0, 256], sizes = [1, 128], strides = [1, 1]} : vector<1x384xf32> to vector<1x128xf32>
    %261 = math.tanh %259 : vector<1x128xf32>
    %262 = arith.mulf %260, %261 : vector<1x128xf32>
    %263 = arith.cmpi slt, %240, %2 : i32
    %264 = arith.select %263, %262, %210 : vector<1x128xf32>
    %265 = arith.select %263, %259, %211 : vector<1x128xf32>
    %cst_49 = arith.constant 0.000000e+00 : f32
    %266 = vector.broadcast %cst_49 : f32 to vector<1x128xf32>
    %267 = arith.select %263, %262, %266 : vector<1x128xf32>
    %268 = vector.extract_strided_slice %23 {offsets = [0, 3, 0], sizes = [1, 1, 512], strides = [1, 1, 1]} : vector<1x8x512xf32> to vector<1x1x512xf32>
    %269 = vector.shape_cast %268 : vector<1x1x512xf32> to vector<1x512xf32>
    %270 = arith.truncf %236 : vector<1x128xf32> to vector<1x128xbf16>
    %cst_50 = arith.constant dense<0.000000e+00> : vector<1x512xf32>
    %271 = tpu.matmul %270, %19, %cst_50 {dimension_numbers = #tpu.dot_dimension_numbers<[1], [0], [0], [1], [0, 0, 1, 1], [], []>} : vector<1x128xbf16>, vector<128x512xbf16>, vector<1x512xf32> -> vector<1x512xf32>
    %272 = arith.addf %269, %271 : vector<1x512xf32>
    %273 = vector.extract_strided_slice %272 {offsets = [0, 0], sizes = [1, 384], strides = [1, 1]} : vector<1x512xf32> to vector<1x384xf32>
    %274 = arith.negf %273 : vector<1x384xf32>
    %275 = math.exp %274 : vector<1x384xf32>
    %cst_51 = arith.constant 1.000000e+00 : f32
    %276 = vector.broadcast %cst_51 : f32 to vector<1x384xf32>
    %277 = arith.addf %276, %275 : vector<1x384xf32>
    %278 = arith.divf %276, %277 : vector<1x384xf32>
    %279 = vector.extract_strided_slice %272 {offsets = [0, 384], sizes = [1, 128], strides = [1, 1]} : vector<1x512xf32> to vector<1x128xf32>
    %280 = math.tanh %279 : vector<1x128xf32>
    %281 = vector.extract_strided_slice %278 {offsets = [0, 128], sizes = [1, 128], strides = [1, 1]} : vector<1x384xf32> to vector<1x128xf32>
    %282 = arith.mulf %281, %237 : vector<1x128xf32>
    %283 = vector.extract_strided_slice %278 {offsets = [0, 0], sizes = [1, 128], strides = [1, 1]} : vector<1x384xf32> to vector<1x128xf32>
    %284 = arith.mulf %283, %280 : vector<1x128xf32>
    %285 = arith.addf %282, %284 : vector<1x128xf32>
    %286 = vector.extract_strided_slice %278 {offsets = [0, 256], sizes = [1, 128], strides = [1, 1]} : vector<1x384xf32> to vector<1x128xf32>
    %287 = math.tanh %285 : vector<1x128xf32>
    %288 = arith.mulf %286, %287 : vector<1x128xf32>
    %289 = arith.cmpi slt, %241, %2 : i32
    %290 = arith.select %289, %288, %236 : vector<1x128xf32>
    %291 = arith.select %289, %285, %237 : vector<1x128xf32>
    %cst_52 = arith.constant 0.000000e+00 : f32
    %292 = vector.broadcast %cst_52 : f32 to vector<1x128xf32>
    %293 = arith.select %289, %288, %292 : vector<1x128xf32>
    %c5_i32_53 = arith.constant 5 : i32
    %294 = arith.addi %14, %c5_i32_53 : i32
    %c2_i32_54 = arith.constant 2 : i32
    %295 = arith.addi %17, %c2_i32_54 : i32
    %296 = vector.extract_strided_slice %21 {offsets = [0, 5, 0], sizes = [1, 1, 512], strides = [1, 1, 1]} : vector<1x8x512xf32> to vector<1x1x512xf32>
    %297 = vector.shape_cast %296 : vector<1x1x512xf32> to vector<1x512xf32>
    %298 = arith.truncf %264 : vector<1x128xf32> to vector<1x128xbf16>
    %cst_55 = arith.constant dense<0.000000e+00> : vector<1x512xf32>
    %299 = tpu.matmul %298, %18, %cst_55 {dimension_numbers = #tpu.dot_dimension_numbers<[1], [0], [0], [1], [0, 0, 1, 1], [], []>} : vector<1x128xbf16>, vector<128x512xbf16>, vector<1x512xf32> -> vector<1x512xf32>
    %300 = arith.addf %297, %299 : vector<1x512xf32>
    %301 = vector.extract_strided_slice %300 {offsets = [0, 0], sizes = [1, 384], strides = [1, 1]} : vector<1x512xf32> to vector<1x384xf32>
    %302 = arith.negf %301 : vector<1x384xf32>
    %303 = math.exp %302 : vector<1x384xf32>
    %cst_56 = arith.constant 1.000000e+00 : f32
    %304 = vector.broadcast %cst_56 : f32 to vector<1x384xf32>
    %305 = arith.addf %304, %303 : vector<1x384xf32>
    %306 = arith.divf %304, %305 : vector<1x384xf32>
    %307 = vector.extract_strided_slice %300 {offsets = [0, 384], sizes = [1, 128], strides = [1, 1]} : vector<1x512xf32> to vector<1x128xf32>
    %308 = math.tanh %307 : vector<1x128xf32>
    %309 = vector.extract_strided_slice %306 {offsets = [0, 128], sizes = [1, 128], strides = [1, 1]} : vector<1x384xf32> to vector<1x128xf32>
    %310 = arith.mulf %309, %265 : vector<1x128xf32>
    %311 = vector.extract_strided_slice %306 {offsets = [0, 0], sizes = [1, 128], strides = [1, 1]} : vector<1x384xf32> to vector<1x128xf32>
    %312 = arith.mulf %311, %308 : vector<1x128xf32>
    %313 = arith.addf %310, %312 : vector<1x128xf32>
    %314 = vector.extract_strided_slice %306 {offsets = [0, 256], sizes = [1, 128], strides = [1, 1]} : vector<1x384xf32> to vector<1x128xf32>
    %315 = math.tanh %313 : vector<1x128xf32>
    %316 = arith.mulf %314, %315 : vector<1x128xf32>
    %317 = arith.cmpi slt, %294, %2 : i32
    %318 = arith.select %317, %316, %264 : vector<1x128xf32>
    %319 = arith.select %317, %313, %265 : vector<1x128xf32>
    %cst_57 = arith.constant 0.000000e+00 : f32
    %320 = vector.broadcast %cst_57 : f32 to vector<1x128xf32>
    %321 = arith.select %317, %316, %320 : vector<1x128xf32>
    %322 = vector.extract_strided_slice %23 {offsets = [0, 2, 0], sizes = [1, 1, 512], strides = [1, 1, 1]} : vector<1x8x512xf32> to vector<1x1x512xf32>
    %323 = vector.shape_cast %322 : vector<1x1x512xf32> to vector<1x512xf32>
    %324 = arith.truncf %290 : vector<1x128xf32> to vector<1x128xbf16>
    %cst_58 = arith.constant dense<0.000000e+00> : vector<1x512xf32>
    %325 = tpu.matmul %324, %19, %cst_58 {dimension_numbers = #tpu.dot_dimension_numbers<[1], [0], [0], [1], [0, 0, 1, 1], [], []>} : vector<1x128xbf16>, vector<128x512xbf16>, vector<1x512xf32> -> vector<1x512xf32>
    %326 = arith.addf %323, %325 : vector<1x512xf32>
    %327 = vector.extract_strided_slice %326 {offsets = [0, 0], sizes = [1, 384], strides = [1, 1]} : vector<1x512xf32> to vector<1x384xf32>
    %328 = arith.negf %327 : vector<1x384xf32>
    %329 = math.exp %328 : vector<1x384xf32>
    %cst_59 = arith.constant 1.000000e+00 : f32
    %330 = vector.broadcast %cst_59 : f32 to vector<1x384xf32>
    %331 = arith.addf %330, %329 : vector<1x384xf32>
    %332 = arith.divf %330, %331 : vector<1x384xf32>
    %333 = vector.extract_strided_slice %326 {offsets = [0, 384], sizes = [1, 128], strides = [1, 1]} : vector<1x512xf32> to vector<1x128xf32>
    %334 = math.tanh %333 : vector<1x128xf32>
    %335 = vector.extract_strided_slice %332 {offsets = [0, 128], sizes = [1, 128], strides = [1, 1]} : vector<1x384xf32> to vector<1x128xf32>
    %336 = arith.mulf %335, %291 : vector<1x128xf32>
    %337 = vector.extract_strided_slice %332 {offsets = [0, 0], sizes = [1, 128], strides = [1, 1]} : vector<1x384xf32> to vector<1x128xf32>
    %338 = arith.mulf %337, %334 : vector<1x128xf32>
    %339 = arith.addf %336, %338 : vector<1x128xf32>
    %340 = vector.extract_strided_slice %332 {offsets = [0, 256], sizes = [1, 128], strides = [1, 1]} : vector<1x384xf32> to vector<1x128xf32>
    %341 = math.tanh %339 : vector<1x128xf32>
    %342 = arith.mulf %340, %341 : vector<1x128xf32>
    %343 = arith.cmpi slt, %295, %2 : i32
    %344 = arith.select %343, %342, %290 : vector<1x128xf32>
    %345 = arith.select %343, %339, %291 : vector<1x128xf32>
    %cst_60 = arith.constant 0.000000e+00 : f32
    %346 = vector.broadcast %cst_60 : f32 to vector<1x128xf32>
    %347 = arith.select %343, %342, %346 : vector<1x128xf32>
    %c6_i32_61 = arith.constant 6 : i32
    %348 = arith.addi %14, %c6_i32_61 : i32
    %c1_i32_62 = arith.constant 1 : i32
    %349 = arith.addi %17, %c1_i32_62 : i32
    %350 = vector.extract_strided_slice %21 {offsets = [0, 6, 0], sizes = [1, 1, 512], strides = [1, 1, 1]} : vector<1x8x512xf32> to vector<1x1x512xf32>
    %351 = vector.shape_cast %350 : vector<1x1x512xf32> to vector<1x512xf32>
    %352 = arith.truncf %318 : vector<1x128xf32> to vector<1x128xbf16>
    %cst_63 = arith.constant dense<0.000000e+00> : vector<1x512xf32>
    %353 = tpu.matmul %352, %18, %cst_63 {dimension_numbers = #tpu.dot_dimension_numbers<[1], [0], [0], [1], [0, 0, 1, 1], [], []>} : vector<1x128xbf16>, vector<128x512xbf16>, vector<1x512xf32> -> vector<1x512xf32>
    %354 = arith.addf %351, %353 : vector<1x512xf32>
    %355 = vector.extract_strided_slice %354 {offsets = [0, 0], sizes = [1, 384], strides = [1, 1]} : vector<1x512xf32> to vector<1x384xf32>
    %356 = arith.negf %355 : vector<1x384xf32>
    %357 = math.exp %356 : vector<1x384xf32>
    %cst_64 = arith.constant 1.000000e+00 : f32
    %358 = vector.broadcast %cst_64 : f32 to vector<1x384xf32>
    %359 = arith.addf %358, %357 : vector<1x384xf32>
    %360 = arith.divf %358, %359 : vector<1x384xf32>
    %361 = vector.extract_strided_slice %354 {offsets = [0, 384], sizes = [1, 128], strides = [1, 1]} : vector<1x512xf32> to vector<1x128xf32>
    %362 = math.tanh %361 : vector<1x128xf32>
    %363 = vector.extract_strided_slice %360 {offsets = [0, 128], sizes = [1, 128], strides = [1, 1]} : vector<1x384xf32> to vector<1x128xf32>
    %364 = arith.mulf %363, %319 : vector<1x128xf32>
    %365 = vector.extract_strided_slice %360 {offsets = [0, 0], sizes = [1, 128], strides = [1, 1]} : vector<1x384xf32> to vector<1x128xf32>
    %366 = arith.mulf %365, %362 : vector<1x128xf32>
    %367 = arith.addf %364, %366 : vector<1x128xf32>
    %368 = vector.extract_strided_slice %360 {offsets = [0, 256], sizes = [1, 128], strides = [1, 1]} : vector<1x384xf32> to vector<1x128xf32>
    %369 = math.tanh %367 : vector<1x128xf32>
    %370 = arith.mulf %368, %369 : vector<1x128xf32>
    %371 = arith.cmpi slt, %348, %2 : i32
    %372 = arith.select %371, %370, %318 : vector<1x128xf32>
    %373 = arith.select %371, %367, %319 : vector<1x128xf32>
    %cst_65 = arith.constant 0.000000e+00 : f32
    %374 = vector.broadcast %cst_65 : f32 to vector<1x128xf32>
    %375 = arith.select %371, %370, %374 : vector<1x128xf32>
    %376 = vector.extract_strided_slice %23 {offsets = [0, 1, 0], sizes = [1, 1, 512], strides = [1, 1, 1]} : vector<1x8x512xf32> to vector<1x1x512xf32>
    %377 = vector.shape_cast %376 : vector<1x1x512xf32> to vector<1x512xf32>
    %378 = arith.truncf %344 : vector<1x128xf32> to vector<1x128xbf16>
    %cst_66 = arith.constant dense<0.000000e+00> : vector<1x512xf32>
    %379 = tpu.matmul %378, %19, %cst_66 {dimension_numbers = #tpu.dot_dimension_numbers<[1], [0], [0], [1], [0, 0, 1, 1], [], []>} : vector<1x128xbf16>, vector<128x512xbf16>, vector<1x512xf32> -> vector<1x512xf32>
    %380 = arith.addf %377, %379 : vector<1x512xf32>
    %381 = vector.extract_strided_slice %380 {offsets = [0, 0], sizes = [1, 384], strides = [1, 1]} : vector<1x512xf32> to vector<1x384xf32>
    %382 = arith.negf %381 : vector<1x384xf32>
    %383 = math.exp %382 : vector<1x384xf32>
    %cst_67 = arith.constant 1.000000e+00 : f32
    %384 = vector.broadcast %cst_67 : f32 to vector<1x384xf32>
    %385 = arith.addf %384, %383 : vector<1x384xf32>
    %386 = arith.divf %384, %385 : vector<1x384xf32>
    %387 = vector.extract_strided_slice %380 {offsets = [0, 384], sizes = [1, 128], strides = [1, 1]} : vector<1x512xf32> to vector<1x128xf32>
    %388 = math.tanh %387 : vector<1x128xf32>
    %389 = vector.extract_strided_slice %386 {offsets = [0, 128], sizes = [1, 128], strides = [1, 1]} : vector<1x384xf32> to vector<1x128xf32>
    %390 = arith.mulf %389, %345 : vector<1x128xf32>
    %391 = vector.extract_strided_slice %386 {offsets = [0, 0], sizes = [1, 128], strides = [1, 1]} : vector<1x384xf32> to vector<1x128xf32>
    %392 = arith.mulf %391, %388 : vector<1x128xf32>
    %393 = arith.addf %390, %392 : vector<1x128xf32>
    %394 = vector.extract_strided_slice %386 {offsets = [0, 256], sizes = [1, 128], strides = [1, 1]} : vector<1x384xf32> to vector<1x128xf32>
    %395 = math.tanh %393 : vector<1x128xf32>
    %396 = arith.mulf %394, %395 : vector<1x128xf32>
    %397 = arith.cmpi slt, %349, %2 : i32
    %398 = arith.select %397, %396, %344 : vector<1x128xf32>
    %399 = arith.select %397, %393, %345 : vector<1x128xf32>
    %cst_68 = arith.constant 0.000000e+00 : f32
    %400 = vector.broadcast %cst_68 : f32 to vector<1x128xf32>
    %401 = arith.select %397, %396, %400 : vector<1x128xf32>
    %c7_i32_69 = arith.constant 7 : i32
    %402 = arith.addi %14, %c7_i32_69 : i32
    %c0_i32_70 = arith.constant 0 : i32
    %403 = arith.addi %17, %c0_i32_70 : i32
    %404 = vector.extract_strided_slice %21 {offsets = [0, 7, 0], sizes = [1, 1, 512], strides = [1, 1, 1]} : vector<1x8x512xf32> to vector<1x1x512xf32>
    %405 = vector.shape_cast %404 : vector<1x1x512xf32> to vector<1x512xf32>
    %406 = arith.truncf %372 : vector<1x128xf32> to vector<1x128xbf16>
    %cst_71 = arith.constant dense<0.000000e+00> : vector<1x512xf32>
    %407 = tpu.matmul %406, %18, %cst_71 {dimension_numbers = #tpu.dot_dimension_numbers<[1], [0], [0], [1], [0, 0, 1, 1], [], []>} : vector<1x128xbf16>, vector<128x512xbf16>, vector<1x512xf32> -> vector<1x512xf32>
    %408 = arith.addf %405, %407 : vector<1x512xf32>
    %409 = vector.extract_strided_slice %408 {offsets = [0, 0], sizes = [1, 384], strides = [1, 1]} : vector<1x512xf32> to vector<1x384xf32>
    %410 = arith.negf %409 : vector<1x384xf32>
    %411 = math.exp %410 : vector<1x384xf32>
    %cst_72 = arith.constant 1.000000e+00 : f32
    %412 = vector.broadcast %cst_72 : f32 to vector<1x384xf32>
    %413 = arith.addf %412, %411 : vector<1x384xf32>
    %414 = arith.divf %412, %413 : vector<1x384xf32>
    %415 = vector.extract_strided_slice %408 {offsets = [0, 384], sizes = [1, 128], strides = [1, 1]} : vector<1x512xf32> to vector<1x128xf32>
    %416 = math.tanh %415 : vector<1x128xf32>
    %417 = vector.extract_strided_slice %414 {offsets = [0, 128], sizes = [1, 128], strides = [1, 1]} : vector<1x384xf32> to vector<1x128xf32>
    %418 = arith.mulf %417, %373 : vector<1x128xf32>
    %419 = vector.extract_strided_slice %414 {offsets = [0, 0], sizes = [1, 128], strides = [1, 1]} : vector<1x384xf32> to vector<1x128xf32>
    %420 = arith.mulf %419, %416 : vector<1x128xf32>
    %421 = arith.addf %418, %420 : vector<1x128xf32>
    %422 = vector.extract_strided_slice %414 {offsets = [0, 256], sizes = [1, 128], strides = [1, 1]} : vector<1x384xf32> to vector<1x128xf32>
    %423 = math.tanh %421 : vector<1x128xf32>
    %424 = arith.mulf %422, %423 : vector<1x128xf32>
    %425 = arith.cmpi slt, %402, %2 : i32
    %426 = arith.select %425, %424, %372 : vector<1x128xf32>
    %427 = arith.select %425, %421, %373 : vector<1x128xf32>
    %cst_73 = arith.constant 0.000000e+00 : f32
    %428 = vector.broadcast %cst_73 : f32 to vector<1x128xf32>
    %429 = arith.select %425, %424, %428 : vector<1x128xf32>
    %430 = vector.extract_strided_slice %23 {offsets = [0, 0, 0], sizes = [1, 1, 512], strides = [1, 1, 1]} : vector<1x8x512xf32> to vector<1x1x512xf32>
    %431 = vector.shape_cast %430 : vector<1x1x512xf32> to vector<1x512xf32>
    %432 = arith.truncf %398 : vector<1x128xf32> to vector<1x128xbf16>
    %cst_74 = arith.constant dense<0.000000e+00> : vector<1x512xf32>
    %433 = tpu.matmul %432, %19, %cst_74 {dimension_numbers = #tpu.dot_dimension_numbers<[1], [0], [0], [1], [0, 0, 1, 1], [], []>} : vector<1x128xbf16>, vector<128x512xbf16>, vector<1x512xf32> -> vector<1x512xf32>
    %434 = arith.addf %431, %433 : vector<1x512xf32>
    %435 = vector.extract_strided_slice %434 {offsets = [0, 0], sizes = [1, 384], strides = [1, 1]} : vector<1x512xf32> to vector<1x384xf32>
    %436 = arith.negf %435 : vector<1x384xf32>
    %437 = math.exp %436 : vector<1x384xf32>
    %cst_75 = arith.constant 1.000000e+00 : f32
    %438 = vector.broadcast %cst_75 : f32 to vector<1x384xf32>
    %439 = arith.addf %438, %437 : vector<1x384xf32>
    %440 = arith.divf %438, %439 : vector<1x384xf32>
    %441 = vector.extract_strided_slice %434 {offsets = [0, 384], sizes = [1, 128], strides = [1, 1]} : vector<1x512xf32> to vector<1x128xf32>
    %442 = math.tanh %441 : vector<1x128xf32>
    %443 = vector.extract_strided_slice %440 {offsets = [0, 128], sizes = [1, 128], strides = [1, 1]} : vector<1x384xf32> to vector<1x128xf32>
    %444 = arith.mulf %443, %399 : vector<1x128xf32>
    %445 = vector.extract_strided_slice %440 {offsets = [0, 0], sizes = [1, 128], strides = [1, 1]} : vector<1x384xf32> to vector<1x128xf32>
    %446 = arith.mulf %445, %442 : vector<1x128xf32>
    %447 = arith.addf %444, %446 : vector<1x128xf32>
    %448 = vector.extract_strided_slice %440 {offsets = [0, 256], sizes = [1, 128], strides = [1, 1]} : vector<1x384xf32> to vector<1x128xf32>
    %449 = math.tanh %447 : vector<1x128xf32>
    %450 = arith.mulf %448, %449 : vector<1x128xf32>
    %451 = arith.cmpi slt, %403, %2 : i32
    %452 = arith.select %451, %450, %398 : vector<1x128xf32>
    %453 = arith.select %451, %447, %399 : vector<1x128xf32>
    %cst_76 = arith.constant 0.000000e+00 : f32
    %454 = vector.broadcast %cst_76 : f32 to vector<1x128xf32>
    %455 = arith.select %451, %450, %454 : vector<1x128xf32>
    %456 = vector.shape_cast %51 : vector<1x128xf32> to vector<1x1x128xf32>
    %457 = vector.shape_cast %105 : vector<1x128xf32> to vector<1x1x128xf32>
    %458 = vector.shape_cast %159 : vector<1x128xf32> to vector<1x1x128xf32>
    %459 = vector.shape_cast %213 : vector<1x128xf32> to vector<1x1x128xf32>
    %460 = vector.shape_cast %267 : vector<1x128xf32> to vector<1x1x128xf32>
    %461 = vector.shape_cast %321 : vector<1x128xf32> to vector<1x1x128xf32>
    %462 = vector.shape_cast %375 : vector<1x128xf32> to vector<1x1x128xf32>
    %463 = vector.shape_cast %429 : vector<1x128xf32> to vector<1x1x128xf32>
    %464 = tpu.concatenate %456, %457, %458, %459, %460, %461, %462, %463 in 1 : vector<1x1x128xf32>, vector<1x1x128xf32>, vector<1x1x128xf32>, vector<1x1x128xf32>, vector<1x1x128xf32>, vector<1x1x128xf32>, vector<1x1x128xf32>, vector<1x1x128xf32> -> vector<1x8x128xf32>
    %c0_77 = arith.constant 0 : index
    %465 = arith.index_cast %14 : i32 to index
    %c0_78 = arith.constant 0 : index
    %466 = vector.load %arg14[%c0_77, %465, %c0_78] : memref<1x8x256xf32, #tpu.memory_space<vmem>>, vector<1x8x128xf32>
    tpu.vector_store %arg14[%c0_77, %465, %c0_78], %464 {strides = array<i32>} : memref<1x8x256xf32, #tpu.memory_space<vmem>>, vector<1x8x128xf32>,
    %467 = vector.shape_cast %455 : vector<1x128xf32> to vector<1x1x128xf32>
    %468 = vector.shape_cast %401 : vector<1x128xf32> to vector<1x1x128xf32>
    %469 = vector.shape_cast %347 : vector<1x128xf32> to vector<1x1x128xf32>
    %470 = vector.shape_cast %293 : vector<1x128xf32> to vector<1x1x128xf32>
    %471 = vector.shape_cast %239 : vector<1x128xf32> to vector<1x1x128xf32>
    %472 = vector.shape_cast %185 : vector<1x128xf32> to vector<1x1x128xf32>
    %473 = vector.shape_cast %131 : vector<1x128xf32> to vector<1x1x128xf32>
    %474 = vector.shape_cast %77 : vector<1x128xf32> to vector<1x1x128xf32>
    %475 = tpu.concatenate %467, %468, %469, %470, %471, %472, %473, %474 in 1 : vector<1x1x128xf32>, vector<1x1x128xf32>, vector<1x1x128xf32>, vector<1x1x128xf32>, vector<1x1x128xf32>, vector<1x1x128xf32>, vector<1x1x128xf32>, vector<1x1x128xf32> -> vector<1x8x128xf32>
    %c0_79 = arith.constant 0 : index
    %476 = arith.index_cast %17 : i32 to index
    %c128 = arith.constant 128 : index
    %477 = vector.load %arg14[%c0_79, %476, %c128] : memref<1x8x256xf32, #tpu.memory_space<vmem>>, vector<1x8x128xf32>
    tpu.vector_store %arg14[%c0_79, %476, %c128], %475 {strides = array<i32>} : memref<1x8x256xf32, #tpu.memory_space<vmem>>, vector<1x8x128xf32>,
    %c1_i32_80 = arith.constant 1 : i32
    %c0_81 = arith.constant 0 : index
    %c0_82 = arith.constant 0 : index
    %c0_83 = arith.constant 0 : index
    %478 = vector.load %arg14[%c0_81, %c0_82, %c0_83] : memref<1x8x256xf32, #tpu.memory_space<vmem>>, vector<1x8x256xf32>
    %479 = vector.shape_cast %478 : vector<1x8x256xf32> to vector<8x256xf32>
    %480 = arith.truncf %479 : vector<8x256xf32> to vector<8x256xbf16>
    %c0_84 = arith.constant 0 : index
    %c0_85 = arith.constant 0 : index
    %481 = vector.load %arg7[%c0_84, %c0_85] : memref<256x128xbf16, #tpu.memory_space<vmem>>, vector<256x128xbf16>
    %cst_86 = arith.constant dense<0.000000e+00> : vector<8x128xf32>
    %482 = tpu.matmul %480, %481, %cst_86 {dimension_numbers = #tpu.dot_dimension_numbers<[1], [0], [0], [1], [0, 0, 1, 1], [], []>} : vector<8x256xbf16>, vector<256x128xbf16>, vector<8x128xf32> -> vector<8x128xf32>
    %c0_87 = arith.constant 0 : index
    %c0_88 = arith.constant 0 : index
    %483 = vector.load %arg8[%c0_87, %c0_88] : memref<1x128xf32, #tpu.memory_space<vmem>>, vector<1x128xf32>
    %484 = vector.broadcast %483 : vector<1x128xf32> to vector<8x128xf32>
    %485 = arith.addf %482, %484 : vector<8x128xf32>
    %cst_89 = arith.constant 0.000000e+00 : f32
    %486 = vector.broadcast %cst_89 : f32 to vector<8x128xf32>
    %487 = arith.maximumf %485, %486 : vector<8x128xf32>
    %488 = arith.truncf %487 : vector<8x128xf32> to vector<8x128xbf16>
    %c0_90 = arith.constant 0 : index
    %c0_91 = arith.constant 0 : index
    %489 = vector.load %arg9[%c0_90, %c0_91] : memref<128x128xbf16, #tpu.memory_space<vmem>>, vector<128x128xbf16>
    %cst_92 = arith.constant dense<0.000000e+00> : vector<8x128xf32>
    %490 = tpu.matmul %488, %489, %cst_92 {dimension_numbers = #tpu.dot_dimension_numbers<[1], [0], [0], [1], [0, 0, 1, 1], [], []>} : vector<8x128xbf16>, vector<128x128xbf16>, vector<8x128xf32> -> vector<8x128xf32>
    %c0_93 = arith.constant 0 : index
    %c0_94 = arith.constant 0 : index
    %491 = vector.load %arg10[%c0_93, %c0_94] : memref<1x128xf32, #tpu.memory_space<vmem>>, vector<1x128xf32>
    %492 = vector.broadcast %491 : vector<1x128xf32> to vector<8x128xf32>
    %493 = arith.addf %490, %492 : vector<8x128xf32>
    %494 = arith.mulf %493, %493 : vector<8x128xf32>
    %cst_95 = arith.constant dense<0.000000e+00> : vector<8xf32>
    %495 = vector.multi_reduction <add>, %494, %cst_95 [1] : vector<8x128xf32> to vector<8xf32>
    %496 = vector.shape_cast %495 : vector<8xf32> to vector<8x1xf32>
    %cst_96 = arith.constant 1.000000e-24 : f32
    %497 = vector.broadcast %cst_96 : f32 to vector<8x1xf32>
    %498 = arith.maximumf %496, %497 : vector<8x1xf32>
    %499 = math.rsqrt %498 : vector<8x1xf32>
    %500 = vector.broadcast %499 : vector<8x1xf32> to vector<8x128xf32>
    %501 = arith.mulf %493, %500 : vector<8x128xf32>
    %502 = vector.shape_cast %501 : vector<8x128xf32> to vector<1x8x128xf32>
    %c0_97 = arith.constant 0 : index
    %c0_98 = arith.constant 0 : index
    %c0_99 = arith.constant 0 : index
    %503 = vector.load %arg11[%c0_97, %c0_98, %c0_99] : memref<1x8x128xf32, #tpu.memory_space<vmem>>, vector<1x8x128xf32>
    tpu.vector_store %arg11[%c0_97, %c0_98, %c0_99], %502 {strides = array<i32>} : memref<1x8x128xf32, #tpu.memory_space<vmem>>, vector<1x8x128xf32>,
    %cst_100 = arith.constant 0.000000e+00 : f32
    %504 = vector.broadcast %cst_100 : f32 to vector<120x128xf32>
    %c8 = arith.constant 8 : index
    %c0_101 = arith.constant 0 : index
    %505 = vector.load %arg15[%c8, %c0_101] : memref<128x128xf32, #tpu.memory_space<vmem>>, vector<120x128xf32>
    tpu.vector_store %arg15[%c8, %c0_101], %504 {strides = array<i32>} : memref<128x128xf32, #tpu.memory_space<vmem>>, vector<120x128xf32>,
    %c0_102 = arith.constant 0 : index
    %c0_103 = arith.constant 0 : index
    %506 = vector.load %arg15[%c0_102, %c0_103] : memref<128x128xf32, #tpu.memory_space<vmem>>, vector<8x128xf32>
    tpu.vector_store %arg15[%c0_102, %c0_103], %501 {strides = array<i32>} : memref<128x128xf32, #tpu.memory_space<vmem>>, vector<8x128xf32>,
    %c0_104 = arith.constant 0 : index
    %c0_105 = arith.constant 0 : index
    %507 = vector.load %arg15[%c0_104, %c0_105] : memref<128x128xf32, #tpu.memory_space<vmem>>, vector<128x128xf32>
    %cst_106 = arith.constant dense<0.000000e+00> : vector<8x128xf32>
    %508 = tpu.matmul %501, %507, %cst_106 {dimension_numbers = #tpu.dot_dimension_numbers<[1], [1], [0], [0], [0, 0, 1, 0], [], []>} : vector<8x128xf32>, vector<128x128xf32>, vector<8x128xf32> -> vector<8x128xf32>
    %cst_107 = arith.constant 1.000000e+00 : f32
    %509 = vector.broadcast %cst_107 : f32 to vector<8x128xf32>
    %510 = arith.addf %508, %509 : vector<8x128xf32>
    %cst_108 = arith.constant 5.000000e-01 : f32
    %511 = vector.broadcast %cst_108 : f32 to vector<8x128xf32>
    %512 = arith.mulf %510, %511 : vector<8x128xf32>
    %c0_109 = arith.constant 0 : index
    %c0_110 = arith.constant 0 : index
    %c0_111 = arith.constant 0 : index
    %513 = vector.load %arg12[%c0_109, %c0_110, %c0_111] : memref<1x8x128xf32, #tpu.memory_space<vmem>>, vector<1x8x128xf32>
    %514 = vector.shape_cast %513 : vector<1x8x128xf32> to vector<8x128xf32>
    %515 = vector.shape_cast %512 : vector<8x128xf32> to vector<1x8x128xf32>
    tpu.vector_store %arg12[%c0_109, %c0_110, %c0_111], %515 {strides = array<i32>} : memref<1x8x128xf32, #tpu.memory_space<vmem>>, vector<1x8x128xf32>,
    return
  }
  func.func @transform_0(%arg0: i32, %arg1: memref<2xi32, #tpu.memory_space<smem>>) -> (i32, i32, i32) {
    %c0_i32 = arith.constant 0 : i32
    %c0_i32_0 = arith.constant 0 : i32
    %c0_i32_1 = arith.constant 0 : i32
    return %arg0, %c0_i32, %c0_i32_0 : i32, i32, i32
  }
  func.func @transform_1(%arg0: i32, %arg1: memref<2xi32, #tpu.memory_space<smem>>) -> (i32, i32) {
    %c0_i32 = arith.constant 0 : i32
    %c0_i32_0 = arith.constant 0 : i32
    %c0_i32_1 = arith.constant 0 : i32
    return %c0_i32, %c0_i32_0 : i32, i32
  }
  func.func @transform_2(%arg0: i32, %arg1: memref<2xi32, #tpu.memory_space<smem>>) -> (i32, i32) {
    %c0_i32 = arith.constant 0 : i32
    %c0_i32_0 = arith.constant 0 : i32
    %c0_i32_1 = arith.constant 0 : i32
    return %c0_i32, %c0_i32_0 : i32, i32
  }
  func.func @transform_3(%arg0: i32, %arg1: memref<2xi32, #tpu.memory_space<smem>>) -> (i32, i32) {
    %c0_i32 = arith.constant 0 : i32
    %c0_i32_0 = arith.constant 0 : i32
    %c0_i32_1 = arith.constant 0 : i32
    return %c0_i32, %c0_i32_0 : i32, i32
  }
  func.func @transform_4(%arg0: i32, %arg1: memref<2xi32, #tpu.memory_space<smem>>) -> (i32, i32) {
    %c0_i32 = arith.constant 0 : i32
    %c0_i32_0 = arith.constant 0 : i32
    %c0_i32_1 = arith.constant 0 : i32
    return %c0_i32, %c0_i32_0 : i32, i32
  }
  func.func @transform_5(%arg0: i32, %arg1: memref<2xi32, #tpu.memory_space<smem>>) -> (i32, i32) {
    %c0_i32 = arith.constant 0 : i32
    %c0_i32_0 = arith.constant 0 : i32
    %c0_i32_1 = arith.constant 0 : i32
    return %c0_i32, %c0_i32_0 : i32, i32
  }
  func.func @transform_6(%arg0: i32, %arg1: memref<2xi32, #tpu.memory_space<smem>>) -> (i32, i32) {
    %c0_i32 = arith.constant 0 : i32
    %c0_i32_0 = arith.constant 0 : i32
    %c0_i32_1 = arith.constant 0 : i32
    return %c0_i32, %c0_i32_0 : i32, i32
  }
  func.func @transform_7(%arg0: i32, %arg1: memref<2xi32, #tpu.memory_space<smem>>) -> (i32, i32) {
    %c0_i32 = arith.constant 0 : i32
    %c0_i32_0 = arith.constant 0 : i32
    %c0_i32_1 = arith.constant 0 : i32
    return %c0_i32, %c0_i32_0 : i32, i32
  }
  func.func @transform_8(%arg0: i32, %arg1: memref<2xi32, #tpu.memory_space<smem>>) -> (i32, i32) {
    %c0_i32 = arith.constant 0 : i32
    %c0_i32_0 = arith.constant 0 : i32
    %c0_i32_1 = arith.constant 0 : i32
    return %c0_i32, %c0_i32_0 : i32, i32
  }
  func.func @transform_9(%arg0: i32, %arg1: memref<2xi32, #tpu.memory_space<smem>>) -> (i32, i32, i32) {
    %c0_i32 = arith.constant 0 : i32
    %c0_i32_0 = arith.constant 0 : i32
    %c0_i32_1 = arith.constant 0 : i32
    return %arg0, %c0_i32, %c0_i32_0 : i32, i32, i32
  }
  func.func @transform_10(%arg0: i32, %arg1: memref<2xi32, #tpu.memory_space<smem>>) -> (i32, i32, i32) {
    %c0_i32 = arith.constant 0 : i32
    %c0_i32_0 = arith.constant 0 : i32
    %c0_i32_1 = arith.constant 0 : i32
    return %arg0, %c0_i32, %c0_i32_0 : i32, i32, i32
  }
}

</mosaic_0001>

<llo_original>
// kernel: cclusterer_forward.1
$region0: #{cclusterer_forward.1}
  #allocation0 [shape = 'u32[]', space=smem, size = 0x4, offset = 0x4, fixed_abs, tag = 'smem constant byte address 0x4 - core index']
  #allocation1 [shape = 'u32[144,128]{1,0:T(1,128)}', space=vmem, size = 0x12000, scoped, tag = 'internal scratch']
  #allocation2 [shape = 'f32[1,8,1024]{2,1,0:T(8,128)}', space=vmem, size = 0x8000, scoped, tag = 'scratch operand']
  #allocation3 [shape = 'f32[1,8,256]{2,1,0:T(8,128)}', space=vmem, size = 0x2000, scoped, tag = 'scratch operand']
  #allocation4 [shape = 'f32[128,128]{1,0:T(8,128)}', space=vmem, size = 0x10000, scoped, tag = 'scratch operand']
  #allocation5 [shape = 's32[1]{0}', space=sflag, size = 0x4, scoped, tag = 'scoped memory for cclusterer_forward.1']
  #allocation6 [shape = 'u8[512]{0}', space=smem, size = 0x200, scoped, tag = 'prefetched SMEM operand 0']
  %s0 = inlined_call_operand.vmem [shape: s32[2], index: 0, kind: input, shape index: {}]
  %s1 = inlined_call_operand.vmem [shape: bf16[2,8,128], index: 1, kind: input, shape index: {}]
  %s2 = inlined_call_operand.vmem [shape: bf16[128,1024], index: 2, kind: input, shape index: {}]
  %s3 = inlined_call_operand.vmem [shape: f32[1,1024], index: 3, kind: input, shape index: {}]
  %s4 = inlined_call_operand.vmem [shape: bf16[128,512], index: 4, kind: input, shape index: {}]
  %s5 = inlined_call_operand.vmem [shape: bf16[128,512], index: 5, kind: input, shape index: {}]
  %s6 = inlined_call_operand.vmem [shape: bf16[256,128], index: 6, kind: input, shape index: {}]
  %s7 = inlined_call_operand.vmem [shape: f32[1,128], index: 7, kind: input, shape index: {}]
  %s8 = inlined_call_operand.vmem [shape: bf16[128,128], index: 8, kind: input, shape index: {}]
  %s9 = inlined_call_operand.vmem [shape: f32[1,128], index: 9, kind: input, shape index: {}]
  %s10 = inlined_call_operand.hbm [shape: f32[2,8,128], index: 10, kind: output, shape index: {0}]
  %s11 = inlined_call_operand.hbm [shape: f32[2,8,128], index: 11, kind: output, shape index: {1}]
  %12 = xla_tuple %s10, %s11
  %s13 = sld [smem:[#allocation0]]
  $region77: #{cclusterer_forward.1} parent=0
    _
  %s15 = ssub.s32 1, %s13
  %s16 = scalar_select 0, %s15, %s13
  %s17 = sshll.u32 %s0, 4
  %s18 = int_to_ptr.vmem [resolvable:$true] %s17
  %20 = dma.vmem_to_smem %s18, 16, [#allocation6], [#allocation5]
  %21 = dma.done [#allocation5], 16
  %22 = sfence
  $region1: #{cclusterer_forward.1} parent=0
    #allocation7 [shape = 'u8[8192]{0}', space=vmem, size = 0x2000, scoped, tag = 'output window, operand 0']
    #allocation8 [shape = 's32[2]{0}', space=sflag, size = 0x8, scoped, tag = 'scoped memory for cclusterer_forward.1']
    #allocation9 [shape = 'u8[8192]{0}', space=vmem, size = 0x2000, scoped, tag = 'output window, operand 1']
    #allocation10 [shape = 's32[2]{0}', space=sflag, size = 0x8, scoped, tag = 'scoped memory for cclusterer_forward.1']
    %23 = vsyncpa [#allocation8], 0
    %s24 = scalar_lea.sflag [#allocation8], 1
    %25 = vsyncpa %s24, 0
    %26 = vsyncpa [#allocation10], 0
    %s27 = scalar_lea.sflag [#allocation10], 1
    %28 = vsyncpa %s27, 0
    loop: start=0, step=1, limit=4
    $region2: #{cclusterer_forward.1} parent=1 // loop_pre_header
      _
    $region3: #{cclusterer_forward.1} parent=1 // loop_header
      %s30 = sphi 0, %s34
      %p31 = scmp.ge.s32.totalorder %s30, 4
      %s40 = sphi 0, %s42
      %s43 = sphi 0, %s40
      %s44 = sphi 0, %s43
      %s60 = sphi 0, %s44
      %s64 = sphi 0, %s64
      %s66 = sphi 0, %s64
      %s67 = sphi 0, %s66
      %s81 = sphi 0, %s67
      %s85 = sphi 0, %s85
      %s87 = sphi 0, %s85
      %s88 = sphi 0, %s87
      %s102 = sphi 0, %s88
      %s106 = sphi 0, %s106
      %s108 = sphi 0, %s106
      %s109 = sphi 0, %s108
      %s123 = sphi 0, %s109
      %s127 = sphi 0, %s127
      %s129 = sphi 0, %s127
      %s130 = sphi 0, %s129
      %s144 = sphi 0, %s130
      %s148 = sphi 0, %s148
      %s150 = sphi 0, %s148
      %s151 = sphi 0, %s150
      %s165 = sphi 0, %s151
      %s169 = sphi 0, %s169
      %s171 = sphi 0, %s169
      %s172 = sphi 0, %s171
      %s186 = sphi 0, %s172
      %s190 = sphi 0, %s190
      %s192 = sphi 0, %s190
      %s193 = sphi 0, %s192
      %s207 = sphi 0, %s193
      %s211 = sphi 0, %s211
      %s213 = sphi 0, %s211
      %s214 = sphi 0, %s213
      %s228 = sphi 0, %s214
      %s234 = sphi 0, %s236
      %s237 = sphi 0, %s234
      %s238 = sphi 0, %s237
      %s254 = sphi 0, %s238
      %s260 = sphi 0, %s262
      %s263 = sphi 0, %s260
      %s264 = sphi 0, %s263
      %s280 = sphi 0, %s264
    $region4: #{cclusterer_forward.1} parent=1 // loop_header_branch
      %33 = sbr.rel (%p31) target = $region8
    $region5: #{cclusterer_forward.1} parent=1 // loop_body
      %s35 = ssub.s32 %s30, 1
      %s36 = ssub.s32 %s30, 2
      %s37 = sadd.s32 %s30, 1
      %s38 = ssub.s32 %s30, %s37
      %p39 = scmp.eq.s32.totalorder %s38, 0
      %s41 = sadd.s32 %s40, 1
      %s42 = scalar_select %p39, %s40, %s41
      %p45 = pneg %p39
      %p46 = scmp.eq.s32.totalorder %s30, 1
      %p47 = por %p45, %p46
      %p48 = scmp.ne.s32.totalorder %s40, %s43
      %p49 = scmp.eq.s32.totalorder %s30, 0
      %p50 = por %p48, %p49
      %p51 = scmp.ne.s32.totalorder %s40, %s43
      %p52 = scmp.eq.s32.totalorder %s35, 1
      %p53 = por %p51, %p52
      %p54 = scmp.ne.s32.totalorder %s43, %s44
      %p55 = scmp.eq.s32.totalorder %s35, 0
      %p56 = por %p54, %p55
      %p57 = scmp.ne.s32.totalorder %s43, %s44
      %p58 = scmp.eq.s32.totalorder %s36, 1
      %p59 = por %p57, %p58
      %p61 = scmp.ne.s32.totalorder %s44, %s60
      %p62 = scmp.eq.s32.totalorder %s36, 0
      %p63 = por %p61, %p62
      %s65 = sadd.s32 %s64, 1
      %p68 = scmp.eq.s32.totalorder %s30, 1
      %p69 = scmp.ne.s32.totalorder %s64, %s66
      %p70 = scmp.eq.s32.totalorder %s30, 0
      %p71 = por %p69, %p70
      %p72 = scmp.ne.s32.totalorder %s64, %s66
      %p73 = scmp.eq.s32.totalorder %s35, 1
      %p74 = por %p72, %p73
      %p75 = scmp.ne.s32.totalorder %s66, %s67
      %p76 = scmp.eq.s32.totalorder %s35, 0
      %p77 = por %p75, %p76
      %p78 = scmp.ne.s32.totalorder %s66, %s67
      %p79 = scmp.eq.s32.totalorder %s36, 1
      %p80 = por %p78, %p79
      %p82 = scmp.ne.s32.totalorder %s67, %s81
      %p83 = scmp.eq.s32.totalorder %s36, 0
      %p84 = por %p82, %p83
      %s86 = sadd.s32 %s85, 1
      %p89 = scmp.eq.s32.totalorder %s30, 1
      %p90 = scmp.ne.s32.totalorder %s85, %s87
      %p91 = scmp.eq.s32.totalorder %s30, 0
      %p92 = por %p90, %p91
      %p93 = scmp.ne.s32.totalorder %s85, %s87
      %p94 = scmp.eq.s32.totalorder %s35, 1
      %p95 = por %p93, %p94
      %p96 = scmp.ne.s32.totalorder %s87, %s88
      %p97 = scmp.eq.s32.totalorder %s35, 0
      %p98 = por %p96, %p97
      %p99 = scmp.ne.s32.totalorder %s87, %s88
      %p100 = scmp.eq.s32.totalorder %s36, 1
      %p101 = por %p99, %p100
      %p103 = scmp.ne.s32.totalorder %s88, %s102
      %p104 = scmp.eq.s32.totalorder %s36, 0
      %p105 = por %p103, %p104
      %s107 = sadd.s32 %s106, 1
      %p110 = scmp.eq.s32.totalorder %s30, 1
      %p111 = scmp.ne.s32.totalorder %s106, %s108
      %p112 = scmp.eq.s32.totalorder %s30, 0
      %p113 = por %p111, %p112
      %p114 = scmp.ne.s32.totalorder %s106, %s108
      %p115 = scmp.eq.s32.totalorder %s35, 1
      %p116 = por %p114, %p115
      %p117 = scmp.ne.s32.totalorder %s108, %s109
      %p118 = scmp.eq.s32.totalorder %s35, 0
      %p119 = por %p117, %p118
      %p120 = scmp.ne.s32.totalorder %s108, %s109
      %p121 = scmp.eq.s32.totalorder %s36, 1
      %p122 = por %p120, %p121
      %p124 = scmp.ne.s32.totalorder %s109, %s123
      %p125 = scmp.eq.s32.totalorder %s36, 0
      %p126 = por %p124, %p125
      %s128 = sadd.s32 %s127, 1
      %p131 = scmp.eq.s32.totalorder %s30, 1
      %p132 = scmp.ne.s32.totalorder %s127, %s129
      %p133 = scmp.eq.s32.totalorder %s30, 0
      %p134 = por %p132, %p133
      %p135 = scmp.ne.s32.totalorder %s127, %s129
      %p136 = scmp.eq.s32.totalorder %s35, 1
      %p137 = por %p135, %p136
      %p138 = scmp.ne.s32.totalorder %s129, %s130
      %p139 = scmp.eq.s32.totalorder %s35, 0
      %p140 = por %p138, %p139
      %p141 = scmp.ne.s32.totalorder %s129, %s130
      %p142 = scmp.eq.s32.totalorder %s36, 1
      %p143 = por %p141, %p142
      %p145 = scmp.ne.s32.totalorder %s130, %s144
      %p146 = scmp.eq.s32.totalorder %s36, 0
      %p147 = por %p145, %p146
      %s149 = sadd.s32 %s148, 1
      %p152 = scmp.eq.s32.totalorder %s30, 1
      %p153 = scmp.ne.s32.totalorder %s148, %s150
      %p154 = scmp.eq.s32.totalorder %s30, 0
      %p155 = por %p153, %p154
      %p156 = scmp.ne.s32.totalorder %s148, %s150
      %p157 = scmp.eq.s32.totalorder %s35, 1
      %p158 = por %p156, %p157
      %p159 = scmp.ne.s32.totalorder %s150, %s151
      %p160 = scmp.eq.s32.totalorder %s35, 0
      %p161 = por %p159, %p160
      %p162 = scmp.ne.s32.totalorder %s150, %s151
      %p163 = scmp.eq.s32.totalorder %s36, 1
      %p164 = por %p162, %p163
      %p166 = scmp.ne.s32.totalorder %s151, %s165
      %p167 = scmp.eq.s32.totalorder %s36, 0
      %p168 = por %p166, %p167
      %s170 = sadd.s32 %s169, 1
      %p173 = scmp.eq.s32.totalorder %s30, 1
      %p174 = scmp.ne.s32.totalorder %s169, %s171
      %p175 = scmp.eq.s32.totalorder %s30, 0
      %p176 = por %p174, %p175
      %p177 = scmp.ne.s32.totalorder %s169, %s171
      %p178 = scmp.eq.s32.totalorder %s35, 1
      %p179 = por %p177, %p178
      %p180 = scmp.ne.s32.totalorder %s171, %s172
      %p181 = scmp.eq.s32.totalorder %s35, 0
      %p182 = por %p180, %p181
      %p183 = scmp.ne.s32.totalorder %s171, %s172
      %p184 = scmp.eq.s32.totalorder %s36, 1
      %p185 = por %p183, %p184
      %p187 = scmp.ne.s32.totalorder %s172, %s186
      %p188 = scmp.eq.s32.totalorder %s36, 0
      %p189 = por %p187, %p188
      %s191 = sadd.s32 %s190, 1
      %p194 = scmp.eq.s32.totalorder %s30, 1
      %p195 = scmp.ne.s32.totalorder %s190, %s192
      %p196 = scmp.eq.s32.totalorder %s30, 0
      %p197 = por %p195, %p196
      %p198 = scmp.ne.s32.totalorder %s190, %s192
      %p199 = scmp.eq.s32.totalorder %s35, 1
      %p200 = por %p198, %p199
      %p201 = scmp.ne.s32.totalorder %s192, %s193
      %p202 = scmp.eq.s32.totalorder %s35, 0
      %p203 = por %p201, %p202
      %p204 = scmp.ne.s32.totalorder %s192, %s193
      %p205 = scmp.eq.s32.totalorder %s36, 1
      %p206 = por %p204, %p205
      %p208 = scmp.ne.s32.totalorder %s193, %s207
      %p209 = scmp.eq.s32.totalorder %s36, 0
      %p210 = por %p208, %p209
      %s212 = sadd.s32 %s211, 1
      %p215 = scmp.eq.s32.totalorder %s30, 1
      %p216 = scmp.ne.s32.totalorder %s211, %s213
      %p217 = scmp.eq.s32.totalorder %s30, 0
      %p218 = por %p216, %p217
      %p219 = scmp.ne.s32.totalorder %s211, %s213
      %p220 = scmp.eq.s32.totalorder %s35, 1
      %p221 = por %p219, %p220
      %p222 = scmp.ne.s32.totalorder %s213, %s214
      %p223 = scmp.eq.s32.totalorder %s35, 0
      %p224 = por %p222, %p223
      %p225 = scmp.ne.s32.totalorder %s213, %s214
      %p226 = scmp.eq.s32.totalorder %s36, 1
      %p227 = por %p225, %p226
      %p229 = scmp.ne.s32.totalorder %s214, %s228
      %p230 = scmp.eq.s32.totalorder %s36, 0
      %p231 = por %p229, %p230
      %s232 = ssub.s32 %s30, %s37
      %p233 = scmp.eq.s32.totalorder %s232, 0
      %s235 = sadd.s32 %s234, 1
      %s236 = scalar_select %p233, %s234, %s235
      %p239 = pneg %p233
      %p240 = scmp.eq.s32.totalorder %s30, 1
      %p241 = por %p239, %p240
      %p242 = scmp.ne.s32.totalorder %s234, %s237
      %p243 = scmp.eq.s32.totalorder %s30, 0
      %p244 = por %p242, %p243
      %p245 = scmp.ne.s32.totalorder %s234, %s237
      %p246 = scmp.eq.s32.totalorder %s35, 1
      %p247 = por %p245, %p246
      %p248 = scmp.ne.s32.totalorder %s237, %s238
      %p249 = scmp.eq.s32.totalorder %s35, 0
      %p250 = por %p248, %p249
      %p251 = scmp.ne.s32.totalorder %s237, %s238
      %p252 = scmp.eq.s32.totalorder %s36, 1
      %p253 = por %p251, %p252
      %p255 = scmp.ne.s32.totalorder %s238, %s254
      %p256 = scmp.eq.s32.totalorder %s36, 0
      %p257 = por %p255, %p256
      %s258 = ssub.s32 %s30, %s37
      %p259 = scmp.eq.s32.totalorder %s258, 0
      %s261 = sadd.s32 %s260, 1
      %s262 = scalar_select %p259, %s260, %s261
      %p265 = pneg %p259
      %p266 = scmp.eq.s32.totalorder %s30, 1
      %p267 = por %p265, %p266
      %p268 = scmp.ne.s32.totalorder %s260, %s263
      %p269 = scmp.eq.s32.totalorder %s30, 0
      %p270 = por %p268, %p269
      %p271 = scmp.ne.s32.totalorder %s260, %s263
      %p272 = scmp.eq.s32.totalorder %s35, 1
      %p273 = por %p271, %p272
      %p274 = scmp.ne.s32.totalorder %s263, %s264
      %p275 = scmp.eq.s32.totalorder %s35, 0
      %p276 = por %p274, %p275
      %p277 = scmp.ne.s32.totalorder %s263, %s264
      %p278 = scmp.eq.s32.totalorder %s36, 1
      %p279 = por %p277, %p278
      %p281 = scmp.ne.s32.totalorder %s264, %s280
      %p282 = scmp.eq.s32.totalorder %s36, 0
      %p283 = por %p281, %p282
      %p284 = scmp.le.s32.totalorder 1, %s30
      %p285 = scmp.lt.s32.totalorder %s30, 3
      %p286 = pnand %p284, %p285
      %p287 = pneg %p286
      // Predicated region
      $region9: #{cclusterer_forward.1} parent=5 // pred_check
        _
      $region10: #{cclusterer_forward.1} parent=5 // pred_check_branch
        %289 = sbr.rel (%p286) target = $region12
      $region11: #{cclusterer_forward.1} parent=5 // pred_region
        %s290 = ssub.s32 %s30, 1
        // Predicated region
        $region13: #{cclusterer_forward.1} parent=11 // pred_check
          %p291 = pneg %p77
        $region14: #{cclusterer_forward.1} parent=11 // pred_check_branch
          %293 = sbr.rel (%p291) target = $region16
        $region15: #{cclusterer_forward.1} parent=11 // pred_region
          _
        $region16: #{cclusterer_forward.1} parent=11 // pred_fallthru
          _
        // Predicated region
        $region17: #{cclusterer_forward.1} parent=11 // pred_check
          %p294 = pneg %p98
        $region18: #{cclusterer_forward.1} parent=11 // pred_check_branch
          %296 = sbr.rel (%p294) target = $region20
        $region19: #{cclusterer_forward.1} parent=11 // pred_region
          _
        $region20: #{cclusterer_forward.1} parent=11 // pred_fallthru
          _
        // Predicated region
        $region21: #{cclusterer_forward.1} parent=11 // pred_check
          %p297 = pneg %p119
        $region22: #{cclusterer_forward.1} parent=11 // pred_check_branch
          %299 = sbr.rel (%p297) target = $region24
        $region23: #{cclusterer_forward.1} parent=11 // pred_region
          _
        $region24: #{cclusterer_forward.1} parent=11 // pred_fallthru
          _
        // Predicated region
        $region25: #{cclusterer_forward.1} parent=11 // pred_check
          %p300 = pneg %p140
        $region26: #{cclusterer_forward.1} parent=11 // pred_check_branch
          %302 = sbr.rel (%p300) target = $region28
        $region27: #{cclusterer_forward.1} parent=11 // pred_region
          _
        $region28: #{cclusterer_forward.1} parent=11 // pred_fallthru
          _
        // Predicated region
        $region29: #{cclusterer_forward.1} parent=11 // pred_check
          %p303 = pneg %p161
        $region30: #{cclusterer_forward.1} parent=11 // pred_check_branch
          %305 = sbr.rel (%p303) target = $region32
        $region31: #{cclusterer_forward.1} parent=11 // pred_region
          _
        $region32: #{cclusterer_forward.1} parent=11 // pred_fallthru
          _
        // Predicated region
        $region33: #{cclusterer_forward.1} parent=11 // pred_check
          %p306 = pneg %p182
        $region34: #{cclusterer_forward.1} parent=11 // pred_check_branch
          %308 = sbr.rel (%p306) target = $region36
        $region35: #{cclusterer_forward.1} parent=11 // pred_region
          _
        $region36: #{cclusterer_forward.1} parent=11 // pred_fallthru
          _
        // Predicated region
        $region37: #{cclusterer_forward.1} parent=11 // pred_check
          %p309 = pneg %p203
        $region38: #{cclusterer_forward.1} parent=11 // pred_check_branch
          %311 = sbr.rel (%p309) target = $region40
        $region39: #{cclusterer_forward.1} parent=11 // pred_region
          _
        $region40: #{cclusterer_forward.1} parent=11 // pred_fallthru
          _
        // Predicated region
        $region41: #{cclusterer_forward.1} parent=11 // pred_check
          %p312 = pneg %p224
        $region42: #{cclusterer_forward.1} parent=11 // pred_check_branch
          %314 = sbr.rel (%p312) target = $region44
        $region43: #{cclusterer_forward.1} parent=11 // pred_region
          _
        $region44: #{cclusterer_forward.1} parent=11 // pred_fallthru
          _
      $region12: #{cclusterer_forward.1} parent=5 // pred_fallthru
        _
      %p315 = scmp.lt.s32.totalorder %s30, 2
      // Predicated region
      $region45: #{cclusterer_forward.1} parent=5 // pred_check
        %p316 = pneg %p315
      $region46: #{cclusterer_forward.1} parent=5 // pred_check_branch
        %318 = sbr.rel (%p316) target = $region48
      $region47: #{cclusterer_forward.1} parent=5 // pred_region
        // Predicated region
        $region49: #{cclusterer_forward.1} parent=47 // pred_check
          %p319 = pneg %p50
        $region50: #{cclusterer_forward.1} parent=47 // pred_check_branch
          %321 = sbr.rel (%p319) target = $region52
        $region51: #{cclusterer_forward.1} parent=47 // pred_region
          %p322 = scmp.lt.s32.totalorder %s30, 1
          %s323 = scalar_select %p322, %s30, 1
          %s324 = smul.addr %s323, 4
          %s325 = scalar_lea.vmem %s1, %s324
        $region52: #{cclusterer_forward.1} parent=47 // pred_fallthru
          _
      $region48: #{cclusterer_forward.1} parent=5 // pred_fallthru
        _
      %p326 = scmp.le.s32.totalorder 1, %s30
      %p327 = scmp.lt.s32.totalorder %s30, 3
      %p328 = pnand %p326, %p327
      %p329 = pneg %p328
      // Predicated region
      $region53: #{cclusterer_forward.1} parent=5 // pred_check
        _
      $region54: #{cclusterer_forward.1} parent=5 // pred_check_branch
        %331 = sbr.rel (%p328) target = $region56
      $region55: #{cclusterer_forward.1} parent=5 // pred_region
        %s332 = ssub.s32 %s30, 1
        %p333 = scmp.lt.s32.totalorder %s35, 1
        %s334 = scalar_select %p333, %s35, 1
        %s335 = smul.addr %s334, 4
        %s336 = scalar_lea.vmem %s1, %s335
        %p337 = pneg %p56
        %p338 = pneg %p53
        %p339 = pneg %p77
        %p340 = pneg %p74
        %p341 = pneg %p98
        %p342 = pneg %p95
        %p343 = pneg %p119
        %p344 = pneg %p116
        %p345 = pneg %p140
        %p346 = pneg %p137
        %p347 = pneg %p161
        %p348 = pneg %p158
        %p349 = pneg %p182
        %p350 = pneg %p179
        %p351 = pneg %p203
        %p352 = pneg %p200
        %p353 = pneg %p224
        %p354 = pneg %p221
        %p355 = pneg %p250
        %p356 = pneg %p247
        %s357 = sand.u32 %s237, 1
        %s358 = scalar_lea.sflag [#allocation8], %s357
        %s359 = sand.u32 %s237, 1
        %s360 = smul.addr %s359, 8
        %s361 = scalar_lea.vmem [#allocation7], %s360
        %p362 = pneg %p276
        %p363 = pneg %p273
        %s364 = sand.u32 %s263, 1
        %s365 = scalar_lea.sflag [#allocation10], %s364
        %s366 = sand.u32 %s263, 1
        %s367 = smul.addr %s366, 8
        %s368 = scalar_lea.vmem [#allocation9], %s367
        %p369 = scmp.lt.s32.totalorder %s35, 1
        %s370 = scalar_select %p369, %s35, 1
        %s371 = smul.addr %s370, 4
        %s372 = scalar_lea.vmem %s1, %s371
        %s374 = sld [smem:[#allocation6 + %s35]]
        %v375 = vld [vmem:[%s372] sm:$0xf]
        %v376 = vld [vmem:[%s2] sm:$0xff]
        %v377 = vld [vmem:[%s2 + $0x8] sm:$0xff]
        %v378 = vld [vmem:[%s2 + $0x10] sm:$0xff]
        %v379 = vld [vmem:[%s2 + $0x18] sm:$0xff]
        %v380 = vld [vmem:[%s2 + $0x20] sm:$0xff]
        %v381 = vld [vmem:[%s2 + $0x28] sm:$0xff]
        %v382 = vld [vmem:[%s2 + $0x30] sm:$0xff]
        %v383 = vld [vmem:[%s2 + $0x38] sm:$0xff]
        %v384 = vld [vmem:[%s2 + $0x40] sm:$0xff]
        %v385 = vld [vmem:[%s2 + $0x48] sm:$0xff]
        %v386 = vld [vmem:[%s2 + $0x50] sm:$0xff]
        %v387 = vld [vmem:[%s2 + $0x58] sm:$0xff]
        %v388 = vld [vmem:[%s2 + $0x60] sm:$0xff]
        %v389 = vld [vmem:[%s2 + $0x68] sm:$0xff]
        %v390 = vld [vmem:[%s2 + $0x70] sm:$0xff]
        %v391 = vld [vmem:[%s2 + $0x78] sm:$0xff]
        %v392 = vld [vmem:[%s2 + $0x80] sm:$0xff]
        %v393 = vld [vmem:[%s2 + $0x88] sm:$0xff]
        %v394 = vld [vmem:[%s2 + $0x90] sm:$0xff]
        %v395 = vld [vmem:[%s2 + $0x98] sm:$0xff]
        %v396 = vld [vmem:[%s2 + $0xa0] sm:$0xff]
        %v397 = vld [vmem:[%s2 + $0xa8] sm:$0xff]
        %v398 = vld [vmem:[%s2 + $0xb0] sm:$0xff]
        %v399 = vld [vmem:[%s2 + $0xb8] sm:$0xff]
        %v400 = vld [vmem:[%s2 + $0xc0] sm:$0xff]
        %v401 = vld [vmem:[%s2 + $0xc8] sm:$0xff]
        %v402 = vld [vmem:[%s2 + $0xd0] sm:$0xff]
        %v403 = vld [vmem:[%s2 + $0xd8] sm:$0xff]
        %v404 = vld [vmem:[%s2 + $0xe0] sm:$0xff]
        %v405 = vld [vmem:[%s2 + $0xe8] sm:$0xff]
        %v406 = vld [vmem:[%s2 + $0xf0] sm:$0xff]
        %v407 = vld [vmem:[%s2 + $0xf8] sm:$0xff]
        %v408 = vld [vmem:[%s2 + $0x100] sm:$0xff]
        %v409 = vld [vmem:[%s2 + $0x108] sm:$0xff]
        %v410 = vld [vmem:[%s2 + $0x110] sm:$0xff]
        %v411 = vld [vmem:[%s2 + $0x118] sm:$0xff]
        %v412 = vld [vmem:[%s2 + $0x120] sm:$0xff]
        %v413 = vld [vmem:[%s2 + $0x128] sm:$0xff]
        %v414 = vld [vmem:[%s2 + $0x130] sm:$0xff]
        %v415 = vld [vmem:[%s2 + $0x138] sm:$0xff]
        %v416 = vld [vmem:[%s2 + $0x140] sm:$0xff]
        %v417 = vld [vmem:[%s2 + $0x148] sm:$0xff]
        %v418 = vld [vmem:[%s2 + $0x150] sm:$0xff]
        %v419 = vld [vmem:[%s2 + $0x158] sm:$0xff]
        %v420 = vld [vmem:[%s2 + $0x160] sm:$0xff]
        %v421 = vld [vmem:[%s2 + $0x168] sm:$0xff]
        %v422 = vld [vmem:[%s2 + $0x170] sm:$0xff]
        %v423 = vld [vmem:[%s2 + $0x178] sm:$0xff]
        %v424 = vld [vmem:[%s2 + $0x180] sm:$0xff]
        %v425 = vld [vmem:[%s2 + $0x188] sm:$0xff]
        %v426 = vld [vmem:[%s2 + $0x190] sm:$0xff]
        %v427 = vld [vmem:[%s2 + $0x198] sm:$0xff]
        %v428 = vld [vmem:[%s2 + $0x1a0] sm:$0xff]
        %v429 = vld [vmem:[%s2 + $0x1a8] sm:$0xff]
        %v430 = vld [vmem:[%s2 + $0x1b0] sm:$0xff]
        %v431 = vld [vmem:[%s2 + $0x1b8] sm:$0xff]
        %v432 = vld [vmem:[%s2 + $0x1c0] sm:$0xff]
        %v433 = vld [vmem:[%s2 + $0x1c8] sm:$0xff]
        %v434 = vld [vmem:[%s2 + $0x1d0] sm:$0xff]
        %v435 = vld [vmem:[%s2 + $0x1d8] sm:$0xff]
        %v436 = vld [vmem:[%s2 + $0x1e0] sm:$0xff]
        %v437 = vld [vmem:[%s2 + $0x1e8] sm:$0xff]
        %v438 = vld [vmem:[%s2 + $0x1f0] sm:$0xff]
        %v439 = vld [vmem:[%s2 + $0x1f8] sm:$0xff]
        %v440 = vld [vmem:[%s3] sm:$0xff]
        %v442 = vlaneseq
        %v443 = vshrl.u32 %v442, 7
        %v444 = vsub.s32 0, %v443
        %v445 = vrot.slane %v440, %v444
        %v446 = vlaneseq
        %v447 = vshrl.u32 %v446, 7
        %v448 = vsub.s32 1, %v447
        %v449 = vrot.slane %v440, %v448
        %v450 = vlaneseq
        %v451 = vshrl.u32 %v450, 7
        %v452 = vsub.s32 2, %v451
        %v453 = vrot.slane %v440, %v452
        %v454 = vlaneseq
        %v455 = vshrl.u32 %v454, 7
        %v456 = vsub.s32 3, %v455
        %v457 = vrot.slane %v440, %v456
        %v458 = vlaneseq
        %v459 = vshrl.u32 %v458, 7
        %v460 = vsub.s32 4, %v459
        %v461 = vrot.slane %v440, %v460
        %v462 = vlaneseq
        %v463 = vshrl.u32 %v462, 7
        %v464 = vsub.s32 5, %v463
        %v465 = vrot.slane %v440, %v464
        %v466 = vlaneseq
        %v467 = vshrl.u32 %v466, 7
        %v468 = vsub.s32 6, %v467
        %v469 = vrot.slane %v440, %v468
        %v470 = vlaneseq
        %v471 = vshrl.u32 %v470, 7
        %v472 = vsub.s32 7, %v471
        %v473 = vrot.slane %v440, %v472
        %v546 = vunpack.c.l.b16 %v376
        %v547 = vunpack.c.h.b16 %v376
        %v548 = vunpack.c.l.b16 %v377
        %v549 = vunpack.c.h.b16 %v377
        %v550 = vunpack.c.l.b16 %v378
        %v551 = vunpack.c.h.b16 %v378
        %v552 = vunpack.c.l.b16 %v379
        %v553 = vunpack.c.h.b16 %v379
        %v554 = vunpack.c.l.b16 %v380
        %v555 = vunpack.c.h.b16 %v380
        %v556 = vunpack.c.l.b16 %v381
        %v557 = vunpack.c.h.b16 %v381
        %v558 = vunpack.c.l.b16 %v382
        %v559 = vunpack.c.h.b16 %v382
        %v560 = vunpack.c.l.b16 %v383
        %v561 = vunpack.c.h.b16 %v383
        %v562 = vunpack.c.l.b16 %v384
        %v563 = vunpack.c.h.b16 %v384
        %v564 = vunpack.c.l.b16 %v385
        %v565 = vunpack.c.h.b16 %v385
        %v566 = vunpack.c.l.b16 %v386
        %v567 = vunpack.c.h.b16 %v386
        %v568 = vunpack.c.l.b16 %v387
        %v569 = vunpack.c.h.b16 %v387
        %v570 = vunpack.c.l.b16 %v388
        %v571 = vunpack.c.h.b16 %v388
        %v572 = vunpack.c.l.b16 %v389
        %v573 = vunpack.c.h.b16 %v389
        %v574 = vunpack.c.l.b16 %v390
        %v575 = vunpack.c.h.b16 %v390
        %v576 = vunpack.c.l.b16 %v391
        %v577 = vunpack.c.h.b16 %v391
        %v578 = vunpack.c.l.b16 %v392
        %v579 = vunpack.c.h.b16 %v392
        %v580 = vunpack.c.l.b16 %v393
        %v581 = vunpack.c.h.b16 %v393
        %v582 = vunpack.c.l.b16 %v394
        %v583 = vunpack.c.h.b16 %v394
        %v584 = vunpack.c.l.b16 %v395
        %v585 = vunpack.c.h.b16 %v395
        %v586 = vunpack.c.l.b16 %v396
        %v587 = vunpack.c.h.b16 %v396
        %v588 = vunpack.c.l.b16 %v397
        %v589 = vunpack.c.h.b16 %v397
        %v590 = vunpack.c.l.b16 %v398
        %v591 = vunpack.c.h.b16 %v398
        %v592 = vunpack.c.l.b16 %v399
        %v593 = vunpack.c.h.b16 %v399
        %v594 = vunpack.c.l.b16 %v400
        %v595 = vunpack.c.h.b16 %v400
        %v596 = vunpack.c.l.b16 %v401
        %v597 = vunpack.c.h.b16 %v401
        %v598 = vunpack.c.l.b16 %v402
        %v599 = vunpack.c.h.b16 %v402
        %v600 = vunpack.c.l.b16 %v403
        %v601 = vunpack.c.h.b16 %v403
        %v602 = vunpack.c.l.b16 %v404
        %v603 = vunpack.c.h.b16 %v404
        %v604 = vunpack.c.l.b16 %v405
        %v605 = vunpack.c.h.b16 %v405
        %v606 = vunpack.c.l.b16 %v406
        %v607 = vunpack.c.h.b16 %v406
        %v608 = vunpack.c.l.b16 %v407
        %v609 = vunpack.c.h.b16 %v407
        %v610 = vunpack.c.l.b16 %v408
        %v611 = vunpack.c.h.b16 %v408
        %v612 = vunpack.c.l.b16 %v409
        %v613 = vunpack.c.h.b16 %v409
        %v614 = vunpack.c.l.b16 %v410
        %v615 = vunpack.c.h.b16 %v410
        %v616 = vunpack.c.l.b16 %v411
        %v617 = vunpack.c.h.b16 %v411
        %v618 = vunpack.c.l.b16 %v412
        %v619 = vunpack.c.h.b16 %v412
        %v620 = vunpack.c.l.b16 %v413
        %v621 = vunpack.c.h.b16 %v413
        %v622 = vunpack.c.l.b16 %v414
        %v623 = vunpack.c.h.b16 %v414
        %v624 = vunpack.c.l.b16 %v415
        %v625 = vunpack.c.h.b16 %v415
        %v626 = vunpack.c.l.b16 %v416
        %v627 = vunpack.c.h.b16 %v416
        %v628 = vunpack.c.l.b16 %v417
        %v629 = vunpack.c.h.b16 %v417
        %v630 = vunpack.c.l.b16 %v418
        %v631 = vunpack.c.h.b16 %v418
        %v632 = vunpack.c.l.b16 %v419
        %v633 = vunpack.c.h.b16 %v419
        %v634 = vunpack.c.l.b16 %v420
        %v635 = vunpack.c.h.b16 %v420
        %v636 = vunpack.c.l.b16 %v421
        %v637 = vunpack.c.h.b16 %v421
        %v638 = vunpack.c.l.b16 %v422
        %v639 = vunpack.c.h.b16 %v422
        %v640 = vunpack.c.l.b16 %v423
        %v641 = vunpack.c.h.b16 %v423
        %v642 = vunpack.c.l.b16 %v424
        %v643 = vunpack.c.h.b16 %v424
        %v644 = vunpack.c.l.b16 %v425
        %v645 = vunpack.c.h.b16 %v425
        %v646 = vunpack.c.l.b16 %v426
        %v647 = vunpack.c.h.b16 %v426
        %v648 = vunpack.c.l.b16 %v427
        %v649 = vunpack.c.h.b16 %v427
        %v650 = vunpack.c.l.b16 %v428
        %v651 = vunpack.c.h.b16 %v428
        %v652 = vunpack.c.l.b16 %v429
        %v653 = vunpack.c.h.b16 %v429
        %v654 = vunpack.c.l.b16 %v430
        %v655 = vunpack.c.h.b16 %v430
        %v656 = vunpack.c.l.b16 %v431
        %v657 = vunpack.c.h.b16 %v431
        %v658 = vunpack.c.l.b16 %v432
        %v659 = vunpack.c.h.b16 %v432
        %v660 = vunpack.c.l.b16 %v433
        %v661 = vunpack.c.h.b16 %v433
        %v662 = vunpack.c.l.b16 %v434
        %v663 = vunpack.c.h.b16 %v434
        %v664 = vunpack.c.l.b16 %v435
        %v665 = vunpack.c.h.b16 %v435
        %v666 = vunpack.c.l.b16 %v436
        %v667 = vunpack.c.h.b16 %v436
        %v668 = vunpack.c.l.b16 %v437
        %v669 = vunpack.c.h.b16 %v437
        %v670 = vunpack.c.l.b16 %v438
        %v671 = vunpack.c.h.b16 %v438
        %v672 = vunpack.c.l.b16 %v439
        %v673 = vunpack.c.h.b16 %v439
        %v674 = vpack.c.b16 %v554, %v546
        %v675 = vpack.c.b16 %v555, %v547
        %v676 = vpack.c.b16 %v556, %v548
        %v677 = vpack.c.b16 %v557, %v549
        %v678 = vpack.c.b16 %v558, %v550
        %v679 = vpack.c.b16 %v559, %v551
        %v680 = vpack.c.b16 %v560, %v552
        %v681 = vpack.c.b16 %v561, %v553
        %v682 = vpack.c.b16 %v570, %v562
        %v683 = vpack.c.b16 %v571, %v563
        %v684 = vpack.c.b16 %v572, %v564
        %v685 = vpack.c.b16 %v573, %v565
        %v686 = vpack.c.b16 %v574, %v566
        %v687 = vpack.c.b16 %v575, %v567
        %v688 = vpack.c.b16 %v576, %v568
        %v689 = vpack.c.b16 %v577, %v569
        %v690 = vpack.c.b16 %v586, %v578
        %v691 = vpack.c.b16 %v587, %v579
        %v692 = vpack.c.b16 %v588, %v580
        %v693 = vpack.c.b16 %v589, %v581
        %v694 = vpack.c.b16 %v590, %v582
        %v695 = vpack.c.b16 %v591, %v583
        %v696 = vpack.c.b16 %v592, %v584
        %v697 = vpack.c.b16 %v593, %v585
        %v698 = vpack.c.b16 %v602, %v594
        %v699 = vpack.c.b16 %v603, %v595
        %v700 = vpack.c.b16 %v604, %v596
        %v701 = vpack.c.b16 %v605, %v597
        %v702 = vpack.c.b16 %v606, %v598
        %v703 = vpack.c.b16 %v607, %v599
        %v704 = vpack.c.b16 %v608, %v600
        %v705 = vpack.c.b16 %v609, %v601
        %v706 = vpack.c.b16 %v618, %v610
        %v707 = vpack.c.b16 %v619, %v611
        %v708 = vpack.c.b16 %v620, %v612
        %v709 = vpack.c.b16 %v621, %v613
        %v710 = vpack.c.b16 %v622, %v614
        %v711 = vpack.c.b16 %v623, %v615
        %v712 = vpack.c.b16 %v624, %v616
        %v713 = vpack.c.b16 %v625, %v617
        %v714 = vpack.c.b16 %v634, %v626
        %v715 = vpack.c.b16 %v635, %v627
        %v716 = vpack.c.b16 %v636, %v628
        %v717 = vpack.c.b16 %v637, %v629
        %v718 = vpack.c.b16 %v638, %v630
        %v719 = vpack.c.b16 %v639, %v631
        %v720 = vpack.c.b16 %v640, %v632
        %v721 = vpack.c.b16 %v641, %v633
        %v722 = vpack.c.b16 %v650, %v642
        %v723 = vpack.c.b16 %v651, %v643
        %v724 = vpack.c.b16 %v652, %v644
        %v725 = vpack.c.b16 %v653, %v645
        %v726 = vpack.c.b16 %v654, %v646
        %v727 = vpack.c.b16 %v655, %v647
        %v728 = vpack.c.b16 %v656, %v648
        %v729 = vpack.c.b16 %v657, %v649
        %v730 = vpack.c.b16 %v666, %v658
        %v731 = vpack.c.b16 %v667, %v659
        %v732 = vpack.c.b16 %v668, %v660
        %v733 = vpack.c.b16 %v669, %v661
        %v734 = vpack.c.b16 %v670, %v662
        %v735 = vpack.c.b16 %v671, %v663
        %v736 = vpack.c.b16 %v672, %v664
        %v737 = vpack.c.b16 %v673, %v665
        %802 = vmatprep.subr.bf16.mxu0 %v731
        %803 = vmatpush1.bf16.msra.mxu0 %v730
        %804 = vmatprep.subr.bf16.mxu0 %v723
        %805 = vmatpush1.bf16.msra.mxu0 %v722
        %806 = vmatprep.subr.bf16.mxu0 %v715
        %807 = vmatpush1.bf16.msra.mxu0 %v714
        %808 = vmatprep.subr.bf16.mxu0 %v707
        %809 = vmatpush1.bf16.msra.mxu0 %v706
        %810 = vmatprep.subr.bf16.mxu0 %v699
        %811 = vmatpush1.bf16.msra.mxu0 %v698
        %812 = vmatprep.subr.bf16.mxu0 %v691
        %813 = vmatpush1.bf16.msra.mxu0 %v690
        %814 = vmatprep.subr.bf16.mxu0 %v683
        %815 = vmatpush1.bf16.msra.mxu0 %v682
        %816 = vmatprep.subr.bf16.mxu0 %v675
        %817 = vmatpush1.bf16.msra.mxu0 %v674
        %818 = vmatprep.subr.bf16.mxu0 0
        %819 = vmatpush2.bf16.msra.mxu0 0
        %820 = vmatprep.subr.bf16.mxu0 0
        %821 = vmatpush2.bf16.msra.mxu0 0
        %822 = vmatprep.subr.bf16.mxu0 0
        %823 = vmatpush2.bf16.msra.mxu0 0
        %824 = vmatprep.subr.bf16.mxu0 0
        %825 = vmatpush2.bf16.msra.mxu0 0
        %826 = vmatprep.subr.bf16.mxu0 0
        %827 = vmatpush2.bf16.msra.mxu0 0
        %828 = vmatprep.subr.bf16.mxu0 0
        %829 = vmatpush2.bf16.msra.mxu0 0
        %830 = vmatprep.subr.bf16.mxu0 0
        %831 = vmatpush2.bf16.msra.mxu0 0
        %832 = vmatprep.subr.bf16.mxu0 0
        %833 = vmatpush2.bf16.msra.mxu0 0
        %834 = vmatprep.mubr.bf16.mxu0 0
        %835 = vmatmul.mubr.bf16.gmra.mxu0 %v375
        %v836 = vpop.f32.mrf.mxu0
        %v837 = vadd.f32 %v445, %v836
        %v838 = vpop.f32.mrf.mxu0
        %v839 = vadd.f32 %v449, %v838
        %v840 = vpop.f32.mrf.mxu0
        %v841 = vpop.f32.mrf.mxu0
        %842 = vdwg.mxu0
        %843 = vmatprep.subr.bf16.mxu0 %v733
        %844 = vmatpush1.bf16.msra.mxu0 %v732
        %845 = vmatprep.subr.bf16.mxu0 %v725
        %846 = vmatpush1.bf16.msra.mxu0 %v724
        %847 = vmatprep.subr.bf16.mxu0 %v717
        %848 = vmatpush1.bf16.msra.mxu0 %v716
        %849 = vmatprep.subr.bf16.mxu0 %v709
        %850 = vmatpush1.bf16.msra.mxu0 %v708
        %851 = vmatprep.subr.bf16.mxu0 %v701
        %852 = vmatpush1.bf16.msra.mxu0 %v700
        %853 = vmatprep.subr.bf16.mxu0 %v693
        %854 = vmatpush1.bf16.msra.mxu0 %v692
        %855 = vmatprep.subr.bf16.mxu0 %v685
        %856 = vmatpush1.bf16.msra.mxu0 %v684
        %857 = vmatprep.subr.bf16.mxu0 %v677
        %858 = vmatpush1.bf16.msra.mxu0 %v676
        %859 = vmatprep.subr.bf16.mxu0 0
        %860 = vmatpush2.bf16.msra.mxu0 0
        %861 = vmatprep.subr.bf16.mxu0 0
        %862 = vmatpush2.bf16.msra.mxu0 0
        %863 = vmatprep.subr.bf16.mxu0 0
        %864 = vmatpush2.bf16.msra.mxu0 0
        %865 = vmatprep.subr.bf16.mxu0 0
        %866 = vmatpush2.bf16.msra.mxu0 0
        %867 = vmatprep.subr.bf16.mxu0 0
        %868 = vmatpush2.bf16.msra.mxu0 0
        %869 = vmatprep.subr.bf16.mxu0 0
        %870 = vmatpush2.bf16.msra.mxu0 0
        %871 = vmatprep.subr.bf16.mxu0 0
        %872 = vmatpush2.bf16.msra.mxu0 0
        %873 = vmatprep.subr.bf16.mxu0 0
        %874 = vmatpush2.bf16.msra.mxu0 0
        %875 = vmatprep.mubr.bf16.mxu0 0
        %876 = vmatmul.mubr.bf16.gmra.mxu0 %v375
        %v877 = vpop.f32.mrf.mxu0
        %v878 = vadd.f32 %v453, %v877
        %v879 = vpop.f32.mrf.mxu0
        %v880 = vadd.f32 %v457, %v879
        %v881 = vpop.f32.mrf.mxu0
        %v882 = vpop.f32.mrf.mxu0
        %883 = vdwg.mxu0
        %884 = vmatprep.subr.bf16.mxu0 %v735
        %885 = vmatpush1.bf16.msra.mxu0 %v734
        %886 = vmatprep.subr.bf16.mxu0 %v727
        %887 = vmatpush1.bf16.msra.mxu0 %v726
        %888 = vmatprep.subr.bf16.mxu0 %v719
        %889 = vmatpush1.bf16.msra.mxu0 %v718
        %890 = vmatprep.subr.bf16.mxu0 %v711
        %891 = vmatpush1.bf16.msra.mxu0 %v710
        %892 = vmatprep.subr.bf16.mxu0 %v703
        %893 = vmatpush1.bf16.msra.mxu0 %v702
        %894 = vmatprep.subr.bf16.mxu0 %v695
        %895 = vmatpush1.bf16.msra.mxu0 %v694
        %896 = vmatprep.subr.bf16.mxu0 %v687
        %897 = vmatpush1.bf16.msra.mxu0 %v686
        %898 = vmatprep.subr.bf16.mxu0 %v679
        %899 = vmatpush1.bf16.msra.mxu0 %v678
        %900 = vmatprep.subr.bf16.mxu0 0
        %901 = vmatpush2.bf16.msra.mxu0 0
        %902 = vmatprep.subr.bf16.mxu0 0
        %903 = vmatpush2.bf16.msra.mxu0 0
        %904 = vmatprep.subr.bf16.mxu0 0
        %905 = vmatpush2.bf16.msra.mxu0 0
        %906 = vmatprep.subr.bf16.mxu0 0
        %907 = vmatpush2.bf16.msra.mxu0 0
        %908 = vmatprep.subr.bf16.mxu0 0
        %909 = vmatpush2.bf16.msra.mxu0 0
        %910 = vmatprep.subr.bf16.mxu0 0
        %911 = vmatpush2.bf16.msra.mxu0 0
        %912 = vmatprep.subr.bf16.mxu0 0
        %913 = vmatpush2.bf16.msra.mxu0 0
        %914 = vmatprep.subr.bf16.mxu0 0
        %915 = vmatpush2.bf16.msra.mxu0 0
        %916 = vmatprep.mubr.bf16.mxu0 0
        %917 = vmatmul.mubr.bf16.gmra.mxu0 %v375
        %v918 = vpop.f32.mrf.mxu0
        %v919 = vadd.f32 %v461, %v918
        %v920 = vpop.f32.mrf.mxu0
        %v921 = vadd.f32 %v465, %v920
        %v922 = vpop.f32.mrf.mxu0
        %v923 = vpop.f32.mrf.mxu0
        %924 = vdwg.mxu0
        %925 = vmatprep.subr.bf16.mxu0 %v737
        %926 = vmatpush1.bf16.msra.mxu0 %v736
        %927 = vmatprep.subr.bf16.mxu0 %v729
        %928 = vmatpush1.bf16.msra.mxu0 %v728
        %929 = vmatprep.subr.bf16.mxu0 %v721
        %930 = vmatpush1.bf16.msra.mxu0 %v720
        %931 = vmatprep.subr.bf16.mxu0 %v713
        %932 = vmatpush1.bf16.msra.mxu0 %v712
        %933 = vmatprep.subr.bf16.mxu0 %v705
        %934 = vmatpush1.bf16.msra.mxu0 %v704
        %935 = vmatprep.subr.bf16.mxu0 %v697
        %936 = vmatpush1.bf16.msra.mxu0 %v696
        %937 = vmatprep.subr.bf16.mxu0 %v689
        %938 = vmatpush1.bf16.msra.mxu0 %v688
        %939 = vmatprep.subr.bf16.mxu0 %v681
        %940 = vmatpush1.bf16.msra.mxu0 %v680
        %941 = vmatprep.subr.bf16.mxu0 0
        %942 = vmatpush2.bf16.msra.mxu0 0
        %943 = vmatprep.subr.bf16.mxu0 0
        %944 = vmatpush2.bf16.msra.mxu0 0
        %945 = vmatprep.subr.bf16.mxu0 0
        %946 = vmatpush2.bf16.msra.mxu0 0
        %947 = vmatprep.subr.bf16.mxu0 0
        %948 = vmatpush2.bf16.msra.mxu0 0
        %949 = vmatprep.subr.bf16.mxu0 0
        %950 = vmatpush2.bf16.msra.mxu0 0
        %951 = vmatprep.subr.bf16.mxu0 0
        %952 = vmatpush2.bf16.msra.mxu0 0
        %953 = vmatprep.subr.bf16.mxu0 0
        %954 = vmatpush2.bf16.msra.mxu0 0
        %955 = vmatprep.subr.bf16.mxu0 0
        %956 = vmatpush2.bf16.msra.mxu0 0
        %957 = vmatprep.mubr.bf16.mxu0 0
        %958 = vmatmul.mubr.bf16.gmra.mxu0 %v375
        %v959 = vpop.f32.mrf.mxu0
        %v960 = vadd.f32 %v469, %v959
        %v961 = vpop.f32.mrf.mxu0
        %v962 = vadd.f32 %v473, %v961
        %v963 = vpop.f32.mrf.mxu0
        %v964 = vpop.f32.mrf.mxu0
        %965 = vdwg.mxu0
        %966 = vst [vmem:[#allocation2] sm:$0xff] %v837
        %967 = vst [vmem:[#allocation2 + $0x8] sm:$0xff] %v839
        %968 = vst [vmem:[#allocation2 + $0x10] sm:$0xff] %v878
        %969 = vst [vmem:[#allocation2 + $0x18] sm:$0xff] %v880
        %970 = vst [vmem:[#allocation2 + $0x20] sm:$0xff] %v919
        %971 = vst [vmem:[#allocation2 + $0x28] sm:$0xff] %v921
        %972 = vst [vmem:[#allocation2 + $0x30] sm:$0xff] %v960
        %973 = vst [vmem:[#allocation2 + $0x38] sm:$0xff] %v962
        %v974 = vld [vmem:[%s4] sm:$0xff]
        %v975 = vld [vmem:[%s4 + $0x8] sm:$0xff]
        %v976 = vld [vmem:[%s4 + $0x10] sm:$0xff]
        %v977 = vld [vmem:[%s4 + $0x18] sm:$0xff]
        %v978 = vld [vmem:[%s4 + $0x20] sm:$0xff]
        %v979 = vld [vmem:[%s4 + $0x28] sm:$0xff]
        %v980 = vld [vmem:[%s4 + $0x30] sm:$0xff]
        %v981 = vld [vmem:[%s4 + $0x38] sm:$0xff]
        %v982 = vld [vmem:[%s4 + $0x40] sm:$0xff]
        %v983 = vld [vmem:[%s4 + $0x48] sm:$0xff]
        %v984 = vld [vmem:[%s4 + $0x50] sm:$0xff]
        %v985 = vld [vmem:[%s4 + $0x58] sm:$0xff]
        %v986 = vld [vmem:[%s4 + $0x60] sm:$0xff]
        %v987 = vld [vmem:[%s4 + $0x68] sm:$0xff]
        %v988 = vld [vmem:[%s4 + $0x70] sm:$0xff]
        %v989 = vld [vmem:[%s4 + $0x78] sm:$0xff]
        %v990 = vld [vmem:[%s4 + $0x80] sm:$0xff]
        %v991 = vld [vmem:[%s4 + $0x88] sm:$0xff]
        %v992 = vld [vmem:[%s4 + $0x90] sm:$0xff]
        %v993 = vld [vmem:[%s4 + $0x98] sm:$0xff]
        %v994 = vld [vmem:[%s4 + $0xa0] sm:$0xff]
        %v995 = vld [vmem:[%s4 + $0xa8] sm:$0xff]
        %v996 = vld [vmem:[%s4 + $0xb0] sm:$0xff]
        %v997 = vld [vmem:[%s4 + $0xb8] sm:$0xff]
        %v998 = vld [vmem:[%s4 + $0xc0] sm:$0xff]
        %v999 = vld [vmem:[%s4 + $0xc8] sm:$0xff]
        %v1000 = vld [vmem:[%s4 + $0xd0] sm:$0xff]
        %v1001 = vld [vmem:[%s4 + $0xd8] sm:$0xff]
        %v1002 = vld [vmem:[%s4 + $0xe0] sm:$0xff]
        %v1003 = vld [vmem:[%s4 + $0xe8] sm:$0xff]
        %v1004 = vld [vmem:[%s4 + $0xf0] sm:$0xff]
        %v1005 = vld [vmem:[%s4 + $0xf8] sm:$0xff]
        %v1006 = vld [vmem:[%s5] sm:$0xff]
        %v1007 = vld [vmem:[%s5 + $0x8] sm:$0xff]
        %v1008 = vld [vmem:[%s5 + $0x10] sm:$0xff]
        %v1009 = vld [vmem:[%s5 + $0x18] sm:$0xff]
        %v1010 = vld [vmem:[%s5 + $0x20] sm:$0xff]
        %v1011 = vld [vmem:[%s5 + $0x28] sm:$0xff]
        %v1012 = vld [vmem:[%s5 + $0x30] sm:$0xff]
        %v1013 = vld [vmem:[%s5 + $0x38] sm:$0xff]
        %v1014 = vld [vmem:[%s5 + $0x40] sm:$0xff]
        %v1015 = vld [vmem:[%s5 + $0x48] sm:$0xff]
        %v1016 = vld [vmem:[%s5 + $0x50] sm:$0xff]
        %v1017 = vld [vmem:[%s5 + $0x58] sm:$0xff]
        %v1018 = vld [vmem:[%s5 + $0x60] sm:$0xff]
        %v1019 = vld [vmem:[%s5 + $0x68] sm:$0xff]
        %v1020 = vld [vmem:[%s5 + $0x70] sm:$0xff]
        %v1021 = vld [vmem:[%s5 + $0x78] sm:$0xff]
        %v1022 = vld [vmem:[%s5 + $0x80] sm:$0xff]
        %v1023 = vld [vmem:[%s5 + $0x88] sm:$0xff]
        %v1024 = vld [vmem:[%s5 + $0x90] sm:$0xff]
        %v1025 = vld [vmem:[%s5 + $0x98] sm:$0xff]
        %v1026 = vld [vmem:[%s5 + $0xa0] sm:$0xff]
        %v1027 = vld [vmem:[%s5 + $0xa8] sm:$0xff]
        %v1028 = vld [vmem:[%s5 + $0xb0] sm:$0xff]
        %v1029 = vld [vmem:[%s5 + $0xb8] sm:$0xff]
        %v1030 = vld [vmem:[%s5 + $0xc0] sm:$0xff]
        %v1031 = vld [vmem:[%s5 + $0xc8] sm:$0xff]
        %v1032 = vld [vmem:[%s5 + $0xd0] sm:$0xff]
        %v1033 = vld [vmem:[%s5 + $0xd8] sm:$0xff]
        %v1034 = vld [vmem:[%s5 + $0xe0] sm:$0xff]
        %v1035 = vld [vmem:[%s5 + $0xe8] sm:$0xff]
        %v1036 = vld [vmem:[%s5 + $0xf0] sm:$0xff]
        %v1037 = vld [vmem:[%s5 + $0xf8] sm:$0xff]
        %s1038 = smul.u32 0, 8
        %s1039 = smul.addr %s1038, 8
        %s1040 = scalar_lea.vmem [#allocation2], %s1039
        %v1041 = vld [vmem:[%s1040] sm:$0xff]
        %v1042 = vld [vmem:[%s1040 + $0x8] sm:$0xff]
        %v1043 = vld [vmem:[%s1040 + $0x10] sm:$0xff]
        %v1044 = vld [vmem:[%s1040 + $0x18] sm:$0xff]
        %v1045 = vld [vmem:[%s1040 + $0x20] sm:$0xff]
        %v1046 = vld [vmem:[%s1040 + $0x28] sm:$0xff]
        %v1047 = vld [vmem:[%s1040 + $0x30] sm:$0xff]
        %v1048 = vld [vmem:[%s1040 + $0x38] sm:$0xff]
        %s1049 = sadd.s32 0, 7
        %v1082 = vunpack.c.l.b16 %v974
        %v1083 = vunpack.c.h.b16 %v974
        %v1084 = vunpack.c.l.b16 %v975
        %v1085 = vunpack.c.h.b16 %v975
        %v1086 = vunpack.c.l.b16 %v976
        %v1087 = vunpack.c.h.b16 %v976
        %v1088 = vunpack.c.l.b16 %v977
        %v1089 = vunpack.c.h.b16 %v977
        %v1090 = vunpack.c.l.b16 %v978
        %v1091 = vunpack.c.h.b16 %v978
        %v1092 = vunpack.c.l.b16 %v979
        %v1093 = vunpack.c.h.b16 %v979
        %v1094 = vunpack.c.l.b16 %v980
        %v1095 = vunpack.c.h.b16 %v980
        %v1096 = vunpack.c.l.b16 %v981
        %v1097 = vunpack.c.h.b16 %v981
        %v1098 = vunpack.c.l.b16 %v982
        %v1099 = vunpack.c.h.b16 %v982
        %v1100 = vunpack.c.l.b16 %v983
        %v1101 = vunpack.c.h.b16 %v983
        %v1102 = vunpack.c.l.b16 %v984
        %v1103 = vunpack.c.h.b16 %v984
        %v1104 = vunpack.c.l.b16 %v985
        %v1105 = vunpack.c.h.b16 %v985
        %v1106 = vunpack.c.l.b16 %v986
        %v1107 = vunpack.c.h.b16 %v986
        %v1108 = vunpack.c.l.b16 %v987
        %v1109 = vunpack.c.h.b16 %v987
        %v1110 = vunpack.c.l.b16 %v988
        %v1111 = vunpack.c.h.b16 %v988
        %v1112 = vunpack.c.l.b16 %v989
        %v1113 = vunpack.c.h.b16 %v989
        %v1114 = vunpack.c.l.b16 %v990
        %v1115 = vunpack.c.h.b16 %v990
        %v1116 = vunpack.c.l.b16 %v991
        %v1117 = vunpack.c.h.b16 %v991
        %v1118 = vunpack.c.l.b16 %v992
        %v1119 = vunpack.c.h.b16 %v992
        %v1120 = vunpack.c.l.b16 %v993
        %v1121 = vunpack.c.h.b16 %v993
        %v1122 = vunpack.c.l.b16 %v994
        %v1123 = vunpack.c.h.b16 %v994
        %v1124 = vunpack.c.l.b16 %v995
        %v1125 = vunpack.c.h.b16 %v995
        %v1126 = vunpack.c.l.b16 %v996
        %v1127 = vunpack.c.h.b16 %v996
        %v1128 = vunpack.c.l.b16 %v997
        %v1129 = vunpack.c.h.b16 %v997
        %v1130 = vunpack.c.l.b16 %v998
        %v1131 = vunpack.c.h.b16 %v998
        %v1132 = vunpack.c.l.b16 %v999
        %v1133 = vunpack.c.h.b16 %v999
        %v1134 = vunpack.c.l.b16 %v1000
        %v1135 = vunpack.c.h.b16 %v1000
        %v1136 = vunpack.c.l.b16 %v1001
        %v1137 = vunpack.c.h.b16 %v1001
        %v1138 = vunpack.c.l.b16 %v1002
        %v1139 = vunpack.c.h.b16 %v1002
        %v1140 = vunpack.c.l.b16 %v1003
        %v1141 = vunpack.c.h.b16 %v1003
        %v1142 = vunpack.c.l.b16 %v1004
        %v1143 = vunpack.c.h.b16 %v1004
        %v1144 = vunpack.c.l.b16 %v1005
        %v1145 = vunpack.c.h.b16 %v1005
        %v1146 = vpack.c.b16 %v1086, %v1082
        %v1147 = vpack.c.b16 %v1087, %v1083
        %v1148 = vpack.c.b16 %v1088, %v1084
        %v1149 = vpack.c.b16 %v1089, %v1085
        %v1150 = vpack.c.b16 %v1094, %v1090
        %v1151 = vpack.c.b16 %v1095, %v1091
        %v1152 = vpack.c.b16 %v1096, %v1092
        %v1153 = vpack.c.b16 %v1097, %v1093
        %v1154 = vpack.c.b16 %v1102, %v1098
        %v1155 = vpack.c.b16 %v1103, %v1099
        %v1156 = vpack.c.b16 %v1104, %v1100
        %v1157 = vpack.c.b16 %v1105, %v1101
        %v1158 = vpack.c.b16 %v1110, %v1106
        %v1159 = vpack.c.b16 %v1111, %v1107
        %v1160 = vpack.c.b16 %v1112, %v1108
        %v1161 = vpack.c.b16 %v1113, %v1109
        %v1162 = vpack.c.b16 %v1118, %v1114
        %v1163 = vpack.c.b16 %v1119, %v1115
        %v1164 = vpack.c.b16 %v1120, %v1116
        %v1165 = vpack.c.b16 %v1121, %v1117
        %v1166 = vpack.c.b16 %v1126, %v1122
        %v1167 = vpack.c.b16 %v1127, %v1123
        %v1168 = vpack.c.b16 %v1128, %v1124
        %v1169 = vpack.c.b16 %v1129, %v1125
        %v1170 = vpack.c.b16 %v1134, %v1130
        %v1171 = vpack.c.b16 %v1135, %v1131
        %v1172 = vpack.c.b16 %v1136, %v1132
        %v1173 = vpack.c.b16 %v1137, %v1133
        %v1174 = vpack.c.b16 %v1142, %v1138
        %v1175 = vpack.c.b16 %v1143, %v1139
        %v1176 = vpack.c.b16 %v1144, %v1140
        %v1177 = vpack.c.b16 %v1145, %v1141
        %1210 = vmatprep.subr.bf16.mxu0 %v1175
        %1211 = vmatpush1.bf16.msra.mxu0 %v1174
        %1212 = vmatprep.subr.bf16.mxu0 %v1171
        %1213 = vmatpush1.bf16.msra.mxu0 %v1170
        %1214 = vmatprep.subr.bf16.mxu0 %v1167
        %1215 = vmatpush1.bf16.msra.mxu0 %v1166
        %1216 = vmatprep.subr.bf16.mxu0 %v1163
        %1217 = vmatpush1.bf16.msra.mxu0 %v1162
        %1218 = vmatprep.subr.bf16.mxu0 %v1159
        %1219 = vmatpush1.bf16.msra.mxu0 %v1158
        %1220 = vmatprep.subr.bf16.mxu0 %v1155
        %1221 = vmatpush1.bf16.msra.mxu0 %v1154
        %1222 = vmatprep.subr.bf16.mxu0 %v1151
        %1223 = vmatpush1.bf16.msra.mxu0 %v1150
        %1224 = vmatprep.subr.bf16.mxu0 %v1147
        %1225 = vmatpush1.bf16.msra.mxu0 %v1146
        %1226 = vmatprep.subr.bf16.mxu0 0
        %1227 = vmatpush2.bf16.msra.mxu0 0
        %1228 = vmatprep.subr.bf16.mxu0 0
        %1229 = vmatpush2.bf16.msra.mxu0 0
        %1230 = vmatprep.subr.bf16.mxu0 0
        %1231 = vmatpush2.bf16.msra.mxu0 0
        %1232 = vmatprep.subr.bf16.mxu0 0
        %1233 = vmatpush2.bf16.msra.mxu0 0
        %1234 = vmatprep.subr.bf16.mxu0 0
        %1235 = vmatpush2.bf16.msra.mxu0 0
        %1236 = vmatprep.subr.bf16.mxu0 0
        %1237 = vmatpush2.bf16.msra.mxu0 0
        %1238 = vmatprep.subr.bf16.mxu0 0
        %1239 = vmatpush2.bf16.msra.mxu0 0
        %1240 = vmatprep.subr.bf16.mxu0 0
        %1241 = vmatpush2.bf16.msra.mxu0 0
        %1242 = vmatprep.mubr.bf16.mxu0 0
        %1243 = vmatmul.mubr.bf16.gmra.mxu0 0
        %v1244 = vpop.f32.mrf.mxu0
        %v1245 = vadd.f32 0.0, %v1244
        %v1246 = vpop.f32.mrf.mxu0
        %v1247 = vadd.f32 0.0, %v1246
        %v1248 = vpop.f32.mrf.mxu0
        %v1249 = vpop.f32.mrf.mxu0
        %1250 = vdwg.mxu0
        %1251 = vmatprep.subr.bf16.mxu0 %v1177
        %1252 = vmatpush1.bf16.msra.mxu0 %v1176
        %1253 = vmatprep.subr.bf16.mxu0 %v1173
        %1254 = vmatpush1.bf16.msra.mxu0 %v1172
        %1255 = vmatprep.subr.bf16.mxu0 %v1169
        %1256 = vmatpush1.bf16.msra.mxu0 %v1168
        %1257 = vmatprep.subr.bf16.mxu0 %v1165
        %1258 = vmatpush1.bf16.msra.mxu0 %v1164
        %1259 = vmatprep.subr.bf16.mxu0 %v1161
        %1260 = vmatpush1.bf16.msra.mxu0 %v1160
        %1261 = vmatprep.subr.bf16.mxu0 %v1157
        %1262 = vmatpush1.bf16.msra.mxu0 %v1156
        %1263 = vmatprep.subr.bf16.mxu0 %v1153
        %1264 = vmatpush1.bf16.msra.mxu0 %v1152
        %1265 = vmatprep.subr.bf16.mxu0 %v1149
        %1266 = vmatpush1.bf16.msra.mxu0 %v1148
        %1267 = vmatprep.subr.bf16.mxu0 0
        %1268 = vmatpush2.bf16.msra.mxu0 0
        %1269 = vmatprep.subr.bf16.mxu0 0
        %1270 = vmatpush2.bf16.msra.mxu0 0
        %1271 = vmatprep.subr.bf16.mxu0 0
        %1272 = vmatpush2.bf16.msra.mxu0 0
        %1273 = vmatprep.subr.bf16.mxu0 0
        %1274 = vmatpush2.bf16.msra.mxu0 0
        %1275 = vmatprep.subr.bf16.mxu0 0
        %1276 = vmatpush2.bf16.msra.mxu0 0
        %1277 = vmatprep.subr.bf16.mxu0 0
        %1278 = vmatpush2.bf16.msra.mxu0 0
        %1279 = vmatprep.subr.bf16.mxu0 0
        %1280 = vmatpush2.bf16.msra.mxu0 0
        %1281 = vmatprep.subr.bf16.mxu0 0
        %1282 = vmatpush2.bf16.msra.mxu0 0
        %1283 = vmatprep.mubr.bf16.mxu0 0
        %1284 = vmatmul.mubr.bf16.gmra.mxu0 0
        %v1285 = vpop.f32.mrf.mxu0
        %v1286 = vadd.f32 0.0, %v1285
        %v1287 = vpop.f32.mrf.mxu0
        %v1288 = vadd.f32 0.0, %v1287
        %v1289 = vpop.f32.mrf.mxu0
        %v1290 = vpop.f32.mrf.mxu0
        %1291 = vdwg.mxu0
        %v1292 = vadd.f32 %v1041, %v1245
        %v1293 = vadd.f32 %v1042, %v1247
        %v1294 = vadd.f32 %v1043, %v1286
        %v1295 = vadd.f32 %v1044, %v1288
        %v1296 = vxor.u32 %v1292, 2147483648
        %v1297 = vxor.u32 %v1293, 2147483648
        %v1298 = vxor.u32 %v1294, 2147483648
        %v1299 = vmul.f32 %v1296, 1.442695
        %v1300 = vpow.pop %v1299
        %v1301 = vmul.f32 %v1297, 1.442695
        %v1302 = vpow.pop %v1301
        %v1303 = vmul.f32 %v1298, 1.442695
        %v1304 = vpow.pop %v1303
        %v1305 = vadd.f32 %v1300, 1.0
        %v1306 = vadd.f32 %v1302, 1.0
        %v1307 = vadd.f32 %v1304, 1.0
        %v1308 = vrcp.pop %v1305
        %v1309 = vmul.f32 1.0, %v1308
        %v1310 = vrcp.pop %v1306
        %v1311 = vmul.f32 1.0, %v1310
        %v1312 = vrcp.pop %v1307
        %v1313 = vmul.f32 1.0, %v1312
        %v1314 = vtanh.pop %v1295
        %v1315 = vmul.f32 %v1311, 0.0
        %v1316 = vmul.f32 %v1309, %v1314
        %v1317 = vadd.f32 %v1315, %v1316
        %v1318 = vtanh.pop %v1317
        %v1319 = vmul.f32 %v1313, %v1318
        %p1320 = scmp.lt.s32.totalorder 0, %s374
        %s1321 = scalar_select %p1320, 1, 0
        %v1322 = vstv %s1321
        %vm1323 = vcmp.eq.s32.totalorder %v1322, 1
        %v1324 = vsel %vm1323, %v1319, 0.0
        %v1325 = vsel %vm1323, %v1317, 0.0
        %v1358 = vunpack.c.l.b16 %v1006
        %v1359 = vunpack.c.h.b16 %v1006
        %v1360 = vunpack.c.l.b16 %v1007
        %v1361 = vunpack.c.h.b16 %v1007
        %v1362 = vunpack.c.l.b16 %v1008
        %v1363 = vunpack.c.h.b16 %v1008
        %v1364 = vunpack.c.l.b16 %v1009
        %v1365 = vunpack.c.h.b16 %v1009
        %v1366 = vunpack.c.l.b16 %v1010
        %v1367 = vunpack.c.h.b16 %v1010
        %v1368 = vunpack.c.l.b16 %v1011
        %v1369 = vunpack.c.h.b16 %v1011
        %v1370 = vunpack.c.l.b16 %v1012
        %v1371 = vunpack.c.h.b16 %v1012
        %v1372 = vunpack.c.l.b16 %v1013
        %v1373 = vunpack.c.h.b16 %v1013
        %v1374 = vunpack.c.l.b16 %v1014
        %v1375 = vunpack.c.h.b16 %v1014
        %v1376 = vunpack.c.l.b16 %v1015
        %v1377 = vunpack.c.h.b16 %v1015
        %v1378 = vunpack.c.l.b16 %v1016
        %v1379 = vunpack.c.h.b16 %v1016
        %v1380 = vunpack.c.l.b16 %v1017
        %v1381 = vunpack.c.h.b16 %v1017
        %v1382 = vunpack.c.l.b16 %v1018
        %v1383 = vunpack.c.h.b16 %v1018
        %v1384 = vunpack.c.l.b16 %v1019
        %v1385 = vunpack.c.h.b16 %v1019
        %v1386 = vunpack.c.l.b16 %v1020
        %v1387 = vunpack.c.h.b16 %v1020
        %v1388 = vunpack.c.l.b16 %v1021
        %v1389 = vunpack.c.h.b16 %v1021
        %v1390 = vunpack.c.l.b16 %v1022
        %v1391 = vunpack.c.h.b16 %v1022
        %v1392 = vunpack.c.l.b16 %v1023
        %v1393 = vunpack.c.h.b16 %v1023
        %v1394 = vunpack.c.l.b16 %v1024
        %v1395 = vunpack.c.h.b16 %v1024
        %v1396 = vunpack.c.l.b16 %v1025
        %v1397 = vunpack.c.h.b16 %v1025
        %v1398 = vunpack.c.l.b16 %v1026
        %v1399 = vunpack.c.h.b16 %v1026
        %v1400 = vunpack.c.l.b16 %v1027
        %v1401 = vunpack.c.h.b16 %v1027
        %v1402 = vunpack.c.l.b16 %v1028
        %v1403 = vunpack.c.h.b16 %v1028
        %v1404 = vunpack.c.l.b16 %v1029
        %v1405 = vunpack.c.h.b16 %v1029
        %v1406 = vunpack.c.l.b16 %v1030
        %v1407 = vunpack.c.h.b16 %v1030
        %v1408 = vunpack.c.l.b16 %v1031
        %v1409 = vunpack.c.h.b16 %v1031
        %v1410 = vunpack.c.l.b16 %v1032
        %v1411 = vunpack.c.h.b16 %v1032
        %v1412 = vunpack.c.l.b16 %v1033
        %v1413 = vunpack.c.h.b16 %v1033
        %v1414 = vunpack.c.l.b16 %v1034
        %v1415 = vunpack.c.h.b16 %v1034
        %v1416 = vunpack.c.l.b16 %v1035
        %v1417 = vunpack.c.h.b16 %v1035
        %v1418 = vunpack.c.l.b16 %v1036
        %v1419 = vunpack.c.h.b16 %v1036
        %v1420 = vunpack.c.l.b16 %v1037
        %v1421 = vunpack.c.h.b16 %v1037
        %v1422 = vpack.c.b16 %v1362, %v1358
        %v1423 = vpack.c.b16 %v1363, %v1359
        %v1424 = vpack.c.b16 %v1364, %v1360
        %v1425 = vpack.c.b16 %v1365, %v1361
        %v1426 = vpack.c.b16 %v1370, %v1366
        %v1427 = vpack.c.b16 %v1371, %v1367
        %v1428 = vpack.c.b16 %v1372, %v1368
        %v1429 = vpack.c.b16 %v1373, %v1369
        %v1430 = vpack.c.b16 %v1378, %v1374
        %v1431 = vpack.c.b16 %v1379, %v1375
        %v1432 = vpack.c.b16 %v1380, %v1376
        %v1433 = vpack.c.b16 %v1381, %v1377
        %v1434 = vpack.c.b16 %v1386, %v1382
        %v1435 = vpack.c.b16 %v1387, %v1383
        %v1436 = vpack.c.b16 %v1388, %v1384
        %v1437 = vpack.c.b16 %v1389, %v1385
        %v1438 = vpack.c.b16 %v1394, %v1390
        %v1439 = vpack.c.b16 %v1395, %v1391
        %v1440 = vpack.c.b16 %v1396, %v1392
        %v1441 = vpack.c.b16 %v1397, %v1393
        %v1442 = vpack.c.b16 %v1402, %v1398
        %v1443 = vpack.c.b16 %v1403, %v1399
        %v1444 = vpack.c.b16 %v1404, %v1400
        %v1445 = vpack.c.b16 %v1405, %v1401
        %v1446 = vpack.c.b16 %v1410, %v1406
        %v1447 = vpack.c.b16 %v1411, %v1407
        %v1448 = vpack.c.b16 %v1412, %v1408
        %v1449 = vpack.c.b16 %v1413, %v1409
        %v1450 = vpack.c.b16 %v1418, %v1414
        %v1451 = vpack.c.b16 %v1419, %v1415
        %v1452 = vpack.c.b16 %v1420, %v1416
        %v1453 = vpack.c.b16 %v1421, %v1417
        %1486 = vmatprep.subr.bf16.mxu0 %v1451
        %1487 = vmatpush1.bf16.msra.mxu0 %v1450
        %1488 = vmatprep.subr.bf16.mxu0 %v1447
        %1489 = vmatpush1.bf16.msra.mxu0 %v1446
        %1490 = vmatprep.subr.bf16.mxu0 %v1443
        %1491 = vmatpush1.bf16.msra.mxu0 %v1442
        %1492 = vmatprep.subr.bf16.mxu0 %v1439
        %1493 = vmatpush1.bf16.msra.mxu0 %v1438
        %1494 = vmatprep.subr.bf16.mxu0 %v1435
        %1495 = vmatpush1.bf16.msra.mxu0 %v1434
        %1496 = vmatprep.subr.bf16.mxu0 %v1431
        %1497 = vmatpush1.bf16.msra.mxu0 %v1430
        %1498 = vmatprep.subr.bf16.mxu0 %v1427
        %1499 = vmatpush1.bf16.msra.mxu0 %v1426
        %1500 = vmatprep.subr.bf16.mxu0 %v1423
        %1501 = vmatpush1.bf16.msra.mxu0 %v1422
        %1502 = vmatprep.subr.bf16.mxu0 0
        %1503 = vmatpush2.bf16.msra.mxu0 0
        %1504 = vmatprep.subr.bf16.mxu0 0
        %1505 = vmatpush2.bf16.msra.mxu0 0
        %1506 = vmatprep.subr.bf16.mxu0 0
        %1507 = vmatpush2.bf16.msra.mxu0 0
        %1508 = vmatprep.subr.bf16.mxu0 0
        %1509 = vmatpush2.bf16.msra.mxu0 0
        %1510 = vmatprep.subr.bf16.mxu0 0
        %1511 = vmatpush2.bf16.msra.mxu0 0
        %1512 = vmatprep.subr.bf16.mxu0 0
        %1513 = vmatpush2.bf16.msra.mxu0 0
        %1514 = vmatprep.subr.bf16.mxu0 0
        %1515 = vmatpush2.bf16.msra.mxu0 0
        %1516 = vmatprep.subr.bf16.mxu0 0
        %1517 = vmatpush2.bf16.msra.mxu0 0
        %1518 = vmatprep.mubr.bf16.mxu0 0
        %1519 = vmatmul.mubr.bf16.gmra.mxu0 0
        %v1520 = vpop.f32.mrf.mxu0
        %v1521 = vadd.f32 0.0, %v1520
        %v1522 = vpop.f32.mrf.mxu0
        %v1523 = vadd.f32 0.0, %v1522
        %v1524 = vpop.f32.mrf.mxu0
        %v1525 = vpop.f32.mrf.mxu0
        %1526 = vdwg.mxu0
        %1527 = vmatprep.subr.bf16.mxu0 %v1453
        %1528 = vmatpush1.bf16.msra.mxu0 %v1452
        %1529 = vmatprep.subr.bf16.mxu0 %v1449
        %1530 = vmatpush1.bf16.msra.mxu0 %v1448
        %1531 = vmatprep.subr.bf16.mxu0 %v1445
        %1532 = vmatpush1.bf16.msra.mxu0 %v1444
        %1533 = vmatprep.subr.bf16.mxu0 %v1441
        %1534 = vmatpush1.bf16.msra.mxu0 %v1440
        %1535 = vmatprep.subr.bf16.mxu0 %v1437
        %1536 = vmatpush1.bf16.msra.mxu0 %v1436
        %1537 = vmatprep.subr.bf16.mxu0 %v1433
        %1538 = vmatpush1.bf16.msra.mxu0 %v1432
        %1539 = vmatprep.subr.bf16.mxu0 %v1429
        %1540 = vmatpush1.bf16.msra.mxu0 %v1428
        %1541 = vmatprep.subr.bf16.mxu0 %v1425
        %1542 = vmatpush1.bf16.msra.mxu0 %v1424
        %1543 = vmatprep.subr.bf16.mxu0 0
        %1544 = vmatpush2.bf16.msra.mxu0 0
        %1545 = vmatprep.subr.bf16.mxu0 0
        %1546 = vmatpush2.bf16.msra.mxu0 0
        %1547 = vmatprep.subr.bf16.mxu0 0
        %1548 = vmatpush2.bf16.msra.mxu0 0
        %1549 = vmatprep.subr.bf16.mxu0 0
        %1550 = vmatpush2.bf16.msra.mxu0 0
        %1551 = vmatprep.subr.bf16.mxu0 0
        %1552 = vmatpush2.bf16.msra.mxu0 0
        %1553 = vmatprep.subr.bf16.mxu0 0
        %1554 = vmatpush2.bf16.msra.mxu0 0
        %1555 = vmatprep.subr.bf16.mxu0 0
        %1556 = vmatpush2.bf16.msra.mxu0 0
        %1557 = vmatprep.subr.bf16.mxu0 0
        %1558 = vmatpush2.bf16.msra.mxu0 0
        %1559 = vmatprep.mubr.bf16.mxu0 0
        %1560 = vmatmul.mubr.bf16.gmra.mxu0 0
        %v1561 = vpop.f32.mrf.mxu0
        %v1562 = vadd.f32 0.0, %v1561
        %v1563 = vpop.f32.mrf.mxu0
        %v1564 = vadd.f32 0.0, %v1563
        %v1565 = vpop.f32.mrf.mxu0
        %v1566 = vpop.f32.mrf.mxu0
        %1567 = vdwg.mxu0
        %v1572 = vrot.slane %v1521, 1
        %v1573 = vrot.slane %v1523, 1
        %v1574 = vrot.slane %v1562, 1
        %v1575 = vrot.slane %v1564, 1
        %v1580 = vadd.f32 %v1045, %v1572
        %v1581 = vadd.f32 %v1046, %v1573
        %v1582 = vadd.f32 %v1047, %v1574
        %v1583 = vadd.f32 %v1048, %v1575
        %v1584 = vxor.u32 %v1580, 2147483648
        %v1585 = vxor.u32 %v1581, 2147483648
        %v1586 = vxor.u32 %v1582, 2147483648
        %v1587 = vmul.f32 %v1584, 1.442695
        %v1588 = vpow.pop %v1587
        %v1589 = vmul.f32 %v1585, 1.442695
        %v1590 = vpow.pop %v1589
        %v1591 = vmul.f32 %v1586, 1.442695
        %v1592 = vpow.pop %v1591
        %v1593 = vadd.f32 %v1588, 1.0
        %v1594 = vadd.f32 %v1590, 1.0
        %v1595 = vadd.f32 %v1592, 1.0
        %v1596 = vrcp.pop %v1593
        %v1597 = vmul.f32 1.0, %v1596
        %v1598 = vrcp.pop %v1594
        %v1599 = vmul.f32 1.0, %v1598
        %v1600 = vrcp.pop %v1595
        %v1601 = vmul.f32 1.0, %v1600
        %v1602 = vtanh.pop %v1583
        %v1603 = vmul.f32 %v1599, 0.0
        %v1604 = vmul.f32 %v1597, %v1602
        %v1605 = vadd.f32 %v1603, %v1604
        %v1606 = vtanh.pop %v1605
        %v1607 = vmul.f32 %v1601, %v1606
        %p1608 = scmp.lt.s32.totalorder %s1049, %s374
        %s1609 = scalar_select %p1608, 1, 0
        %v1610 = vstv %s1609
        %vm1611 = vcmp.eq.s32.totalorder %v1610, 1
        %v1612 = vsel %vm1611, %v1607, 0.0
        %v1613 = vsel %vm1611, %v1605, 0.0
        %s1614 = sadd.s32 0, 1
        %s1615 = sadd.s32 0, 6
        %v1616 = vpack.c.bf16 %v1324, %v1324
        %1617 = vmatprep.subr.bf16.mxu0 %v1175
        %1618 = vmatpush1.bf16.msra.mxu0 %v1174
        %1619 = vmatprep.subr.bf16.mxu0 %v1171
        %1620 = vmatpush1.bf16.msra.mxu0 %v1170
        %1621 = vmatprep.subr.bf16.mxu0 %v1167
        %1622 = vmatpush1.bf16.msra.mxu0 %v1166
        %1623 = vmatprep.subr.bf16.mxu0 %v1163
        %1624 = vmatpush1.bf16.msra.mxu0 %v1162
        %1625 = vmatprep.subr.bf16.mxu0 %v1159
        %1626 = vmatpush1.bf16.msra.mxu0 %v1158
        %1627 = vmatprep.subr.bf16.mxu0 %v1155
        %1628 = vmatpush1.bf16.msra.mxu0 %v1154
        %1629 = vmatprep.subr.bf16.mxu0 %v1151
        %1630 = vmatpush1.bf16.msra.mxu0 %v1150
        %1631 = vmatprep.subr.bf16.mxu0 %v1147
        %1632 = vmatpush1.bf16.msra.mxu0 %v1146
        %1633 = vmatprep.subr.bf16.mxu0 0
        %1634 = vmatpush2.bf16.msra.mxu0 0
        %1635 = vmatprep.subr.bf16.mxu0 0
        %1636 = vmatpush2.bf16.msra.mxu0 0
        %1637 = vmatprep.subr.bf16.mxu0 0
        %1638 = vmatpush2.bf16.msra.mxu0 0
        %1639 = vmatprep.subr.bf16.mxu0 0
        %1640 = vmatpush2.bf16.msra.mxu0 0
        %1641 = vmatprep.subr.bf16.mxu0 0
        %1642 = vmatpush2.bf16.msra.mxu0 0
        %1643 = vmatprep.subr.bf16.mxu0 0
        %1644 = vmatpush2.bf16.msra.mxu0 0
        %1645 = vmatprep.subr.bf16.mxu0 0
        %1646 = vmatpush2.bf16.msra.mxu0 0
        %1647 = vmatprep.subr.bf16.mxu0 0
        %1648 = vmatpush2.bf16.msra.mxu0 0
        %1649 = vmatprep.mubr.bf16.mxu0 0
        %1650 = vmatmul.mubr.bf16.gmra.mxu0 %v1616
        %v1651 = vpop.f32.mrf.mxu0
        %v1652 = vadd.f32 0.0, %v1651
        %v1653 = vpop.f32.mrf.mxu0
        %v1654 = vadd.f32 0.0, %v1653
        %v1655 = vpop.f32.mrf.mxu0
        %v1656 = vpop.f32.mrf.mxu0
        %1657 = vdwg.mxu0
        %1658 = vmatprep.subr.bf16.mxu0 %v1177
        %1659 = vmatpush1.bf16.msra.mxu0 %v1176
        %1660 = vmatprep.subr.bf16.mxu0 %v1173
        %1661 = vmatpush1.bf16.msra.mxu0 %v1172
        %1662 = vmatprep.subr.bf16.mxu0 %v1169
        %1663 = vmatpush1.bf16.msra.mxu0 %v1168
        %1664 = vmatprep.subr.bf16.mxu0 %v1165
        %1665 = vmatpush1.bf16.msra.mxu0 %v1164
        %1666 = vmatprep.subr.bf16.mxu0 %v1161
        %1667 = vmatpush1.bf16.msra.mxu0 %v1160
        %1668 = vmatprep.subr.bf16.mxu0 %v1157
        %1669 = vmatpush1.bf16.msra.mxu0 %v1156
        %1670 = vmatprep.subr.bf16.mxu0 %v1153
        %1671 = vmatpush1.bf16.msra.mxu0 %v1152
        %1672 = vmatprep.subr.bf16.mxu0 %v1149
        %1673 = vmatpush1.bf16.msra.mxu0 %v1148
        %1674 = vmatprep.subr.bf16.mxu0 0
        %1675 = vmatpush2.bf16.msra.mxu0 0
        %1676 = vmatprep.subr.bf16.mxu0 0
        %1677 = vmatpush2.bf16.msra.mxu0 0
        %1678 = vmatprep.subr.bf16.mxu0 0
        %1679 = vmatpush2.bf16.msra.mxu0 0
        %1680 = vmatprep.subr.bf16.mxu0 0
        %1681 = vmatpush2.bf16.msra.mxu0 0
        %1682 = vmatprep.subr.bf16.mxu0 0
        %1683 = vmatpush2.bf16.msra.mxu0 0
        %1684 = vmatprep.subr.bf16.mxu0 0
        %1685 = vmatpush2.bf16.msra.mxu0 0
        %1686 = vmatprep.subr.bf16.mxu0 0
        %1687 = vmatpush2.bf16.msra.mxu0 0
        %1688 = vmatprep.subr.bf16.mxu0 0
        %1689 = vmatpush2.bf16.msra.mxu0 0
        %1690 = vmatprep.mubr.bf16.mxu0 0
        %1691 = vmatmul.mubr.bf16.gmra.mxu0 %v1616
        %v1692 = vpop.f32.mrf.mxu0
        %v1693 = vadd.f32 0.0, %v1692
        %v1694 = vpop.f32.mrf.mxu0
        %v1695 = vadd.f32 0.0, %v1694
        %v1696 = vpop.f32.mrf.mxu0
        %v1697 = vpop.f32.mrf.mxu0
        %1698 = vdwg.mxu0
        %v1703 = vrot.slane %v1652, 7
        %v1704 = vrot.slane %v1654, 7
        %v1705 = vrot.slane %v1693, 7
        %v1706 = vrot.slane %v1695, 7
        %v1711 = vadd.f32 %v1041, %v1703
        %v1712 = vadd.f32 %v1042, %v1704
        %v1713 = vadd.f32 %v1043, %v1705
        %v1714 = vadd.f32 %v1044, %v1706
        %v1715 = vxor.u32 %v1711, 2147483648
        %v1716 = vxor.u32 %v1712, 2147483648
        %v1717 = vxor.u32 %v1713, 2147483648
        %v1718 = vmul.f32 %v1715, 1.442695
        %v1719 = vpow.pop %v1718
        %v1720 = vmul.f32 %v1716, 1.442695
        %v1721 = vpow.pop %v1720
        %v1722 = vmul.f32 %v1717, 1.442695
        %v1723 = vpow.pop %v1722
        %v1724 = vadd.f32 %v1719, 1.0
        %v1725 = vadd.f32 %v1721, 1.0
        %v1726 = vadd.f32 %v1723, 1.0
        %v1727 = vrcp.pop %v1724
        %v1728 = vmul.f32 1.0, %v1727
        %v1729 = vrcp.pop %v1725
        %v1730 = vmul.f32 1.0, %v1729
        %v1731 = vrcp.pop %v1726
        %v1732 = vmul.f32 1.0, %v1731
        %v1733 = vtanh.pop %v1714
        %v1735 = vrot.slane %v1325, 7
        %v1737 = vmul.f32 %v1730, %v1735
        %v1738 = vmul.f32 %v1728, %v1733
        %v1739 = vadd.f32 %v1737, %v1738
        %v1740 = vtanh.pop %v1739
        %v1741 = vmul.f32 %v1732, %v1740
        %p1742 = scmp.lt.s32.totalorder %s1614, %s374
        %s1743 = scalar_select %p1742, 1, 0
        %v1744 = vstv %s1743
        %vm1745 = vcmp.eq.s32.totalorder %v1744, 1
        %v1747 = vrot.slane %v1324, 7
        %v1749 = vsel %vm1745, %v1741, %v1747
        %v1750 = vsel %vm1745, %v1739, %v1735
        %v1751 = vsel %vm1745, %v1741, 0.0
        %v1752 = vpack.c.bf16 %v1612, %v1612
        %v1754 = vshrl.u32 %v1752, 16
        %v1756 = vrot.slane %v1754, 3
        %1758 = vmatprep.subr.bf16.mxu0 %v1451
        %1759 = vmatpush1.bf16.msra.mxu0 %v1450
        %1760 = vmatprep.subr.bf16.mxu0 %v1447
        %1761 = vmatpush1.bf16.msra.mxu0 %v1446
        %1762 = vmatprep.subr.bf16.mxu0 %v1443
        %1763 = vmatpush1.bf16.msra.mxu0 %v1442
        %1764 = vmatprep.subr.bf16.mxu0 %v1439
        %1765 = vmatpush1.bf16.msra.mxu0 %v1438
        %1766 = vmatprep.subr.bf16.mxu0 %v1435
        %1767 = vmatpush1.bf16.msra.mxu0 %v1434
        %1768 = vmatprep.subr.bf16.mxu0 %v1431
        %1769 = vmatpush1.bf16.msra.mxu0 %v1430
        %1770 = vmatprep.subr.bf16.mxu0 %v1427
        %1771 = vmatpush1.bf16.msra.mxu0 %v1426
        %1772 = vmatprep.subr.bf16.mxu0 %v1423
        %1773 = vmatpush1.bf16.msra.mxu0 %v1422
        %1774 = vmatprep.subr.bf16.mxu0 0
        %1775 = vmatpush2.bf16.msra.mxu0 0
        %1776 = vmatprep.subr.bf16.mxu0 0
        %1777 = vmatpush2.bf16.msra.mxu0 0
        %1778 = vmatprep.subr.bf16.mxu0 0
        %1779 = vmatpush2.bf16.msra.mxu0 0
        %1780 = vmatprep.subr.bf16.mxu0 0
        %1781 = vmatpush2.bf16.msra.mxu0 0
        %1782 = vmatprep.subr.bf16.mxu0 0
        %1783 = vmatpush2.bf16.msra.mxu0 0
        %1784 = vmatprep.subr.bf16.mxu0 0
        %1785 = vmatpush2.bf16.msra.mxu0 0
        %1786 = vmatprep.subr.bf16.mxu0 0
        %1787 = vmatpush2.bf16.msra.mxu0 0
        %1788 = vmatprep.subr.bf16.mxu0 0
        %1789 = vmatpush2.bf16.msra.mxu0 0
        %1790 = vmatprep.mubr.bf16.mxu0 0
        %1791 = vmatmul.mubr.bf16.gmra.mxu0 %v1756
        %v1792 = vpop.f32.mrf.mxu0
        %v1793 = vadd.f32 0.0, %v1792
        %v1794 = vpop.f32.mrf.mxu0
        %v1795 = vadd.f32 0.0, %v1794
        %v1796 = vpop.f32.mrf.mxu0
        %v1797 = vpop.f32.mrf.mxu0
        %1798 = vdwg.mxu0
        %1799 = vmatprep.subr.bf16.mxu0 %v1453
        %1800 = vmatpush1.bf16.msra.mxu0 %v1452
        %1801 = vmatprep.subr.bf16.mxu0 %v1449
        %1802 = vmatpush1.bf16.msra.mxu0 %v1448
        %1803 = vmatprep.subr.bf16.mxu0 %v1445
        %1804 = vmatpush1.bf16.msra.mxu0 %v1444
        %1805 = vmatprep.subr.bf16.mxu0 %v1441
        %1806 = vmatpush1.bf16.msra.mxu0 %v1440
        %1807 = vmatprep.subr.bf16.mxu0 %v1437
        %1808 = vmatpush1.bf16.msra.mxu0 %v1436
        %1809 = vmatprep.subr.bf16.mxu0 %v1433
        %1810 = vmatpush1.bf16.msra.mxu0 %v1432
        %1811 = vmatprep.subr.bf16.mxu0 %v1429
        %1812 = vmatpush1.bf16.msra.mxu0 %v1428
        %1813 = vmatprep.subr.bf16.mxu0 %v1425
        %1814 = vmatpush1.bf16.msra.mxu0 %v1424
        %1815 = vmatprep.subr.bf16.mxu0 0
        %1816 = vmatpush2.bf16.msra.mxu0 0
        %1817 = vmatprep.subr.bf16.mxu0 0
        %1818 = vmatpush2.bf16.msra.mxu0 0
        %1819 = vmatprep.subr.bf16.mxu0 0
        %1820 = vmatpush2.bf16.msra.mxu0 0
        %1821 = vmatprep.subr.bf16.mxu0 0
        %1822 = vmatpush2.bf16.msra.mxu0 0
        %1823 = vmatprep.subr.bf16.mxu0 0
        %1824 = vmatpush2.bf16.msra.mxu0 0
        %1825 = vmatprep.subr.bf16.mxu0 0
        %1826 = vmatpush2.bf16.msra.mxu0 0
        %1827 = vmatprep.subr.bf16.mxu0 0
        %1828 = vmatpush2.bf16.msra.mxu0 0
        %1829 = vmatprep.subr.bf16.mxu0 0
        %1830 = vmatpush2.bf16.msra.mxu0 0
        %1831 = vmatprep.mubr.bf16.mxu0 0
        %1832 = vmatmul.mubr.bf16.gmra.mxu0 %v1756
        %v1833 = vpop.f32.mrf.mxu0
        %v1834 = vadd.f32 0.0, %v1833
        %v1835 = vpop.f32.mrf.mxu0
        %v1836 = vadd.f32 0.0, %v1835
        %v1837 = vpop.f32.mrf.mxu0
        %v1838 = vpop.f32.mrf.mxu0
        %1839 = vdwg.mxu0
        %v1844 = vrot.slane %v1793, 2
        %v1845 = vrot.slane %v1795, 2
        %v1846 = vrot.slane %v1834, 2
        %v1847 = vrot.slane %v1836, 2
        %v1852 = vadd.f32 %v1045, %v1844
        %v1853 = vadd.f32 %v1046, %v1845
        %v1854 = vadd.f32 %v1047, %v1846
        %v1855 = vadd.f32 %v1048, %v1847
        %v1856 = vxor.u32 %v1852, 2147483648
        %v1857 = vxor.u32 %v1853, 2147483648
        %v1858 = vxor.u32 %v1854, 2147483648
        %v1859 = vmul.f32 %v1856, 1.442695
        %v1860 = vpow.pop %v1859
        %v1861 = vmul.f32 %v1857, 1.442695
        %v1862 = vpow.pop %v1861
        %v1863 = vmul.f32 %v1858, 1.442695
        %v1864 = vpow.pop %v1863
        %v1865 = vadd.f32 %v1860, 1.0
        %v1866 = vadd.f32 %v1862, 1.0
        %v1867 = vadd.f32 %v1864, 1.0
        %v1868 = vrcp.pop %v1865
        %v1869 = vmul.f32 1.0, %v1868
        %v1870 = vrcp.pop %v1866
        %v1871 = vmul.f32 1.0, %v1870
        %v1872 = vrcp.pop %v1867
        %v1873 = vmul.f32 1.0, %v1872
        %v1874 = vtanh.pop %v1855
        %v1876 = vrot.slane %v1613, 1
        %v1878 = vmul.f32 %v1871, %v1876
        %v1879 = vmul.f32 %v1869, %v1874
        %v1880 = vadd.f32 %v1878, %v1879
        %v1881 = vtanh.pop %v1880
        %v1882 = vmul.f32 %v1873, %v1881
        %p1883 = scmp.lt.s32.totalorder %s1615, %s374
        %s1884 = scalar_select %p1883, 1, 0
        %v1885 = vstv %s1884
        %vm1886 = vcmp.eq.s32.totalorder %v1885, 1
        %v1888 = vrot.slane %v1612, 1
        %v1890 = vsel %vm1886, %v1882, %v1888
        %v1891 = vsel %vm1886, %v1880, %v1876
        %v1892 = vsel %vm1886, %v1882, 0.0
        %s1893 = sadd.s32 0, 2
        %s1894 = sadd.s32 0, 5
        %v1895 = vpack.c.bf16 %v1749, %v1749
        %v1897 = vshrl.u32 %v1895, 16
        %1900 = vmatprep.subr.bf16.mxu0 %v1175
        %1901 = vmatpush1.bf16.msra.mxu0 %v1174
        %1902 = vmatprep.subr.bf16.mxu0 %v1171
        %1903 = vmatpush1.bf16.msra.mxu0 %v1170
        %1904 = vmatprep.subr.bf16.mxu0 %v1167
        %1905 = vmatpush1.bf16.msra.mxu0 %v1166
        %1906 = vmatprep.subr.bf16.mxu0 %v1163
        %1907 = vmatpush1.bf16.msra.mxu0 %v1162
        %1908 = vmatprep.subr.bf16.mxu0 %v1159
        %1909 = vmatpush1.bf16.msra.mxu0 %v1158
        %1910 = vmatprep.subr.bf16.mxu0 %v1155
        %1911 = vmatpush1.bf16.msra.mxu0 %v1154
        %1912 = vmatprep.subr.bf16.mxu0 %v1151
        %1913 = vmatpush1.bf16.msra.mxu0 %v1150
        %1914 = vmatprep.subr.bf16.mxu0 %v1147
        %1915 = vmatpush1.bf16.msra.mxu0 %v1146
        %1916 = vmatprep.subr.bf16.mxu0 0
        %1917 = vmatpush2.bf16.msra.mxu0 0
        %1918 = vmatprep.subr.bf16.mxu0 0
        %1919 = vmatpush2.bf16.msra.mxu0 0
        %1920 = vmatprep.subr.bf16.mxu0 0
        %1921 = vmatpush2.bf16.msra.mxu0 0
        %1922 = vmatprep.subr.bf16.mxu0 0
        %1923 = vmatpush2.bf16.msra.mxu0 0
        %1924 = vmatprep.subr.bf16.mxu0 0
        %1925 = vmatpush2.bf16.msra.mxu0 0
        %1926 = vmatprep.subr.bf16.mxu0 0
        %1927 = vmatpush2.bf16.msra.mxu0 0
        %1928 = vmatprep.subr.bf16.mxu0 0
        %1929 = vmatpush2.bf16.msra.mxu0 0
        %1930 = vmatprep.subr.bf16.mxu0 0
        %1931 = vmatpush2.bf16.msra.mxu0 0
        %1932 = vmatprep.mubr.bf16.mxu0 0
        %1933 = vmatmul.mubr.bf16.gmra.mxu0 %v1897
        %v1934 = vpop.f32.mrf.mxu0
        %v1935 = vadd.f32 0.0, %v1934
        %v1936 = vpop.f32.mrf.mxu0
        %v1937 = vadd.f32 0.0, %v1936
        %v1938 = vpop.f32.mrf.mxu0
        %v1939 = vpop.f32.mrf.mxu0
        %1940 = vdwg.mxu0
        %1941 = vmatprep.subr.bf16.mxu0 %v1177
        %1942 = vmatpush1.bf16.msra.mxu0 %v1176
        %1943 = vmatprep.subr.bf16.mxu0 %v1173
        %1944 = vmatpush1.bf16.msra.mxu0 %v1172
        %1945 = vmatprep.subr.bf16.mxu0 %v1169
        %1946 = vmatpush1.bf16.msra.mxu0 %v1168
        %1947 = vmatprep.subr.bf16.mxu0 %v1165
        %1948 = vmatpush1.bf16.msra.mxu0 %v1164
        %1949 = vmatprep.subr.bf16.mxu0 %v1161
        %1950 = vmatpush1.bf16.msra.mxu0 %v1160
        %1951 = vmatprep.subr.bf16.mxu0 %v1157
        %1952 = vmatpush1.bf16.msra.mxu0 %v1156
        %1953 = vmatprep.subr.bf16.mxu0 %v1153
        %1954 = vmatpush1.bf16.msra.mxu0 %v1152
        %1955 = vmatprep.subr.bf16.mxu0 %v1149
        %1956 = vmatpush1.bf16.msra.mxu0 %v1148
        %1957 = vmatprep.subr.bf16.mxu0 0
        %1958 = vmatpush2.bf16.msra.mxu0 0
        %1959 = vmatprep.subr.bf16.mxu0 0
        %1960 = vmatpush2.bf16.msra.mxu0 0
        %1961 = vmatprep.subr.bf16.mxu0 0
        %1962 = vmatpush2.bf16.msra.mxu0 0
        %1963 = vmatprep.subr.bf16.mxu0 0
        %1964 = vmatpush2.bf16.msra.mxu0 0
        %1965 = vmatprep.subr.bf16.mxu0 0
        %1966 = vmatpush2.bf16.msra.mxu0 0
        %1967 = vmatprep.subr.bf16.mxu0 0
        %1968 = vmatpush2.bf16.msra.mxu0 0
        %1969 = vmatprep.subr.bf16.mxu0 0
        %1970 = vmatpush2.bf16.msra.mxu0 0
        %1971 = vmatprep.subr.bf16.mxu0 0
        %1972 = vmatpush2.bf16.msra.mxu0 0
        %1973 = vmatprep.mubr.bf16.mxu0 0
        %1974 = vmatmul.mubr.bf16.gmra.mxu0 %v1897
        %v1975 = vpop.f32.mrf.mxu0
        %v1976 = vadd.f32 0.0, %v1975
        %v1977 = vpop.f32.mrf.mxu0
        %v1978 = vadd.f32 0.0, %v1977
        %v1979 = vpop.f32.mrf.mxu0
        %v1980 = vpop.f32.mrf.mxu0
        %1981 = vdwg.mxu0
        %v1986 = vrot.slane %v1935, 6
        %v1987 = vrot.slane %v1937, 6
        %v1988 = vrot.slane %v1976, 6
        %v1989 = vrot.slane %v1978, 6
        %v1994 = vadd.f32 %v1041, %v1986
        %v1995 = vadd.f32 %v1042, %v1987
        %v1996 = vadd.f32 %v1043, %v1988
        %v1997 = vadd.f32 %v1044, %v1989
        %v1998 = vxor.u32 %v1994, 2147483648
        %v1999 = vxor.u32 %v1995, 2147483648
        %v2000 = vxor.u32 %v1996, 2147483648
        %v2001 = vmul.f32 %v1998, 1.442695
        %v2002 = vpow.pop %v2001
        %v2003 = vmul.f32 %v1999, 1.442695
        %v2004 = vpow.pop %v2003
        %v2005 = vmul.f32 %v2000, 1.442695
        %v2006 = vpow.pop %v2005
        %v2007 = vadd.f32 %v2002, 1.0
        %v2008 = vadd.f32 %v2004, 1.0
        %v2009 = vadd.f32 %v2006, 1.0
        %v2010 = vrcp.pop %v2007
        %v2011 = vmul.f32 1.0, %v2010
        %v2012 = vrcp.pop %v2008
        %v2013 = vmul.f32 1.0, %v2012
        %v2014 = vrcp.pop %v2009
        %v2015 = vmul.f32 1.0, %v2014
        %v2016 = vtanh.pop %v1997
        %v2018 = vrot.slane %v1750, 7
        %v2020 = vmul.f32 %v2013, %v2018
        %v2021 = vmul.f32 %v2011, %v2016
        %v2022 = vadd.f32 %v2020, %v2021
        %v2023 = vtanh.pop %v2022
        %v2024 = vmul.f32 %v2015, %v2023
        %p2025 = scmp.lt.s32.totalorder %s1893, %s374
        %s2026 = scalar_select %p2025, 1, 0
        %v2027 = vstv %s2026
        %vm2028 = vcmp.eq.s32.totalorder %v2027, 1
        %v2030 = vrot.slane %v1749, 7
        %v2032 = vsel %vm2028, %v2024, %v2030
        %v2033 = vsel %vm2028, %v2022, %v2018
        %v2034 = vsel %vm2028, %v2024, 0.0
        %v2035 = vpack.c.bf16 %v1890, %v1890
        %v2037 = vrot.slane %v2035, 3
        %2039 = vmatprep.subr.bf16.mxu0 %v1451
        %2040 = vmatpush1.bf16.msra.mxu0 %v1450
        %2041 = vmatprep.subr.bf16.mxu0 %v1447
        %2042 = vmatpush1.bf16.msra.mxu0 %v1446
        %2043 = vmatprep.subr.bf16.mxu0 %v1443
        %2044 = vmatpush1.bf16.msra.mxu0 %v1442
        %2045 = vmatprep.subr.bf16.mxu0 %v1439
        %2046 = vmatpush1.bf16.msra.mxu0 %v1438
        %2047 = vmatprep.subr.bf16.mxu0 %v1435
        %2048 = vmatpush1.bf16.msra.mxu0 %v1434
        %2049 = vmatprep.subr.bf16.mxu0 %v1431
        %2050 = vmatpush1.bf16.msra.mxu0 %v1430
        %2051 = vmatprep.subr.bf16.mxu0 %v1427
        %2052 = vmatpush1.bf16.msra.mxu0 %v1426
        %2053 = vmatprep.subr.bf16.mxu0 %v1423
        %2054 = vmatpush1.bf16.msra.mxu0 %v1422
        %2055 = vmatprep.subr.bf16.mxu0 0
        %2056 = vmatpush2.bf16.msra.mxu0 0
        %2057 = vmatprep.subr.bf16.mxu0 0
        %2058 = vmatpush2.bf16.msra.mxu0 0
        %2059 = vmatprep.subr.bf16.mxu0 0
        %2060 = vmatpush2.bf16.msra.mxu0 0
        %2061 = vmatprep.subr.bf16.mxu0 0
        %2062 = vmatpush2.bf16.msra.mxu0 0
        %2063 = vmatprep.subr.bf16.mxu0 0
        %2064 = vmatpush2.bf16.msra.mxu0 0
        %2065 = vmatprep.subr.bf16.mxu0 0
        %2066 = vmatpush2.bf16.msra.mxu0 0
        %2067 = vmatprep.subr.bf16.mxu0 0
        %2068 = vmatpush2.bf16.msra.mxu0 0
        %2069 = vmatprep.subr.bf16.mxu0 0
        %2070 = vmatpush2.bf16.msra.mxu0 0
        %2071 = vmatprep.mubr.bf16.mxu0 0
        %2072 = vmatmul.mubr.bf16.gmra.mxu0 %v2037
        %v2073 = vpop.f32.mrf.mxu0
        %v2074 = vadd.f32 0.0, %v2073
        %v2075 = vpop.f32.mrf.mxu0
        %v2076 = vadd.f32 0.0, %v2075
        %v2077 = vpop.f32.mrf.mxu0
        %v2078 = vpop.f32.mrf.mxu0
        %2079 = vdwg.mxu0
        %2080 = vmatprep.subr.bf16.mxu0 %v1453
        %2081 = vmatpush1.bf16.msra.mxu0 %v1452
        %2082 = vmatprep.subr.bf16.mxu0 %v1449
        %2083 = vmatpush1.bf16.msra.mxu0 %v1448
        %2084 = vmatprep.subr.bf16.mxu0 %v1445
        %2085 = vmatpush1.bf16.msra.mxu0 %v1444
        %2086 = vmatprep.subr.bf16.mxu0 %v1441
        %2087 = vmatpush1.bf16.msra.mxu0 %v1440
        %2088 = vmatprep.subr.bf16.mxu0 %v1437
        %2089 = vmatpush1.bf16.msra.mxu0 %v1436
        %2090 = vmatprep.subr.bf16.mxu0 %v1433
        %2091 = vmatpush1.bf16.msra.mxu0 %v1432
        %2092 = vmatprep.subr.bf16.mxu0 %v1429
        %2093 = vmatpush1.bf16.msra.mxu0 %v1428
        %2094 = vmatprep.subr.bf16.mxu0 %v1425
        %2095 = vmatpush1.bf16.msra.mxu0 %v1424
        %2096 = vmatprep.subr.bf16.mxu0 0
        %2097 = vmatpush2.bf16.msra.mxu0 0
        %2098 = vmatprep.subr.bf16.mxu0 0
        %2099 = vmatpush2.bf16.msra.mxu0 0
        %2100 = vmatprep.subr.bf16.mxu0 0
        %2101 = vmatpush2.bf16.msra.mxu0 0
        %2102 = vmatprep.subr.bf16.mxu0 0
        %2103 = vmatpush2.bf16.msra.mxu0 0
        %2104 = vmatprep.subr.bf16.mxu0 0
        %2105 = vmatpush2.bf16.msra.mxu0 0
        %2106 = vmatprep.subr.bf16.mxu0 0
        %2107 = vmatpush2.bf16.msra.mxu0 0
        %2108 = vmatprep.subr.bf16.mxu0 0
        %2109 = vmatpush2.bf16.msra.mxu0 0
        %2110 = vmatprep.subr.bf16.mxu0 0
        %2111 = vmatpush2.bf16.msra.mxu0 0
        %2112 = vmatprep.mubr.bf16.mxu0 0
        %2113 = vmatmul.mubr.bf16.gmra.mxu0 %v2037
        %v2114 = vpop.f32.mrf.mxu0
        %v2115 = vadd.f32 0.0, %v2114
        %v2116 = vpop.f32.mrf.mxu0
        %v2117 = vadd.f32 0.0, %v2116
        %v2118 = vpop.f32.mrf.mxu0
        %v2119 = vpop.f32.mrf.mxu0
        %2120 = vdwg.mxu0
        %v2125 = vrot.slane %v2074, 3
        %v2126 = vrot.slane %v2076, 3
        %v2127 = vrot.slane %v2115, 3
        %v2128 = vrot.slane %v2117, 3
        %v2133 = vadd.f32 %v1045, %v2125
        %v2134 = vadd.f32 %v1046, %v2126
        %v2135 = vadd.f32 %v1047, %v2127
        %v2136 = vadd.f32 %v1048, %v2128
        %v2137 = vxor.u32 %v2133, 2147483648
        %v2138 = vxor.u32 %v2134, 2147483648
        %v2139 = vxor.u32 %v2135, 2147483648
        %v2140 = vmul.f32 %v2137, 1.442695
        %v2141 = vpow.pop %v2140
        %v2142 = vmul.f32 %v2138, 1.442695
        %v2143 = vpow.pop %v2142
        %v2144 = vmul.f32 %v2139, 1.442695
        %v2145 = vpow.pop %v2144
        %v2146 = vadd.f32 %v2141, 1.0
        %v2147 = vadd.f32 %v2143, 1.0
        %v2148 = vadd.f32 %v2145, 1.0
        %v2149 = vrcp.pop %v2146
        %v2150 = vmul.f32 1.0, %v2149
        %v2151 = vrcp.pop %v2147
        %v2152 = vmul.f32 1.0, %v2151
        %v2153 = vrcp.pop %v2148
        %v2154 = vmul.f32 1.0, %v2153
        %v2155 = vtanh.pop %v2136
        %v2157 = vrot.slane %v1891, 1
        %v2159 = vmul.f32 %v2152, %v2157
        %v2160 = vmul.f32 %v2150, %v2155
        %v2161 = vadd.f32 %v2159, %v2160
        %v2162 = vtanh.pop %v2161
        %v2163 = vmul.f32 %v2154, %v2162
        %p2164 = scmp.lt.s32.totalorder %s1894, %s374
        %s2165 = scalar_select %p2164, 1, 0
        %v2166 = vstv %s2165
        %vm2167 = vcmp.eq.s32.totalorder %v2166, 1
        %v2169 = vrot.slane %v1890, 1
        %v2171 = vsel %vm2167, %v2163, %v2169
        %v2172 = vsel %vm2167, %v2161, %v2157
        %v2173 = vsel %vm2167, %v2163, 0.0
        %s2174 = sadd.s32 0, 3
        %s2175 = sadd.s32 0, 4
        %v2176 = vpack.c.bf16 %v2032, %v2032
        %v2178 = vrot.slane %v2176, 1
        %2180 = vmatprep.subr.bf16.mxu0 %v1175
        %2181 = vmatpush1.bf16.msra.mxu0 %v1174
        %2182 = vmatprep.subr.bf16.mxu0 %v1171
        %2183 = vmatpush1.bf16.msra.mxu0 %v1170
        %2184 = vmatprep.subr.bf16.mxu0 %v1167
        %2185 = vmatpush1.bf16.msra.mxu0 %v1166
        %2186 = vmatprep.subr.bf16.mxu0 %v1163
        %2187 = vmatpush1.bf16.msra.mxu0 %v1162
        %2188 = vmatprep.subr.bf16.mxu0 %v1159
        %2189 = vmatpush1.bf16.msra.mxu0 %v1158
        %2190 = vmatprep.subr.bf16.mxu0 %v1155
        %2191 = vmatpush1.bf16.msra.mxu0 %v1154
        %2192 = vmatprep.subr.bf16.mxu0 %v1151
        %2193 = vmatpush1.bf16.msra.mxu0 %v1150
        %2194 = vmatprep.subr.bf16.mxu0 %v1147
        %2195 = vmatpush1.bf16.msra.mxu0 %v1146
        %2196 = vmatprep.subr.bf16.mxu0 0
        %2197 = vmatpush2.bf16.msra.mxu0 0
        %2198 = vmatprep.subr.bf16.mxu0 0
        %2199 = vmatpush2.bf16.msra.mxu0 0
        %2200 = vmatprep.subr.bf16.mxu0 0
        %2201 = vmatpush2.bf16.msra.mxu0 0
        %2202 = vmatprep.subr.bf16.mxu0 0
        %2203 = vmatpush2.bf16.msra.mxu0 0
        %2204 = vmatprep.subr.bf16.mxu0 0
        %2205 = vmatpush2.bf16.msra.mxu0 0
        %2206 = vmatprep.subr.bf16.mxu0 0
        %2207 = vmatpush2.bf16.msra.mxu0 0
        %2208 = vmatprep.subr.bf16.mxu0 0
        %2209 = vmatpush2.bf16.msra.mxu0 0
        %2210 = vmatprep.subr.bf16.mxu0 0
        %2211 = vmatpush2.bf16.msra.mxu0 0
        %2212 = vmatprep.mubr.bf16.mxu0 0
        %2213 = vmatmul.mubr.bf16.gmra.mxu0 %v2178
        %v2214 = vpop.f32.mrf.mxu0
        %v2215 = vadd.f32 0.0, %v2214
        %v2216 = vpop.f32.mrf.mxu0
        %v2217 = vadd.f32 0.0, %v2216
        %v2218 = vpop.f32.mrf.mxu0
        %v2219 = vpop.f32.mrf.mxu0
        %2220 = vdwg.mxu0
        %2221 = vmatprep.subr.bf16.mxu0 %v1177
        %2222 = vmatpush1.bf16.msra.mxu0 %v1176
        %2223 = vmatprep.subr.bf16.mxu0 %v1173
        %2224 = vmatpush1.bf16.msra.mxu0 %v1172
        %2225 = vmatprep.subr.bf16.mxu0 %v1169
        %2226 = vmatpush1.bf16.msra.mxu0 %v1168
        %2227 = vmatprep.subr.bf16.mxu0 %v1165
        %2228 = vmatpush1.bf16.msra.mxu0 %v1164
        %2229 = vmatprep.subr.bf16.mxu0 %v1161
        %2230 = vmatpush1.bf16.msra.mxu0 %v1160
        %2231 = vmatprep.subr.bf16.mxu0 %v1157
        %2232 = vmatpush1.bf16.msra.mxu0 %v1156
        %2233 = vmatprep.subr.bf16.mxu0 %v1153
        %2234 = vmatpush1.bf16.msra.mxu0 %v1152
        %2235 = vmatprep.subr.bf16.mxu0 %v1149
        %2236 = vmatpush1.bf16.msra.mxu0 %v1148
        %2237 = vmatprep.subr.bf16.mxu0 0
        %2238 = vmatpush2.bf16.msra.mxu0 0
        %2239 = vmatprep.subr.bf16.mxu0 0
        %2240 = vmatpush2.bf16.msra.mxu0 0
        %2241 = vmatprep.subr.bf16.mxu0 0
        %2242 = vmatpush2.bf16.msra.mxu0 0
        %2243 = vmatprep.subr.bf16.mxu0 0
        %2244 = vmatpush2.bf16.msra.mxu0 0
        %2245 = vmatprep.subr.bf16.mxu0 0
        %2246 = vmatpush2.bf16.msra.mxu0 0
        %2247 = vmatprep.subr.bf16.mxu0 0
        %2248 = vmatpush2.bf16.msra.mxu0 0
        %2249 = vmatprep.subr.bf16.mxu0 0
        %2250 = vmatpush2.bf16.msra.mxu0 0
        %2251 = vmatprep.subr.bf16.mxu0 0
        %2252 = vmatpush2.bf16.msra.mxu0 0
        %2253 = vmatprep.mubr.bf16.mxu0 0
        %2254 = vmatmul.mubr.bf16.gmra.mxu0 %v2178
        %v2255 = vpop.f32.mrf.mxu0
        %v2256 = vadd.f32 0.0, %v2255
        %v2257 = vpop.f32.mrf.mxu0
        %v2258 = vadd.f32 0.0, %v2257
        %v2259 = vpop.f32.mrf.mxu0
        %v2260 = vpop.f32.mrf.mxu0
        %2261 = vdwg.mxu0
        %v2266 = vrot.slane %v2215, 5
        %v2267 = vrot.slane %v2217, 5
        %v2268 = vrot.slane %v2256, 5
        %v2269 = vrot.slane %v2258, 5
        %v2274 = vadd.f32 %v1041, %v2266
        %v2275 = vadd.f32 %v1042, %v2267
        %v2276 = vadd.f32 %v1043, %v2268
        %v2277 = vadd.f32 %v1044, %v2269
        %v2278 = vxor.u32 %v2274, 2147483648
        %v2279 = vxor.u32 %v2275, 2147483648
        %v2280 = vxor.u32 %v2276, 2147483648
        %v2281 = vmul.f32 %v2278, 1.442695
        %v2282 = vpow.pop %v2281
        %v2283 = vmul.f32 %v2279, 1.442695
        %v2284 = vpow.pop %v2283
        %v2285 = vmul.f32 %v2280, 1.442695
        %v2286 = vpow.pop %v2285
        %v2287 = vadd.f32 %v2282, 1.0
        %v2288 = vadd.f32 %v2284, 1.0
        %v2289 = vadd.f32 %v2286, 1.0
        %v2290 = vrcp.pop %v2287
        %v2291 = vmul.f32 1.0, %v2290
        %v2292 = vrcp.pop %v2288
        %v2293 = vmul.f32 1.0, %v2292
        %v2294 = vrcp.pop %v2289
        %v2295 = vmul.f32 1.0, %v2294
        %v2296 = vtanh.pop %v2277
        %v2298 = vrot.slane %v2033, 7
        %v2300 = vmul.f32 %v2293, %v2298
        %v2301 = vmul.f32 %v2291, %v2296
        %v2302 = vadd.f32 %v2300, %v2301
        %v2303 = vtanh.pop %v2302
        %v2304 = vmul.f32 %v2295, %v2303
        %p2305 = scmp.lt.s32.totalorder %s2174, %s374
        %s2306 = scalar_select %p2305, 1, 0
        %v2307 = vstv %s2306
        %vm2308 = vcmp.eq.s32.totalorder %v2307, 1
        %v2310 = vrot.slane %v2032, 7
        %v2312 = vsel %vm2308, %v2304, %v2310
        %v2313 = vsel %vm2308, %v2302, %v2298
        %v2314 = vsel %vm2308, %v2304, 0.0
        %v2315 = vpack.c.bf16 %v2171, %v2171
        %v2317 = vshrl.u32 %v2315, 16
        %v2319 = vrot.slane %v2317, 2
        %2321 = vmatprep.subr.bf16.mxu0 %v1451
        %2322 = vmatpush1.bf16.msra.mxu0 %v1450
        %2323 = vmatprep.subr.bf16.mxu0 %v1447
        %2324 = vmatpush1.bf16.msra.mxu0 %v1446
        %2325 = vmatprep.subr.bf16.mxu0 %v1443
        %2326 = vmatpush1.bf16.msra.mxu0 %v1442
        %2327 = vmatprep.subr.bf16.mxu0 %v1439
        %2328 = vmatpush1.bf16.msra.mxu0 %v1438
        %2329 = vmatprep.subr.bf16.mxu0 %v1435
        %2330 = vmatpush1.bf16.msra.mxu0 %v1434
        %2331 = vmatprep.subr.bf16.mxu0 %v1431
        %2332 = vmatpush1.bf16.msra.mxu0 %v1430
        %2333 = vmatprep.subr.bf16.mxu0 %v1427
        %2334 = vmatpush1.bf16.msra.mxu0 %v1426
        %2335 = vmatprep.subr.bf16.mxu0 %v1423
        %2336 = vmatpush1.bf16.msra.mxu0 %v1422
        %2337 = vmatprep.subr.bf16.mxu0 0
        %2338 = vmatpush2.bf16.msra.mxu0 0
        %2339 = vmatprep.subr.bf16.mxu0 0
        %2340 = vmatpush2.bf16.msra.mxu0 0
        %2341 = vmatprep.subr.bf16.mxu0 0
        %2342 = vmatpush2.bf16.msra.mxu0 0
        %2343 = vmatprep.subr.bf16.mxu0 0
        %2344 = vmatpush2.bf16.msra.mxu0 0
        %2345 = vmatprep.subr.bf16.mxu0 0
        %2346 = vmatpush2.bf16.msra.mxu0 0
        %2347 = vmatprep.subr.bf16.mxu0 0
        %2348 = vmatpush2.bf16.msra.mxu0 0
        %2349 = vmatprep.subr.bf16.mxu0 0
        %2350 = vmatpush2.bf16.msra.mxu0 0
        %2351 = vmatprep.subr.bf16.mxu0 0
        %2352 = vmatpush2.bf16.msra.mxu0 0
        %2353 = vmatprep.mubr.bf16.mxu0 0
        %2354 = vmatmul.mubr.bf16.gmra.mxu0 %v2319
        %v2355 = vpop.f32.mrf.mxu0
        %v2356 = vadd.f32 0.0, %v2355
        %v2357 = vpop.f32.mrf.mxu0
        %v2358 = vadd.f32 0.0, %v2357
        %v2359 = vpop.f32.mrf.mxu0
        %v2360 = vpop.f32.mrf.mxu0
        %2361 = vdwg.mxu0
        %2362 = vmatprep.subr.bf16.mxu0 %v1453
        %2363 = vmatpush1.bf16.msra.mxu0 %v1452
        %2364 = vmatprep.subr.bf16.mxu0 %v1449
        %2365 = vmatpush1.bf16.msra.mxu0 %v1448
        %2366 = vmatprep.subr.bf16.mxu0 %v1445
        %2367 = vmatpush1.bf16.msra.mxu0 %v1444
        %2368 = vmatprep.subr.bf16.mxu0 %v1441
        %2369 = vmatpush1.bf16.msra.mxu0 %v1440
        %2370 = vmatprep.subr.bf16.mxu0 %v1437
        %2371 = vmatpush1.bf16.msra.mxu0 %v1436
        %2372 = vmatprep.subr.bf16.mxu0 %v1433
        %2373 = vmatpush1.bf16.msra.mxu0 %v1432
        %2374 = vmatprep.subr.bf16.mxu0 %v1429
        %2375 = vmatpush1.bf16.msra.mxu0 %v1428
        %2376 = vmatprep.subr.bf16.mxu0 %v1425
        %2377 = vmatpush1.bf16.msra.mxu0 %v1424
        %2378 = vmatprep.subr.bf16.mxu0 0
        %2379 = vmatpush2.bf16.msra.mxu0 0
        %2380 = vmatprep.subr.bf16.mxu0 0
        %2381 = vmatpush2.bf16.msra.mxu0 0
        %2382 = vmatprep.subr.bf16.mxu0 0
        %2383 = vmatpush2.bf16.msra.mxu0 0
        %2384 = vmatprep.subr.bf16.mxu0 0
        %2385 = vmatpush2.bf16.msra.mxu0 0
        %2386 = vmatprep.subr.bf16.mxu0 0
        %2387 = vmatpush2.bf16.msra.mxu0 0
        %2388 = vmatprep.subr.bf16.mxu0 0
        %2389 = vmatpush2.bf16.msra.mxu0 0
        %2390 = vmatprep.subr.bf16.mxu0 0
        %2391 = vmatpush2.bf16.msra.mxu0 0
        %2392 = vmatprep.subr.bf16.mxu0 0
        %2393 = vmatpush2.bf16.msra.mxu0 0
        %2394 = vmatprep.mubr.bf16.mxu0 0
        %2395 = vmatmul.mubr.bf16.gmra.mxu0 %v2319
        %v2396 = vpop.f32.mrf.mxu0
        %v2397 = vadd.f32 0.0, %v2396
        %v2398 = vpop.f32.mrf.mxu0
        %v2399 = vadd.f32 0.0, %v2398
        %v2400 = vpop.f32.mrf.mxu0
        %v2401 = vpop.f32.mrf.mxu0
        %2402 = vdwg.mxu0
        %v2407 = vrot.slane %v2356, 4
        %v2408 = vrot.slane %v2358, 4
        %v2409 = vrot.slane %v2397, 4
        %v2410 = vrot.slane %v2399, 4
        %v2415 = vadd.f32 %v1045, %v2407
        %v2416 = vadd.f32 %v1046, %v2408
        %v2417 = vadd.f32 %v1047, %v2409
        %v2418 = vadd.f32 %v1048, %v2410
        %v2419 = vxor.u32 %v2415, 2147483648
        %v2420 = vxor.u32 %v2416, 2147483648
        %v2421 = vxor.u32 %v2417, 2147483648
        %v2422 = vmul.f32 %v2419, 1.442695
        %v2423 = vpow.pop %v2422
        %v2424 = vmul.f32 %v2420, 1.442695
        %v2425 = vpow.pop %v2424
        %v2426 = vmul.f32 %v2421, 1.442695
        %v2427 = vpow.pop %v2426
        %v2428 = vadd.f32 %v2423, 1.0
        %v2429 = vadd.f32 %v2425, 1.0
        %v2430 = vadd.f32 %v2427, 1.0
        %v2431 = vrcp.pop %v2428
        %v2432 = vmul.f32 1.0, %v2431
        %v2433 = vrcp.pop %v2429
        %v2434 = vmul.f32 1.0, %v2433
        %v2435 = vrcp.pop %v2430
        %v2436 = vmul.f32 1.0, %v2435
        %v2437 = vtanh.pop %v2418
        %v2439 = vrot.slane %v2172, 1
        %v2441 = vmul.f32 %v2434, %v2439
        %v2442 = vmul.f32 %v2432, %v2437
        %v2443 = vadd.f32 %v2441, %v2442
        %v2444 = vtanh.pop %v2443
        %v2445 = vmul.f32 %v2436, %v2444
        %p2446 = scmp.lt.s32.totalorder %s2175, %s374
        %s2447 = scalar_select %p2446, 1, 0
        %v2448 = vstv %s2447
        %vm2449 = vcmp.eq.s32.totalorder %v2448, 1
        %v2451 = vrot.slane %v2171, 1
        %v2453 = vsel %vm2449, %v2445, %v2451
        %v2454 = vsel %vm2449, %v2443, %v2439
        %v2455 = vsel %vm2449, %v2445, 0.0
        %v2456 = vpack.c.bf16 %v2312, %v2312
        %v2458 = vshrl.u32 %v2456, 16
        %v2460 = vrot.slane %v2458, 1
        %2462 = vmatprep.subr.bf16.mxu0 %v1175
        %2463 = vmatpush1.bf16.msra.mxu0 %v1174
        %2464 = vmatprep.subr.bf16.mxu0 %v1171
        %2465 = vmatpush1.bf16.msra.mxu0 %v1170
        %2466 = vmatprep.subr.bf16.mxu0 %v1167
        %2467 = vmatpush1.bf16.msra.mxu0 %v1166
        %2468 = vmatprep.subr.bf16.mxu0 %v1163
        %2469 = vmatpush1.bf16.msra.mxu0 %v1162
        %2470 = vmatprep.subr.bf16.mxu0 %v1159
        %2471 = vmatpush1.bf16.msra.mxu0 %v1158
        %2472 = vmatprep.subr.bf16.mxu0 %v1155
        %2473 = vmatpush1.bf16.msra.mxu0 %v1154
        %2474 = vmatprep.subr.bf16.mxu0 %v1151
        %2475 = vmatpush1.bf16.msra.mxu0 %v1150
        %2476 = vmatprep.subr.bf16.mxu0 %v1147
        %2477 = vmatpush1.bf16.msra.mxu0 %v1146
        %2478 = vmatprep.subr.bf16.mxu0 0
        %2479 = vmatpush2.bf16.msra.mxu0 0
        %2480 = vmatprep.subr.bf16.mxu0 0
        %2481 = vmatpush2.bf16.msra.mxu0 0
        %2482 = vmatprep.subr.bf16.mxu0 0
        %2483 = vmatpush2.bf16.msra.mxu0 0
        %2484 = vmatprep.subr.bf16.mxu0 0
        %2485 = vmatpush2.bf16.msra.mxu0 0
        %2486 = vmatprep.subr.bf16.mxu0 0
        %2487 = vmatpush2.bf16.msra.mxu0 0
        %2488 = vmatprep.subr.bf16.mxu0 0
        %2489 = vmatpush2.bf16.msra.mxu0 0
        %2490 = vmatprep.subr.bf16.mxu0 0
        %2491 = vmatpush2.bf16.msra.mxu0 0
        %2492 = vmatprep.subr.bf16.mxu0 0
        %2493 = vmatpush2.bf16.msra.mxu0 0
        %2494 = vmatprep.mubr.bf16.mxu0 0
        %2495 = vmatmul.mubr.bf16.gmra.mxu0 %v2460
        %v2496 = vpop.f32.mrf.mxu0
        %v2497 = vadd.f32 0.0, %v2496
        %v2498 = vpop.f32.mrf.mxu0
        %v2499 = vadd.f32 0.0, %v2498
        %v2500 = vpop.f32.mrf.mxu0
        %v2501 = vpop.f32.mrf.mxu0
        %2502 = vdwg.mxu0
        %2503 = vmatprep.subr.bf16.mxu0 %v1177
        %2504 = vmatpush1.bf16.msra.mxu0 %v1176
        %2505 = vmatprep.subr.bf16.mxu0 %v1173
        %2506 = vmatpush1.bf16.msra.mxu0 %v1172
        %2507 = vmatprep.subr.bf16.mxu0 %v1169
        %2508 = vmatpush1.bf16.msra.mxu0 %v1168
        %2509 = vmatprep.subr.bf16.mxu0 %v1165
        %2510 = vmatpush1.bf16.msra.mxu0 %v1164
        %2511 = vmatprep.subr.bf16.mxu0 %v1161
        %2512 = vmatpush1.bf16.msra.mxu0 %v1160
        %2513 = vmatprep.subr.bf16.mxu0 %v1157
        %2514 = vmatpush1.bf16.msra.mxu0 %v1156
        %2515 = vmatprep.subr.bf16.mxu0 %v1153
        %2516 = vmatpush1.bf16.msra.mxu0 %v1152
        %2517 = vmatprep.subr.bf16.mxu0 %v1149
        %2518 = vmatpush1.bf16.msra.mxu0 %v1148
        %2519 = vmatprep.subr.bf16.mxu0 0
        %2520 = vmatpush2.bf16.msra.mxu0 0
        %2521 = vmatprep.subr.bf16.mxu0 0
        %2522 = vmatpush2.bf16.msra.mxu0 0
        %2523 = vmatprep.subr.bf16.mxu0 0
        %2524 = vmatpush2.bf16.msra.mxu0 0
        %2525 = vmatprep.subr.bf16.mxu0 0
        %2526 = vmatpush2.bf16.msra.mxu0 0
        %2527 = vmatprep.subr.bf16.mxu0 0
        %2528 = vmatpush2.bf16.msra.mxu0 0
        %2529 = vmatprep.subr.bf16.mxu0 0
        %2530 = vmatpush2.bf16.msra.mxu0 0
        %2531 = vmatprep.subr.bf16.mxu0 0
        %2532 = vmatpush2.bf16.msra.mxu0 0
        %2533 = vmatprep.subr.bf16.mxu0 0
        %2534 = vmatpush2.bf16.msra.mxu0 0
        %2535 = vmatprep.mubr.bf16.mxu0 0
        %2536 = vmatmul.mubr.bf16.gmra.mxu0 %v2460
        %v2537 = vpop.f32.mrf.mxu0
        %v2538 = vadd.f32 0.0, %v2537
        %v2539 = vpop.f32.mrf.mxu0
        %v2540 = vadd.f32 0.0, %v2539
        %v2541 = vpop.f32.mrf.mxu0
        %v2542 = vpop.f32.mrf.mxu0
        %2543 = vdwg.mxu0
        %v2548 = vrot.slane %v2497, 4
        %v2549 = vrot.slane %v2499, 4
        %v2550 = vrot.slane %v2538, 4
        %v2551 = vrot.slane %v2540, 4
        %v2556 = vadd.f32 %v1041, %v2548
        %v2557 = vadd.f32 %v1042, %v2549
        %v2558 = vadd.f32 %v1043, %v2550
        %v2559 = vadd.f32 %v1044, %v2551
        %v2560 = vxor.u32 %v2556, 2147483648
        %v2561 = vxor.u32 %v2557, 2147483648
        %v2562 = vxor.u32 %v2558, 2147483648
        %v2563 = vmul.f32 %v2560, 1.442695
        %v2564 = vpow.pop %v2563
        %v2565 = vmul.f32 %v2561, 1.442695
        %v2566 = vpow.pop %v2565
        %v2567 = vmul.f32 %v2562, 1.442695
        %v2568 = vpow.pop %v2567
        %v2569 = vadd.f32 %v2564, 1.0
        %v2570 = vadd.f32 %v2566, 1.0
        %v2571 = vadd.f32 %v2568, 1.0
        %v2572 = vrcp.pop %v2569
        %v2573 = vmul.f32 1.0, %v2572
        %v2574 = vrcp.pop %v2570
        %v2575 = vmul.f32 1.0, %v2574
        %v2576 = vrcp.pop %v2571
        %v2577 = vmul.f32 1.0, %v2576
        %v2578 = vtanh.pop %v2559
        %v2580 = vrot.slane %v2313, 7
        %v2582 = vmul.f32 %v2575, %v2580
        %v2583 = vmul.f32 %v2573, %v2578
        %v2584 = vadd.f32 %v2582, %v2583
        %v2585 = vtanh.pop %v2584
        %v2586 = vmul.f32 %v2577, %v2585
        %v2588 = vrot.slane %v2312, 7
        %v2590 = vsel %vm2449, %v2586, %v2588
        %v2591 = vsel %vm2449, %v2584, %v2580
        %v2592 = vsel %vm2449, %v2586, 0.0
        %v2593 = vpack.c.bf16 %v2453, %v2453
        %v2595 = vrot.slane %v2593, 2
        %2597 = vmatprep.subr.bf16.mxu0 %v1451
        %2598 = vmatpush1.bf16.msra.mxu0 %v1450
        %2599 = vmatprep.subr.bf16.mxu0 %v1447
        %2600 = vmatpush1.bf16.msra.mxu0 %v1446
        %2601 = vmatprep.subr.bf16.mxu0 %v1443
        %2602 = vmatpush1.bf16.msra.mxu0 %v1442
        %2603 = vmatprep.subr.bf16.mxu0 %v1439
        %2604 = vmatpush1.bf16.msra.mxu0 %v1438
        %2605 = vmatprep.subr.bf16.mxu0 %v1435
        %2606 = vmatpush1.bf16.msra.mxu0 %v1434
        %2607 = vmatprep.subr.bf16.mxu0 %v1431
        %2608 = vmatpush1.bf16.msra.mxu0 %v1430
        %2609 = vmatprep.subr.bf16.mxu0 %v1427
        %2610 = vmatpush1.bf16.msra.mxu0 %v1426
        %2611 = vmatprep.subr.bf16.mxu0 %v1423
        %2612 = vmatpush1.bf16.msra.mxu0 %v1422
        %2613 = vmatprep.subr.bf16.mxu0 0
        %2614 = vmatpush2.bf16.msra.mxu0 0
        %2615 = vmatprep.subr.bf16.mxu0 0
        %2616 = vmatpush2.bf16.msra.mxu0 0
        %2617 = vmatprep.subr.bf16.mxu0 0
        %2618 = vmatpush2.bf16.msra.mxu0 0
        %2619 = vmatprep.subr.bf16.mxu0 0
        %2620 = vmatpush2.bf16.msra.mxu0 0
        %2621 = vmatprep.subr.bf16.mxu0 0
        %2622 = vmatpush2.bf16.msra.mxu0 0
        %2623 = vmatprep.subr.bf16.mxu0 0
        %2624 = vmatpush2.bf16.msra.mxu0 0
        %2625 = vmatprep.subr.bf16.mxu0 0
        %2626 = vmatpush2.bf16.msra.mxu0 0
        %2627 = vmatprep.subr.bf16.mxu0 0
        %2628 = vmatpush2.bf16.msra.mxu0 0
        %2629 = vmatprep.mubr.bf16.mxu0 0
        %2630 = vmatmul.mubr.bf16.gmra.mxu0 %v2595
        %v2631 = vpop.f32.mrf.mxu0
        %v2632 = vadd.f32 0.0, %v2631
        %v2633 = vpop.f32.mrf.mxu0
        %v2634 = vadd.f32 0.0, %v2633
        %v2635 = vpop.f32.mrf.mxu0
        %v2636 = vpop.f32.mrf.mxu0
        %2637 = vdwg.mxu0
        %2638 = vmatprep.subr.bf16.mxu0 %v1453
        %2639 = vmatpush1.bf16.msra.mxu0 %v1452
        %2640 = vmatprep.subr.bf16.mxu0 %v1449
        %2641 = vmatpush1.bf16.msra.mxu0 %v1448
        %2642 = vmatprep.subr.bf16.mxu0 %v1445
        %2643 = vmatpush1.bf16.msra.mxu0 %v1444
        %2644 = vmatprep.subr.bf16.mxu0 %v1441
        %2645 = vmatpush1.bf16.msra.mxu0 %v1440
        %2646 = vmatprep.subr.bf16.mxu0 %v1437
        %2647 = vmatpush1.bf16.msra.mxu0 %v1436
        %2648 = vmatprep.subr.bf16.mxu0 %v1433
        %2649 = vmatpush1.bf16.msra.mxu0 %v1432
        %2650 = vmatprep.subr.bf16.mxu0 %v1429
        %2651 = vmatpush1.bf16.msra.mxu0 %v1428
        %2652 = vmatprep.subr.bf16.mxu0 %v1425
        %2653 = vmatpush1.bf16.msra.mxu0 %v1424
        %2654 = vmatprep.subr.bf16.mxu0 0
        %2655 = vmatpush2.bf16.msra.mxu0 0
        %2656 = vmatprep.subr.bf16.mxu0 0
        %2657 = vmatpush2.bf16.msra.mxu0 0
        %2658 = vmatprep.subr.bf16.mxu0 0
        %2659 = vmatpush2.bf16.msra.mxu0 0
        %2660 = vmatprep.subr.bf16.mxu0 0
        %2661 = vmatpush2.bf16.msra.mxu0 0
        %2662 = vmatprep.subr.bf16.mxu0 0
        %2663 = vmatpush2.bf16.msra.mxu0 0
        %2664 = vmatprep.subr.bf16.mxu0 0
        %2665 = vmatpush2.bf16.msra.mxu0 0
        %2666 = vmatprep.subr.bf16.mxu0 0
        %2667 = vmatpush2.bf16.msra.mxu0 0
        %2668 = vmatprep.subr.bf16.mxu0 0
        %2669 = vmatpush2.bf16.msra.mxu0 0
        %2670 = vmatprep.mubr.bf16.mxu0 0
        %2671 = vmatmul.mubr.bf16.gmra.mxu0 %v2595
        %v2672 = vpop.f32.mrf.mxu0
        %v2673 = vadd.f32 0.0, %v2672
        %v2674 = vpop.f32.mrf.mxu0
        %v2675 = vadd.f32 0.0, %v2674
        %v2676 = vpop.f32.mrf.mxu0
        %v2677 = vpop.f32.mrf.mxu0
        %2678 = vdwg.mxu0
        %v2683 = vrot.slane %v2632, 5
        %v2684 = vrot.slane %v2634, 5
        %v2685 = vrot.slane %v2673, 5
        %v2686 = vrot.slane %v2675, 5
        %v2691 = vadd.f32 %v1045, %v2683
        %v2692 = vadd.f32 %v1046, %v2684
        %v2693 = vadd.f32 %v1047, %v2685
        %v2694 = vadd.f32 %v1048, %v2686
        %v2695 = vxor.u32 %v2691, 2147483648
        %v2696 = vxor.u32 %v2692, 2147483648
        %v2697 = vxor.u32 %v2693, 2147483648
        %v2698 = vmul.f32 %v2695, 1.442695
        %v2699 = vpow.pop %v2698
        %v2700 = vmul.f32 %v2696, 1.442695
        %v2701 = vpow.pop %v2700
        %v2702 = vmul.f32 %v2697, 1.442695
        %v2703 = vpow.pop %v2702
        %v2704 = vadd.f32 %v2699, 1.0
        %v2705 = vadd.f32 %v2701, 1.0
        %v2706 = vadd.f32 %v2703, 1.0
        %v2707 = vrcp.pop %v2704
        %v2708 = vmul.f32 1.0, %v2707
        %v2709 = vrcp.pop %v2705
        %v2710 = vmul.f32 1.0, %v2709
        %v2711 = vrcp.pop %v2706
        %v2712 = vmul.f32 1.0, %v2711
        %v2713 = vtanh.pop %v2694
        %v2715 = vrot.slane %v2454, 1
        %v2717 = vmul.f32 %v2710, %v2715
        %v2718 = vmul.f32 %v2708, %v2713
        %v2719 = vadd.f32 %v2717, %v2718
        %v2720 = vtanh.pop %v2719
        %v2721 = vmul.f32 %v2712, %v2720
        %v2723 = vrot.slane %v2453, 1
        %v2725 = vsel %vm2308, %v2721, %v2723
        %v2726 = vsel %vm2308, %v2719, %v2715
        %v2727 = vsel %vm2308, %v2721, 0.0
        %v2728 = vpack.c.bf16 %v2590, %v2590
        %v2730 = vrot.slane %v2728, 2
        %2732 = vmatprep.subr.bf16.mxu0 %v1175
        %2733 = vmatpush1.bf16.msra.mxu0 %v1174
        %2734 = vmatprep.subr.bf16.mxu0 %v1171
        %2735 = vmatpush1.bf16.msra.mxu0 %v1170
        %2736 = vmatprep.subr.bf16.mxu0 %v1167
        %2737 = vmatpush1.bf16.msra.mxu0 %v1166
        %2738 = vmatprep.subr.bf16.mxu0 %v1163
        %2739 = vmatpush1.bf16.msra.mxu0 %v1162
        %2740 = vmatprep.subr.bf16.mxu0 %v1159
        %2741 = vmatpush1.bf16.msra.mxu0 %v1158
        %2742 = vmatprep.subr.bf16.mxu0 %v1155
        %2743 = vmatpush1.bf16.msra.mxu0 %v1154
        %2744 = vmatprep.subr.bf16.mxu0 %v1151
        %2745 = vmatpush1.bf16.msra.mxu0 %v1150
        %2746 = vmatprep.subr.bf16.mxu0 %v1147
        %2747 = vmatpush1.bf16.msra.mxu0 %v1146
        %2748 = vmatprep.subr.bf16.mxu0 0
        %2749 = vmatpush2.bf16.msra.mxu0 0
        %2750 = vmatprep.subr.bf16.mxu0 0
        %2751 = vmatpush2.bf16.msra.mxu0 0
        %2752 = vmatprep.subr.bf16.mxu0 0
        %2753 = vmatpush2.bf16.msra.mxu0 0
        %2754 = vmatprep.subr.bf16.mxu0 0
        %2755 = vmatpush2.bf16.msra.mxu0 0
        %2756 = vmatprep.subr.bf16.mxu0 0
        %2757 = vmatpush2.bf16.msra.mxu0 0
        %2758 = vmatprep.subr.bf16.mxu0 0
        %2759 = vmatpush2.bf16.msra.mxu0 0
        %2760 = vmatprep.subr.bf16.mxu0 0
        %2761 = vmatpush2.bf16.msra.mxu0 0
        %2762 = vmatprep.subr.bf16.mxu0 0
        %2763 = vmatpush2.bf16.msra.mxu0 0
        %2764 = vmatprep.mubr.bf16.mxu0 0
        %2765 = vmatmul.mubr.bf16.gmra.mxu0 %v2730
        %v2766 = vpop.f32.mrf.mxu0
        %v2767 = vadd.f32 0.0, %v2766
        %v2768 = vpop.f32.mrf.mxu0
        %v2769 = vadd.f32 0.0, %v2768
        %v2770 = vpop.f32.mrf.mxu0
        %v2771 = vpop.f32.mrf.mxu0
        %2772 = vdwg.mxu0
        %2773 = vmatprep.subr.bf16.mxu0 %v1177
        %2774 = vmatpush1.bf16.msra.mxu0 %v1176
        %2775 = vmatprep.subr.bf16.mxu0 %v1173
        %2776 = vmatpush1.bf16.msra.mxu0 %v1172
        %2777 = vmatprep.subr.bf16.mxu0 %v1169
        %2778 = vmatpush1.bf16.msra.mxu0 %v1168
        %2779 = vmatprep.subr.bf16.mxu0 %v1165
        %2780 = vmatpush1.bf16.msra.mxu0 %v1164
        %2781 = vmatprep.subr.bf16.mxu0 %v1161
        %2782 = vmatpush1.bf16.msra.mxu0 %v1160
        %2783 = vmatprep.subr.bf16.mxu0 %v1157
        %2784 = vmatpush1.bf16.msra.mxu0 %v1156
        %2785 = vmatprep.subr.bf16.mxu0 %v1153
        %2786 = vmatpush1.bf16.msra.mxu0 %v1152
        %2787 = vmatprep.subr.bf16.mxu0 %v1149
        %2788 = vmatpush1.bf16.msra.mxu0 %v1148
        %2789 = vmatprep.subr.bf16.mxu0 0
        %2790 = vmatpush2.bf16.msra.mxu0 0
        %2791 = vmatprep.subr.bf16.mxu0 0
        %2792 = vmatpush2.bf16.msra.mxu0 0
        %2793 = vmatprep.subr.bf16.mxu0 0
        %2794 = vmatpush2.bf16.msra.mxu0 0
        %2795 = vmatprep.subr.bf16.mxu0 0
        %2796 = vmatpush2.bf16.msra.mxu0 0
        %2797 = vmatprep.subr.bf16.mxu0 0
        %2798 = vmatpush2.bf16.msra.mxu0 0
        %2799 = vmatprep.subr.bf16.mxu0 0
        %2800 = vmatpush2.bf16.msra.mxu0 0
        %2801 = vmatprep.subr.bf16.mxu0 0
        %2802 = vmatpush2.bf16.msra.mxu0 0
        %2803 = vmatprep.subr.bf16.mxu0 0
        %2804 = vmatpush2.bf16.msra.mxu0 0
        %2805 = vmatprep.mubr.bf16.mxu0 0
        %2806 = vmatmul.mubr.bf16.gmra.mxu0 %v2730
        %v2807 = vpop.f32.mrf.mxu0
        %v2808 = vadd.f32 0.0, %v2807
        %v2809 = vpop.f32.mrf.mxu0
        %v2810 = vadd.f32 0.0, %v2809
        %v2811 = vpop.f32.mrf.mxu0
        %v2812 = vpop.f32.mrf.mxu0
        %2813 = vdwg.mxu0
        %v2818 = vrot.slane %v2767, 3
        %v2819 = vrot.slane %v2769, 3
        %v2820 = vrot.slane %v2808, 3
        %v2821 = vrot.slane %v2810, 3
        %v2826 = vadd.f32 %v1041, %v2818
        %v2827 = vadd.f32 %v1042, %v2819
        %v2828 = vadd.f32 %v1043, %v2820
        %v2829 = vadd.f32 %v1044, %v2821
        %v2830 = vxor.u32 %v2826, 2147483648
        %v2831 = vxor.u32 %v2827, 2147483648
        %v2832 = vxor.u32 %v2828, 2147483648
        %v2833 = vmul.f32 %v2830, 1.442695
        %v2834 = vpow.pop %v2833
        %v2835 = vmul.f32 %v2831, 1.442695
        %v2836 = vpow.pop %v2835
        %v2837 = vmul.f32 %v2832, 1.442695
        %v2838 = vpow.pop %v2837
        %v2839 = vadd.f32 %v2834, 1.0
        %v2840 = vadd.f32 %v2836, 1.0
        %v2841 = vadd.f32 %v2838, 1.0
        %v2842 = vrcp.pop %v2839
        %v2843 = vmul.f32 1.0, %v2842
        %v2844 = vrcp.pop %v2840
        %v2845 = vmul.f32 1.0, %v2844
        %v2846 = vrcp.pop %v2841
        %v2847 = vmul.f32 1.0, %v2846
        %v2848 = vtanh.pop %v2829
        %v2850 = vrot.slane %v2591, 7
        %v2852 = vmul.f32 %v2845, %v2850
        %v2853 = vmul.f32 %v2843, %v2848
        %v2854 = vadd.f32 %v2852, %v2853
        %v2855 = vtanh.pop %v2854
        %v2856 = vmul.f32 %v2847, %v2855
        %v2858 = vrot.slane %v2590, 7
        %v2860 = vsel %vm2167, %v2856, %v2858
        %v2861 = vsel %vm2167, %v2854, %v2850
        %v2862 = vsel %vm2167, %v2856, 0.0
        %v2863 = vpack.c.bf16 %v2725, %v2725
        %v2865 = vshrl.u32 %v2863, 16
        %v2867 = vrot.slane %v2865, 1
        %2869 = vmatprep.subr.bf16.mxu0 %v1451
        %2870 = vmatpush1.bf16.msra.mxu0 %v1450
        %2871 = vmatprep.subr.bf16.mxu0 %v1447
        %2872 = vmatpush1.bf16.msra.mxu0 %v1446
        %2873 = vmatprep.subr.bf16.mxu0 %v1443
        %2874 = vmatpush1.bf16.msra.mxu0 %v1442
        %2875 = vmatprep.subr.bf16.mxu0 %v1439
        %2876 = vmatpush1.bf16.msra.mxu0 %v1438
        %2877 = vmatprep.subr.bf16.mxu0 %v1435
        %2878 = vmatpush1.bf16.msra.mxu0 %v1434
        %2879 = vmatprep.subr.bf16.mxu0 %v1431
        %2880 = vmatpush1.bf16.msra.mxu0 %v1430
        %2881 = vmatprep.subr.bf16.mxu0 %v1427
        %2882 = vmatpush1.bf16.msra.mxu0 %v1426
        %2883 = vmatprep.subr.bf16.mxu0 %v1423
        %2884 = vmatpush1.bf16.msra.mxu0 %v1422
        %2885 = vmatprep.subr.bf16.mxu0 0
        %2886 = vmatpush2.bf16.msra.mxu0 0
        %2887 = vmatprep.subr.bf16.mxu0 0
        %2888 = vmatpush2.bf16.msra.mxu0 0
        %2889 = vmatprep.subr.bf16.mxu0 0
        %2890 = vmatpush2.bf16.msra.mxu0 0
        %2891 = vmatprep.subr.bf16.mxu0 0
        %2892 = vmatpush2.bf16.msra.mxu0 0
        %2893 = vmatprep.subr.bf16.mxu0 0
        %2894 = vmatpush2.bf16.msra.mxu0 0
        %2895 = vmatprep.subr.bf16.mxu0 0
        %2896 = vmatpush2.bf16.msra.mxu0 0
        %2897 = vmatprep.subr.bf16.mxu0 0
        %2898 = vmatpush2.bf16.msra.mxu0 0
        %2899 = vmatprep.subr.bf16.mxu0 0
        %2900 = vmatpush2.bf16.msra.mxu0 0
        %2901 = vmatprep.mubr.bf16.mxu0 0
        %2902 = vmatmul.mubr.bf16.gmra.mxu0 %v2867
        %v2903 = vpop.f32.mrf.mxu0
        %v2904 = vadd.f32 0.0, %v2903
        %v2905 = vpop.f32.mrf.mxu0
        %v2906 = vadd.f32 0.0, %v2905
        %v2907 = vpop.f32.mrf.mxu0
        %v2908 = vpop.f32.mrf.mxu0
        %2909 = vdwg.mxu0
        %2910 = vmatprep.subr.bf16.mxu0 %v1453
        %2911 = vmatpush1.bf16.msra.mxu0 %v1452
        %2912 = vmatprep.subr.bf16.mxu0 %v1449
        %2913 = vmatpush1.bf16.msra.mxu0 %v1448
        %2914 = vmatprep.subr.bf16.mxu0 %v1445
        %2915 = vmatpush1.bf16.msra.mxu0 %v1444
        %2916 = vmatprep.subr.bf16.mxu0 %v1441
        %2917 = vmatpush1.bf16.msra.mxu0 %v1440
        %2918 = vmatprep.subr.bf16.mxu0 %v1437
        %2919 = vmatpush1.bf16.msra.mxu0 %v1436
        %2920 = vmatprep.subr.bf16.mxu0 %v1433
        %2921 = vmatpush1.bf16.msra.mxu0 %v1432
        %2922 = vmatprep.subr.bf16.mxu0 %v1429
        %2923 = vmatpush1.bf16.msra.mxu0 %v1428
        %2924 = vmatprep.subr.bf16.mxu0 %v1425
        %2925 = vmatpush1.bf16.msra.mxu0 %v1424
        %2926 = vmatprep.subr.bf16.mxu0 0
        %2927 = vmatpush2.bf16.msra.mxu0 0
        %2928 = vmatprep.subr.bf16.mxu0 0
        %2929 = vmatpush2.bf16.msra.mxu0 0
        %2930 = vmatprep.subr.bf16.mxu0 0
        %2931 = vmatpush2.bf16.msra.mxu0 0
        %2932 = vmatprep.subr.bf16.mxu0 0
        %2933 = vmatpush2.bf16.msra.mxu0 0
        %2934 = vmatprep.subr.bf16.mxu0 0
        %2935 = vmatpush2.bf16.msra.mxu0 0
        %2936 = vmatprep.subr.bf16.mxu0 0
        %2937 = vmatpush2.bf16.msra.mxu0 0
        %2938 = vmatprep.subr.bf16.mxu0 0
        %2939 = vmatpush2.bf16.msra.mxu0 0
        %2940 = vmatprep.subr.bf16.mxu0 0
        %2941 = vmatpush2.bf16.msra.mxu0 0
        %2942 = vmatprep.mubr.bf16.mxu0 0
        %2943 = vmatmul.mubr.bf16.gmra.mxu0 %v2867
        %v2944 = vpop.f32.mrf.mxu0
        %v2945 = vadd.f32 0.0, %v2944
        %v2946 = vpop.f32.mrf.mxu0
        %v2947 = vadd.f32 0.0, %v2946
        %v2948 = vpop.f32.mrf.mxu0
        %v2949 = vpop.f32.mrf.mxu0
        %2950 = vdwg.mxu0
        %v2955 = vrot.slane %v2904, 6
        %v2956 = vrot.slane %v2906, 6
        %v2957 = vrot.slane %v2945, 6
        %v2958 = vrot.slane %v2947, 6
        %v2963 = vadd.f32 %v1045, %v2955
        %v2964 = vadd.f32 %v1046, %v2956
        %v2965 = vadd.f32 %v1047, %v2957
        %v2966 = vadd.f32 %v1048, %v2958
        %v2967 = vxor.u32 %v2963, 2147483648
        %v2968 = vxor.u32 %v2964, 2147483648
        %v2969 = vxor.u32 %v2965, 2147483648
        %v2970 = vmul.f32 %v2967, 1.442695
        %v2971 = vpow.pop %v2970
        %v2972 = vmul.f32 %v2968, 1.442695
        %v2973 = vpow.pop %v2972
        %v2974 = vmul.f32 %v2969, 1.442695
        %v2975 = vpow.pop %v2974
        %v2976 = vadd.f32 %v2971, 1.0
        %v2977 = vadd.f32 %v2973, 1.0
        %v2978 = vadd.f32 %v2975, 1.0
        %v2979 = vrcp.pop %v2976
        %v2980 = vmul.f32 1.0, %v2979
        %v2981 = vrcp.pop %v2977
        %v2982 = vmul.f32 1.0, %v2981
        %v2983 = vrcp.pop %v2978
        %v2984 = vmul.f32 1.0, %v2983
        %v2985 = vtanh.pop %v2966
        %v2987 = vrot.slane %v2726, 1
        %v2989 = vmul.f32 %v2982, %v2987
        %v2990 = vmul.f32 %v2980, %v2985
        %v2991 = vadd.f32 %v2989, %v2990
        %v2992 = vtanh.pop %v2991
        %v2993 = vmul.f32 %v2984, %v2992
        %v2995 = vrot.slane %v2725, 1
        %v2997 = vsel %vm2028, %v2993, %v2995
        %v2998 = vsel %vm2028, %v2991, %v2987
        %v2999 = vsel %vm2028, %v2993, 0.0
        %v3000 = vpack.c.bf16 %v2860, %v2860
        %v3002 = vshrl.u32 %v3000, 16
        %v3004 = vrot.slane %v3002, 2
        %3006 = vmatprep.subr.bf16.mxu0 %v1175
        %3007 = vmatpush1.bf16.msra.mxu0 %v1174
        %3008 = vmatprep.subr.bf16.mxu0 %v1171
        %3009 = vmatpush1.bf16.msra.mxu0 %v1170
        %3010 = vmatprep.subr.bf16.mxu0 %v1167
        %3011 = vmatpush1.bf16.msra.mxu0 %v1166
        %3012 = vmatprep.subr.bf16.mxu0 %v1163
        %3013 = vmatpush1.bf16.msra.mxu0 %v1162
        %3014 = vmatprep.subr.bf16.mxu0 %v1159
        %3015 = vmatpush1.bf16.msra.mxu0 %v1158
        %3016 = vmatprep.subr.bf16.mxu0 %v1155
        %3017 = vmatpush1.bf16.msra.mxu0 %v1154
        %3018 = vmatprep.subr.bf16.mxu0 %v1151
        %3019 = vmatpush1.bf16.msra.mxu0 %v1150
        %3020 = vmatprep.subr.bf16.mxu0 %v1147
        %3021 = vmatpush1.bf16.msra.mxu0 %v1146
        %3022 = vmatprep.subr.bf16.mxu0 0
        %3023 = vmatpush2.bf16.msra.mxu0 0
        %3024 = vmatprep.subr.bf16.mxu0 0
        %3025 = vmatpush2.bf16.msra.mxu0 0
        %3026 = vmatprep.subr.bf16.mxu0 0
        %3027 = vmatpush2.bf16.msra.mxu0 0
        %3028 = vmatprep.subr.bf16.mxu0 0
        %3029 = vmatpush2.bf16.msra.mxu0 0
        %3030 = vmatprep.subr.bf16.mxu0 0
        %3031 = vmatpush2.bf16.msra.mxu0 0
        %3032 = vmatprep.subr.bf16.mxu0 0
        %3033 = vmatpush2.bf16.msra.mxu0 0
        %3034 = vmatprep.subr.bf16.mxu0 0
        %3035 = vmatpush2.bf16.msra.mxu0 0
        %3036 = vmatprep.subr.bf16.mxu0 0
        %3037 = vmatpush2.bf16.msra.mxu0 0
        %3038 = vmatprep.mubr.bf16.mxu0 0
        %3039 = vmatmul.mubr.bf16.gmra.mxu0 %v3004
        %v3040 = vpop.f32.mrf.mxu0
        %v3041 = vadd.f32 0.0, %v3040
        %v3042 = vpop.f32.mrf.mxu0
        %v3043 = vadd.f32 0.0, %v3042
        %v3044 = vpop.f32.mrf.mxu0
        %v3045 = vpop.f32.mrf.mxu0
        %3046 = vdwg.mxu0
        %3047 = vmatprep.subr.bf16.mxu0 %v1177
        %3048 = vmatpush1.bf16.msra.mxu0 %v1176
        %3049 = vmatprep.subr.bf16.mxu0 %v1173
        %3050 = vmatpush1.bf16.msra.mxu0 %v1172
        %3051 = vmatprep.subr.bf16.mxu0 %v1169
        %3052 = vmatpush1.bf16.msra.mxu0 %v1168
        %3053 = vmatprep.subr.bf16.mxu0 %v1165
        %3054 = vmatpush1.bf16.msra.mxu0 %v1164
        %3055 = vmatprep.subr.bf16.mxu0 %v1161
        %3056 = vmatpush1.bf16.msra.mxu0 %v1160
        %3057 = vmatprep.subr.bf16.mxu0 %v1157
        %3058 = vmatpush1.bf16.msra.mxu0 %v1156
        %3059 = vmatprep.subr.bf16.mxu0 %v1153
        %3060 = vmatpush1.bf16.msra.mxu0 %v1152
        %3061 = vmatprep.subr.bf16.mxu0 %v1149
        %3062 = vmatpush1.bf16.msra.mxu0 %v1148
        %3063 = vmatprep.subr.bf16.mxu0 0
        %3064 = vmatpush2.bf16.msra.mxu0 0
        %3065 = vmatprep.subr.bf16.mxu0 0
        %3066 = vmatpush2.bf16.msra.mxu0 0
        %3067 = vmatprep.subr.bf16.mxu0 0
        %3068 = vmatpush2.bf16.msra.mxu0 0
        %3069 = vmatprep.subr.bf16.mxu0 0
        %3070 = vmatpush2.bf16.msra.mxu0 0
        %3071 = vmatprep.subr.bf16.mxu0 0
        %3072 = vmatpush2.bf16.msra.mxu0 0
        %3073 = vmatprep.subr.bf16.mxu0 0
        %3074 = vmatpush2.bf16.msra.mxu0 0
        %3075 = vmatprep.subr.bf16.mxu0 0
        %3076 = vmatpush2.bf16.msra.mxu0 0
        %3077 = vmatprep.subr.bf16.mxu0 0
        %3078 = vmatpush2.bf16.msra.mxu0 0
        %3079 = vmatprep.mubr.bf16.mxu0 0
        %3080 = vmatmul.mubr.bf16.gmra.mxu0 %v3004
        %v3081 = vpop.f32.mrf.mxu0
        %v3082 = vadd.f32 0.0, %v3081
        %v3083 = vpop.f32.mrf.mxu0
        %v3084 = vadd.f32 0.0, %v3083
        %v3085 = vpop.f32.mrf.mxu0
        %v3086 = vpop.f32.mrf.mxu0
        %3087 = vdwg.mxu0
        %v3092 = vrot.slane %v3041, 2
        %v3093 = vrot.slane %v3043, 2
        %v3094 = vrot.slane %v3082, 2
        %v3095 = vrot.slane %v3084, 2
        %v3100 = vadd.f32 %v1041, %v3092
        %v3101 = vadd.f32 %v1042, %v3093
        %v3102 = vadd.f32 %v1043, %v3094
        %v3103 = vadd.f32 %v1044, %v3095
        %v3104 = vxor.u32 %v3100, 2147483648
        %v3105 = vxor.u32 %v3101, 2147483648
        %v3106 = vxor.u32 %v3102, 2147483648
        %v3107 = vmul.f32 %v3104, 1.442695
        %v3108 = vpow.pop %v3107
        %v3109 = vmul.f32 %v3105, 1.442695
        %v3110 = vpow.pop %v3109
        %v3111 = vmul.f32 %v3106, 1.442695
        %v3112 = vpow.pop %v3111
        %v3113 = vadd.f32 %v3108, 1.0
        %v3114 = vadd.f32 %v3110, 1.0
        %v3115 = vadd.f32 %v3112, 1.0
        %v3116 = vrcp.pop %v3113
        %v3117 = vmul.f32 1.0, %v3116
        %v3118 = vrcp.pop %v3114
        %v3119 = vmul.f32 1.0, %v3118
        %v3120 = vrcp.pop %v3115
        %v3121 = vmul.f32 1.0, %v3120
        %v3122 = vtanh.pop %v3103
        %v3124 = vrot.slane %v2861, 7
        %v3126 = vmul.f32 %v3119, %v3124
        %v3127 = vmul.f32 %v3117, %v3122
        %v3128 = vadd.f32 %v3126, %v3127
        %v3129 = vtanh.pop %v3128
        %v3130 = vmul.f32 %v3121, %v3129
        %v3132 = vrot.slane %v2860, 7
        %v3134 = vsel %vm1886, %v3130, %v3132
        %v3135 = vsel %vm1886, %v3128, %v3124
        %v3136 = vsel %vm1886, %v3130, 0.0
        %v3137 = vpack.c.bf16 %v2997, %v2997
        %v3139 = vrot.slane %v3137, 1
        %3141 = vmatprep.subr.bf16.mxu0 %v1451
        %3142 = vmatpush1.bf16.msra.mxu0 %v1450
        %3143 = vmatprep.subr.bf16.mxu0 %v1447
        %3144 = vmatpush1.bf16.msra.mxu0 %v1446
        %3145 = vmatprep.subr.bf16.mxu0 %v1443
        %3146 = vmatpush1.bf16.msra.mxu0 %v1442
        %3147 = vmatprep.subr.bf16.mxu0 %v1439
        %3148 = vmatpush1.bf16.msra.mxu0 %v1438
        %3149 = vmatprep.subr.bf16.mxu0 %v1435
        %3150 = vmatpush1.bf16.msra.mxu0 %v1434
        %3151 = vmatprep.subr.bf16.mxu0 %v1431
        %3152 = vmatpush1.bf16.msra.mxu0 %v1430
        %3153 = vmatprep.subr.bf16.mxu0 %v1427
        %3154 = vmatpush1.bf16.msra.mxu0 %v1426
        %3155 = vmatprep.subr.bf16.mxu0 %v1423
        %3156 = vmatpush1.bf16.msra.mxu0 %v1422
        %3157 = vmatprep.subr.bf16.mxu0 0
        %3158 = vmatpush2.bf16.msra.mxu0 0
        %3159 = vmatprep.subr.bf16.mxu0 0
        %3160 = vmatpush2.bf16.msra.mxu0 0
        %3161 = vmatprep.subr.bf16.mxu0 0
        %3162 = vmatpush2.bf16.msra.mxu0 0
        %3163 = vmatprep.subr.bf16.mxu0 0
        %3164 = vmatpush2.bf16.msra.mxu0 0
        %3165 = vmatprep.subr.bf16.mxu0 0
        %3166 = vmatpush2.bf16.msra.mxu0 0
        %3167 = vmatprep.subr.bf16.mxu0 0
        %3168 = vmatpush2.bf16.msra.mxu0 0
        %3169 = vmatprep.subr.bf16.mxu0 0
        %3170 = vmatpush2.bf16.msra.mxu0 0
        %3171 = vmatprep.subr.bf16.mxu0 0
        %3172 = vmatpush2.bf16.msra.mxu0 0
        %3173 = vmatprep.mubr.bf16.mxu0 0
        %3174 = vmatmul.mubr.bf16.gmra.mxu0 %v3139
        %v3175 = vpop.f32.mrf.mxu0
        %v3176 = vadd.f32 0.0, %v3175
        %v3177 = vpop.f32.mrf.mxu0
        %v3178 = vadd.f32 0.0, %v3177
        %v3179 = vpop.f32.mrf.mxu0
        %v3180 = vpop.f32.mrf.mxu0
        %3181 = vdwg.mxu0
        %3182 = vmatprep.subr.bf16.mxu0 %v1453
        %3183 = vmatpush1.bf16.msra.mxu0 %v1452
        %3184 = vmatprep.subr.bf16.mxu0 %v1449
        %3185 = vmatpush1.bf16.msra.mxu0 %v1448
        %3186 = vmatprep.subr.bf16.mxu0 %v1445
        %3187 = vmatpush1.bf16.msra.mxu0 %v1444
        %3188 = vmatprep.subr.bf16.mxu0 %v1441
        %3189 = vmatpush1.bf16.msra.mxu0 %v1440
        %3190 = vmatprep.subr.bf16.mxu0 %v1437
        %3191 = vmatpush1.bf16.msra.mxu0 %v1436
        %3192 = vmatprep.subr.bf16.mxu0 %v1433
        %3193 = vmatpush1.bf16.msra.mxu0 %v1432
        %3194 = vmatprep.subr.bf16.mxu0 %v1429
        %3195 = vmatpush1.bf16.msra.mxu0 %v1428
        %3196 = vmatprep.subr.bf16.mxu0 %v1425
        %3197 = vmatpush1.bf16.msra.mxu0 %v1424
        %3198 = vmatprep.subr.bf16.mxu0 0
        %3199 = vmatpush2.bf16.msra.mxu0 0
        %3200 = vmatprep.subr.bf16.mxu0 0
        %3201 = vmatpush2.bf16.msra.mxu0 0
        %3202 = vmatprep.subr.bf16.mxu0 0
        %3203 = vmatpush2.bf16.msra.mxu0 0
        %3204 = vmatprep.subr.bf16.mxu0 0
        %3205 = vmatpush2.bf16.msra.mxu0 0
        %3206 = vmatprep.subr.bf16.mxu0 0
        %3207 = vmatpush2.bf16.msra.mxu0 0
        %3208 = vmatprep.subr.bf16.mxu0 0
        %3209 = vmatpush2.bf16.msra.mxu0 0
        %3210 = vmatprep.subr.bf16.mxu0 0
        %3211 = vmatpush2.bf16.msra.mxu0 0
        %3212 = vmatprep.subr.bf16.mxu0 0
        %3213 = vmatpush2.bf16.msra.mxu0 0
        %3214 = vmatprep.mubr.bf16.mxu0 0
        %3215 = vmatmul.mubr.bf16.gmra.mxu0 %v3139
        %v3216 = vpop.f32.mrf.mxu0
        %v3217 = vadd.f32 0.0, %v3216
        %v3218 = vpop.f32.mrf.mxu0
        %v3219 = vadd.f32 0.0, %v3218
        %v3220 = vpop.f32.mrf.mxu0
        %v3221 = vpop.f32.mrf.mxu0
        %3222 = vdwg.mxu0
        %v3227 = vrot.slane %v3176, 7
        %v3228 = vrot.slane %v3178, 7
        %v3229 = vrot.slane %v3217, 7
        %v3230 = vrot.slane %v3219, 7
        %v3235 = vadd.f32 %v1045, %v3227
        %v3236 = vadd.f32 %v1046, %v3228
        %v3237 = vadd.f32 %v1047, %v3229
        %v3238 = vadd.f32 %v1048, %v3230
        %v3239 = vxor.u32 %v3235, 2147483648
        %v3240 = vxor.u32 %v3236, 2147483648
        %v3241 = vxor.u32 %v3237, 2147483648
        %v3242 = vmul.f32 %v3239, 1.442695
        %v3243 = vpow.pop %v3242
        %v3244 = vmul.f32 %v3240, 1.442695
        %v3245 = vpow.pop %v3244
        %v3246 = vmul.f32 %v3241, 1.442695
        %v3247 = vpow.pop %v3246
        %v3248 = vadd.f32 %v3243, 1.0
        %v3249 = vadd.f32 %v3245, 1.0
        %v3250 = vadd.f32 %v3247, 1.0
        %v3251 = vrcp.pop %v3248
        %v3252 = vmul.f32 1.0, %v3251
        %v3253 = vrcp.pop %v3249
        %v3254 = vmul.f32 1.0, %v3253
        %v3255 = vrcp.pop %v3250
        %v3256 = vmul.f32 1.0, %v3255
        %v3257 = vtanh.pop %v3238
        %v3259 = vrot.slane %v2998, 1
        %v3261 = vmul.f32 %v3254, %v3259
        %v3262 = vmul.f32 %v3252, %v3257
        %v3263 = vadd.f32 %v3261, %v3262
        %v3264 = vtanh.pop %v3263
        %v3265 = vmul.f32 %v3256, %v3264
        %v3267 = vrot.slane %v2997, 1
        %v3269 = vsel %vm1745, %v3265, %v3267
        %v3270 = vsel %vm1745, %v3263, %v3259
        %v3271 = vsel %vm1745, %v3265, 0.0
        %v3272 = vpack.c.bf16 %v3134, %v3134
        %v3274 = vrot.slane %v3272, 3
        %3276 = vmatprep.subr.bf16.mxu0 %v1175
        %3277 = vmatpush1.bf16.msra.mxu0 %v1174
        %3278 = vmatprep.subr.bf16.mxu0 %v1171
        %3279 = vmatpush1.bf16.msra.mxu0 %v1170
        %3280 = vmatprep.subr.bf16.mxu0 %v1167
        %3281 = vmatpush1.bf16.msra.mxu0 %v1166
        %3282 = vmatprep.subr.bf16.mxu0 %v1163
        %3283 = vmatpush1.bf16.msra.mxu0 %v1162
        %3284 = vmatprep.subr.bf16.mxu0 %v1159
        %3285 = vmatpush1.bf16.msra.mxu0 %v1158
        %3286 = vmatprep.subr.bf16.mxu0 %v1155
        %3287 = vmatpush1.bf16.msra.mxu0 %v1154
        %3288 = vmatprep.subr.bf16.mxu0 %v1151
        %3289 = vmatpush1.bf16.msra.mxu0 %v1150
        %3290 = vmatprep.subr.bf16.mxu0 %v1147
        %3291 = vmatpush1.bf16.msra.mxu0 %v1146
        %3292 = vmatprep.subr.bf16.mxu0 0
        %3293 = vmatpush2.bf16.msra.mxu0 0
        %3294 = vmatprep.subr.bf16.mxu0 0
        %3295 = vmatpush2.bf16.msra.mxu0 0
        %3296 = vmatprep.subr.bf16.mxu0 0
        %3297 = vmatpush2.bf16.msra.mxu0 0
        %3298 = vmatprep.subr.bf16.mxu0 0
        %3299 = vmatpush2.bf16.msra.mxu0 0
        %3300 = vmatprep.subr.bf16.mxu0 0
        %3301 = vmatpush2.bf16.msra.mxu0 0
        %3302 = vmatprep.subr.bf16.mxu0 0
        %3303 = vmatpush2.bf16.msra.mxu0 0
        %3304 = vmatprep.subr.bf16.mxu0 0
        %3305 = vmatpush2.bf16.msra.mxu0 0
        %3306 = vmatprep.subr.bf16.mxu0 0
        %3307 = vmatpush2.bf16.msra.mxu0 0
        %3308 = vmatprep.mubr.bf16.mxu0 0
        %3309 = vmatmul.mubr.bf16.gmra.mxu0 %v3274
        %v3310 = vpop.f32.mrf.mxu0
        %v3311 = vadd.f32 0.0, %v3310
        %v3312 = vpop.f32.mrf.mxu0
        %v3313 = vadd.f32 0.0, %v3312
        %v3314 = vpop.f32.mrf.mxu0
        %v3315 = vpop.f32.mrf.mxu0
        %3316 = vdwg.mxu0
        %3317 = vmatprep.subr.bf16.mxu0 %v1177
        %3318 = vmatpush1.bf16.msra.mxu0 %v1176
        %3319 = vmatprep.subr.bf16.mxu0 %v1173
        %3320 = vmatpush1.bf16.msra.mxu0 %v1172
        %3321 = vmatprep.subr.bf16.mxu0 %v1169
        %3322 = vmatpush1.bf16.msra.mxu0 %v1168
        %3323 = vmatprep.subr.bf16.mxu0 %v1165
        %3324 = vmatpush1.bf16.msra.mxu0 %v1164
        %3325 = vmatprep.subr.bf16.mxu0 %v1161
        %3326 = vmatpush1.bf16.msra.mxu0 %v1160
        %3327 = vmatprep.subr.bf16.mxu0 %v1157
        %3328 = vmatpush1.bf16.msra.mxu0 %v1156
        %3329 = vmatprep.subr.bf16.mxu0 %v1153
        %3330 = vmatpush1.bf16.msra.mxu0 %v1152
        %3331 = vmatprep.subr.bf16.mxu0 %v1149
        %3332 = vmatpush1.bf16.msra.mxu0 %v1148
        %3333 = vmatprep.subr.bf16.mxu0 0
        %3334 = vmatpush2.bf16.msra.mxu0 0
        %3335 = vmatprep.subr.bf16.mxu0 0
        %3336 = vmatpush2.bf16.msra.mxu0 0
        %3337 = vmatprep.subr.bf16.mxu0 0
        %3338 = vmatpush2.bf16.msra.mxu0 0
        %3339 = vmatprep.subr.bf16.mxu0 0
        %3340 = vmatpush2.bf16.msra.mxu0 0
        %3341 = vmatprep.subr.bf16.mxu0 0
        %3342 = vmatpush2.bf16.msra.mxu0 0
        %3343 = vmatprep.subr.bf16.mxu0 0
        %3344 = vmatpush2.bf16.msra.mxu0 0
        %3345 = vmatprep.subr.bf16.mxu0 0
        %3346 = vmatpush2.bf16.msra.mxu0 0
        %3347 = vmatprep.subr.bf16.mxu0 0
        %3348 = vmatpush2.bf16.msra.mxu0 0
        %3349 = vmatprep.mubr.bf16.mxu0 0
        %3350 = vmatmul.mubr.bf16.gmra.mxu0 %v3274
        %v3351 = vpop.f32.mrf.mxu0
        %v3352 = vadd.f32 0.0, %v3351
        %v3353 = vpop.f32.mrf.mxu0
        %v3354 = vadd.f32 0.0, %v3353
        %v3355 = vpop.f32.mrf.mxu0
        %v3356 = vpop.f32.mrf.mxu0
        %3357 = vdwg.mxu0
        %v3362 = vrot.slane %v3311, 1
        %v3363 = vrot.slane %v3313, 1
        %v3364 = vrot.slane %v3352, 1
        %v3365 = vrot.slane %v3354, 1
        %v3370 = vadd.f32 %v1041, %v3362
        %v3371 = vadd.f32 %v1042, %v3363
        %v3372 = vadd.f32 %v1043, %v3364
        %v3373 = vadd.f32 %v1044, %v3365
        %v3374 = vxor.u32 %v3370, 2147483648
        %v3375 = vxor.u32 %v3371, 2147483648
        %v3376 = vxor.u32 %v3372, 2147483648
        %v3377 = vmul.f32 %v3374, 1.442695
        %v3378 = vpow.pop %v3377
        %v3379 = vmul.f32 %v3375, 1.442695
        %v3380 = vpow.pop %v3379
        %v3381 = vmul.f32 %v3376, 1.442695
        %v3382 = vpow.pop %v3381
        %v3383 = vadd.f32 %v3378, 1.0
        %v3384 = vadd.f32 %v3380, 1.0
        %v3385 = vadd.f32 %v3382, 1.0
        %v3386 = vrcp.pop %v3383
        %v3387 = vmul.f32 1.0, %v3386
        %v3388 = vrcp.pop %v3384
        %v3389 = vmul.f32 1.0, %v3388
        %v3390 = vrcp.pop %v3385
        %v3391 = vmul.f32 1.0, %v3390
        %v3392 = vtanh.pop %v3373
        %v3394 = vrot.slane %v3135, 7
        %v3396 = vmul.f32 %v3389, %v3394
        %v3397 = vmul.f32 %v3387, %v3392
        %v3398 = vadd.f32 %v3396, %v3397
        %v3399 = vtanh.pop %v3398
        %v3400 = vmul.f32 %v3391, %v3399
        %v3401 = vsel %vm1611, %v3400, 0.0
        %v3402 = vpack.c.bf16 %v3269, %v3269
        %v3404 = vshrl.u32 %v3402, 16
        %3407 = vmatprep.subr.bf16.mxu0 %v1451
        %3408 = vmatpush1.bf16.msra.mxu0 %v1450
        %3409 = vmatprep.subr.bf16.mxu0 %v1447
        %3410 = vmatpush1.bf16.msra.mxu0 %v1446
        %3411 = vmatprep.subr.bf16.mxu0 %v1443
        %3412 = vmatpush1.bf16.msra.mxu0 %v1442
        %3413 = vmatprep.subr.bf16.mxu0 %v1439
        %3414 = vmatpush1.bf16.msra.mxu0 %v1438
        %3415 = vmatprep.subr.bf16.mxu0 %v1435
        %3416 = vmatpush1.bf16.msra.mxu0 %v1434
        %3417 = vmatprep.subr.bf16.mxu0 %v1431
        %3418 = vmatpush1.bf16.msra.mxu0 %v1430
        %3419 = vmatprep.subr.bf16.mxu0 %v1427
        %3420 = vmatpush1.bf16.msra.mxu0 %v1426
        %3421 = vmatprep.subr.bf16.mxu0 %v1423
        %3422 = vmatpush1.bf16.msra.mxu0 %v1422
        %3423 = vmatprep.subr.bf16.mxu0 0
        %3424 = vmatpush2.bf16.msra.mxu0 0
        %3425 = vmatprep.subr.bf16.mxu0 0
        %3426 = vmatpush2.bf16.msra.mxu0 0
        %3427 = vmatprep.subr.bf16.mxu0 0
        %3428 = vmatpush2.bf16.msra.mxu0 0
        %3429 = vmatprep.subr.bf16.mxu0 0
        %3430 = vmatpush2.bf16.msra.mxu0 0
        %3431 = vmatprep.subr.bf16.mxu0 0
        %3432 = vmatpush2.bf16.msra.mxu0 0
        %3433 = vmatprep.subr.bf16.mxu0 0
        %3434 = vmatpush2.bf16.msra.mxu0 0
        %3435 = vmatprep.subr.bf16.mxu0 0
        %3436 = vmatpush2.bf16.msra.mxu0 0
        %3437 = vmatprep.subr.bf16.mxu0 0
        %3438 = vmatpush2.bf16.msra.mxu0 0
        %3439 = vmatprep.mubr.bf16.mxu0 0
        %3440 = vmatmul.mubr.bf16.gmra.mxu0 %v3404
        %v3441 = vpop.f32.mrf.mxu0
        %v3442 = vadd.f32 0.0, %v3441
        %v3443 = vpop.f32.mrf.mxu0
        %v3444 = vadd.f32 0.0, %v3443
        %v3445 = vpop.f32.mrf.mxu0
        %v3446 = vpop.f32.mrf.mxu0
        %3447 = vdwg.mxu0
        %3448 = vmatprep.subr.bf16.mxu0 %v1453
        %3449 = vmatpush1.bf16.msra.mxu0 %v1452
        %3450 = vmatprep.subr.bf16.mxu0 %v1449
        %3451 = vmatpush1.bf16.msra.mxu0 %v1448
        %3452 = vmatprep.subr.bf16.mxu0 %v1445
        %3453 = vmatpush1.bf16.msra.mxu0 %v1444
        %3454 = vmatprep.subr.bf16.mxu0 %v1441
        %3455 = vmatpush1.bf16.msra.mxu0 %v1440
        %3456 = vmatprep.subr.bf16.mxu0 %v1437
        %3457 = vmatpush1.bf16.msra.mxu0 %v1436
        %3458 = vmatprep.subr.bf16.mxu0 %v1433
        %3459 = vmatpush1.bf16.msra.mxu0 %v1432
        %3460 = vmatprep.subr.bf16.mxu0 %v1429
        %3461 = vmatpush1.bf16.msra.mxu0 %v1428
        %3462 = vmatprep.subr.bf16.mxu0 %v1425
        %3463 = vmatpush1.bf16.msra.mxu0 %v1424
        %3464 = vmatprep.subr.bf16.mxu0 0
        %3465 = vmatpush2.bf16.msra.mxu0 0
        %3466 = vmatprep.subr.bf16.mxu0 0
        %3467 = vmatpush2.bf16.msra.mxu0 0
        %3468 = vmatprep.subr.bf16.mxu0 0
        %3469 = vmatpush2.bf16.msra.mxu0 0
        %3470 = vmatprep.subr.bf16.mxu0 0
        %3471 = vmatpush2.bf16.msra.mxu0 0
        %3472 = vmatprep.subr.bf16.mxu0 0
        %3473 = vmatpush2.bf16.msra.mxu0 0
        %3474 = vmatprep.subr.bf16.mxu0 0
        %3475 = vmatpush2.bf16.msra.mxu0 0
        %3476 = vmatprep.subr.bf16.mxu0 0
        %3477 = vmatpush2.bf16.msra.mxu0 0
        %3478 = vmatprep.subr.bf16.mxu0 0
        %3479 = vmatpush2.bf16.msra.mxu0 0
        %3480 = vmatprep.mubr.bf16.mxu0 0
        %3481 = vmatmul.mubr.bf16.gmra.mxu0 %v3404
        %v3482 = vpop.f32.mrf.mxu0
        %v3483 = vadd.f32 0.0, %v3482
        %v3484 = vpop.f32.mrf.mxu0
        %v3485 = vadd.f32 0.0, %v3484
        %v3486 = vpop.f32.mrf.mxu0
        %v3487 = vpop.f32.mrf.mxu0
        %3488 = vdwg.mxu0
        %v3489 = vadd.f32 %v1045, %v3442
        %v3490 = vadd.f32 %v1046, %v3444
        %v3491 = vadd.f32 %v1047, %v3483
        %v3492 = vadd.f32 %v1048, %v3485
        %v3493 = vxor.u32 %v3489, 2147483648
        %v3494 = vxor.u32 %v3490, 2147483648
        %v3495 = vxor.u32 %v3491, 2147483648
        %v3496 = vmul.f32 %v3493, 1.442695
        %v3497 = vpow.pop %v3496
        %v3498 = vmul.f32 %v3494, 1.442695
        %v3499 = vpow.pop %v3498
        %v3500 = vmul.f32 %v3495, 1.442695
        %v3501 = vpow.pop %v3500
        %v3502 = vadd.f32 %v3497, 1.0
        %v3503 = vadd.f32 %v3499, 1.0
        %v3504 = vadd.f32 %v3501, 1.0
        %v3505 = vrcp.pop %v3502
        %v3506 = vmul.f32 1.0, %v3505
        %v3507 = vrcp.pop %v3503
        %v3508 = vmul.f32 1.0, %v3507
        %v3509 = vrcp.pop %v3504
        %v3510 = vmul.f32 1.0, %v3509
        %v3511 = vtanh.pop %v3492
        %v3513 = vrot.slane %v3270, 1
        %v3515 = vmul.f32 %v3508, %v3513
        %v3516 = vmul.f32 %v3506, %v3511
        %v3517 = vadd.f32 %v3515, %v3516
        %v3518 = vtanh.pop %v3517
        %v3519 = vmul.f32 %v3510, %v3518
        %v3520 = vsel %vm1323, %v3519, 0.0
        %vm3521 = vcmask 1040384
        %v3522 = vsel %vm3521, %v1324, %v1751
        %vm3523 = vcmask 1041408
        %v3524 = vsel %vm3523, %v3522, %v2034
        %vm3525 = vcmask 1042432
        %v3526 = vsel %vm3525, %v3524, %v2314
        %vm3527 = vcmask 1043456
        %v3528 = vsel %vm3527, %v3526, %v2592
        %vm3529 = vcmask 1044480
        %v3530 = vsel %vm3529, %v3528, %v2862
        %vm3531 = vcmask 1045504
        %v3532 = vsel %vm3531, %v3530, %v3136
        %vm3533 = vcmask 1046528
        %v3534 = vsel %vm3533, %v3532, %v3401
        %s3535 = smul.u32 0, 2
        %s3536 = smul.addr %s3535, 8
        %s3537 = scalar_lea.vmem [#allocation3], %s3536
        %3538 = vst [vmem:[%s3537] sm:$0xff] %v3534
        %v3539 = vsel %vm3521, %v3520, %v3271
        %v3540 = vsel %vm3523, %v3539, %v2999
        %v3541 = vsel %vm3525, %v3540, %v2727
        %v3542 = vsel %vm3527, %v3541, %v2455
        %v3543 = vsel %vm3529, %v3542, %v2173
        %v3544 = vsel %vm3531, %v3543, %v1892
        %v3545 = vsel %vm3533, %v3544, %v1612
        %3546 = vst [vmem:[%s3537 + $0x8] sm:$0xff] %v3545
        %v3547 = vld [vmem:[#allocation3] sm:$0xff]
        %v3548 = vld [vmem:[#allocation3 + $0x8] sm:$0xff]
        %v3549 = vpack.c.bf16 %v3547, %v3547
        %v3550 = vpack.c.bf16 %v3548, %v3548
        %v3551 = vld [vmem:[%s6] sm:$0xf]
        %v3552 = vld [vmem:[%s6 + $0x4] sm:$0xf]
        %v3553 = vld [vmem:[%s6 + $0x8] sm:$0xf]
        %v3554 = vld [vmem:[%s6 + $0xc] sm:$0xf]
        %v3555 = vld [vmem:[%s6 + $0x10] sm:$0xf]
        %v3556 = vld [vmem:[%s6 + $0x14] sm:$0xf]
        %v3557 = vld [vmem:[%s6 + $0x18] sm:$0xf]
        %v3558 = vld [vmem:[%s6 + $0x1c] sm:$0xf]
        %v3559 = vld [vmem:[%s6 + $0x20] sm:$0xf]
        %v3560 = vld [vmem:[%s6 + $0x24] sm:$0xf]
        %v3561 = vld [vmem:[%s6 + $0x28] sm:$0xf]
        %v3562 = vld [vmem:[%s6 + $0x2c] sm:$0xf]
        %v3563 = vld [vmem:[%s6 + $0x30] sm:$0xf]
        %v3564 = vld [vmem:[%s6 + $0x34] sm:$0xf]
        %v3565 = vld [vmem:[%s6 + $0x38] sm:$0xf]
        %v3566 = vld [vmem:[%s6 + $0x3c] sm:$0xf]
        %v3567 = vld [vmem:[%s6 + $0x40] sm:$0xf]
        %v3568 = vld [vmem:[%s6 + $0x44] sm:$0xf]
        %v3569 = vld [vmem:[%s6 + $0x48] sm:$0xf]
        %v3570 = vld [vmem:[%s6 + $0x4c] sm:$0xf]
        %v3571 = vld [vmem:[%s6 + $0x50] sm:$0xf]
        %v3572 = vld [vmem:[%s6 + $0x54] sm:$0xf]
        %v3573 = vld [vmem:[%s6 + $0x58] sm:$0xf]
        %v3574 = vld [vmem:[%s6 + $0x5c] sm:$0xf]
        %v3575 = vld [vmem:[%s6 + $0x60] sm:$0xf]
        %v3576 = vld [vmem:[%s6 + $0x64] sm:$0xf]
        %v3577 = vld [vmem:[%s6 + $0x68] sm:$0xf]
        %v3578 = vld [vmem:[%s6 + $0x6c] sm:$0xf]
        %v3579 = vld [vmem:[%s6 + $0x70] sm:$0xf]
        %v3580 = vld [vmem:[%s6 + $0x74] sm:$0xf]
        %v3581 = vld [vmem:[%s6 + $0x78] sm:$0xf]
        %v3582 = vld [vmem:[%s6 + $0x7c] sm:$0xf]
        %v3583 = vld [vmem:[%s7] sm:$0x1]
        %v3585 = vlaneseq
        %v3586 = vshrl.u32 %v3585, 7
        %v3587 = vsub.s32 0, %v3586
        %v3588 = vrot.slane %v3583, %v3587
        %v3622 = vunpack.c.l.b16 %v3551
        %v3623 = vunpack.c.l.b16 %v3552
        %v3624 = vunpack.c.l.b16 %v3553
        %v3625 = vunpack.c.l.b16 %v3554
        %v3626 = vunpack.c.l.b16 %v3555
        %v3627 = vunpack.c.l.b16 %v3556
        %v3628 = vunpack.c.l.b16 %v3557
        %v3629 = vunpack.c.l.b16 %v3558
        %v3630 = vunpack.c.l.b16 %v3559
        %v3631 = vunpack.c.l.b16 %v3560
        %v3632 = vunpack.c.l.b16 %v3561
        %v3633 = vunpack.c.l.b16 %v3562
        %v3634 = vunpack.c.l.b16 %v3563
        %v3635 = vunpack.c.l.b16 %v3564
        %v3636 = vunpack.c.l.b16 %v3565
        %v3637 = vunpack.c.l.b16 %v3566
        %v3638 = vunpack.c.l.b16 %v3567
        %v3639 = vunpack.c.l.b16 %v3568
        %v3640 = vunpack.c.l.b16 %v3569
        %v3641 = vunpack.c.l.b16 %v3570
        %v3642 = vunpack.c.l.b16 %v3571
        %v3643 = vunpack.c.l.b16 %v3572
        %v3644 = vunpack.c.l.b16 %v3573
        %v3645 = vunpack.c.l.b16 %v3574
        %v3646 = vunpack.c.l.b16 %v3575
        %v3647 = vunpack.c.l.b16 %v3576
        %v3648 = vunpack.c.l.b16 %v3577
        %v3649 = vunpack.c.l.b16 %v3578
        %v3650 = vunpack.c.l.b16 %v3579
        %v3651 = vunpack.c.l.b16 %v3580
        %v3652 = vunpack.c.l.b16 %v3581
        %v3653 = vunpack.c.l.b16 %v3582
        %v3654 = vpack.c.b16 %v3623, %v3622
        %v3655 = vpack.c.b16 %v3625, %v3624
        %v3656 = vpack.c.b16 %v3627, %v3626
        %v3657 = vpack.c.b16 %v3629, %v3628
        %v3658 = vpack.c.b16 %v3631, %v3630
        %v3659 = vpack.c.b16 %v3633, %v3632
        %v3660 = vpack.c.b16 %v3635, %v3634
        %v3661 = vpack.c.b16 %v3637, %v3636
        %v3662 = vpack.c.b16 %v3639, %v3638
        %v3663 = vpack.c.b16 %v3641, %v3640
        %v3664 = vpack.c.b16 %v3643, %v3642
        %v3665 = vpack.c.b16 %v3645, %v3644
        %v3666 = vpack.c.b16 %v3647, %v3646
        %v3667 = vpack.c.b16 %v3649, %v3648
        %v3668 = vpack.c.b16 %v3651, %v3650
        %v3669 = vpack.c.b16 %v3653, %v3652
        %3686 = vmatprep.subr.bf16.mxu0 0
        %3687 = vmatpush1.bf16.msra.mxu0 %v3661
        %3688 = vmatprep.subr.bf16.mxu0 0
        %3689 = vmatpush1.bf16.msra.mxu0 %v3660
        %3690 = vmatprep.subr.bf16.mxu0 0
        %3691 = vmatpush1.bf16.msra.mxu0 %v3659
        %3692 = vmatprep.subr.bf16.mxu0 0
        %3693 = vmatpush1.bf16.msra.mxu0 %v3658
        %3694 = vmatprep.subr.bf16.mxu0 0
        %3695 = vmatpush1.bf16.msra.mxu0 %v3657
        %3696 = vmatprep.subr.bf16.mxu0 0
        %3697 = vmatpush1.bf16.msra.mxu0 %v3656
        %3698 = vmatprep.subr.bf16.mxu0 0
        %3699 = vmatpush1.bf16.msra.mxu0 %v3655
        %3700 = vmatprep.subr.bf16.mxu0 0
        %3701 = vmatpush1.bf16.msra.mxu0 %v3654
        %3702 = vmatprep.subr.bf16.mxu0 0
        %3703 = vmatpush2.bf16.msra.mxu0 %v3669
        %3704 = vmatprep.subr.bf16.mxu0 0
        %3705 = vmatpush2.bf16.msra.mxu0 %v3668
        %3706 = vmatprep.subr.bf16.mxu0 0
        %3707 = vmatpush2.bf16.msra.mxu0 %v3667
        %3708 = vmatprep.subr.bf16.mxu0 0
        %3709 = vmatpush2.bf16.msra.mxu0 %v3666
        %3710 = vmatprep.subr.bf16.mxu0 0
        %3711 = vmatpush2.bf16.msra.mxu0 %v3665
        %3712 = vmatprep.subr.bf16.mxu0 0
        %3713 = vmatpush2.bf16.msra.mxu0 %v3664
        %3714 = vmatprep.subr.bf16.mxu0 0
        %3715 = vmatpush2.bf16.msra.mxu0 %v3663
        %3716 = vmatprep.subr.bf16.mxu0 0
        %3717 = vmatpush2.bf16.msra.mxu0 %v3662
        %3718 = vmatprep.mubr.bf16.mxu0 %v3550
        %3719 = vmatmul.mubr.bf16.gmra.mxu0 %v3549
        %v3720 = vpop.f32.mrf.mxu0
        %v3721 = vadd.f32 %v3588, %v3720
        %v3722 = vpop.f32.mrf.mxu0
        %v3723 = vpop.f32.mrf.mxu0
        %v3724 = vpop.f32.mrf.mxu0
        %3725 = vdwg.mxu0
        %v3726 = vmax.f32 %v3721, 0.0
        %v3727 = vpack.c.bf16 %v3726, %v3726
        %v3728 = vld [vmem:[%s8] sm:$0xf]
        %v3729 = vld [vmem:[%s8 + $0x4] sm:$0xf]
        %v3730 = vld [vmem:[%s8 + $0x8] sm:$0xf]
        %v3731 = vld [vmem:[%s8 + $0xc] sm:$0xf]
        %v3732 = vld [vmem:[%s8 + $0x10] sm:$0xf]
        %v3733 = vld [vmem:[%s8 + $0x14] sm:$0xf]
        %v3734 = vld [vmem:[%s8 + $0x18] sm:$0xf]
        %v3735 = vld [vmem:[%s8 + $0x1c] sm:$0xf]
        %v3736 = vld [vmem:[%s8 + $0x20] sm:$0xf]
        %v3737 = vld [vmem:[%s8 + $0x24] sm:$0xf]
        %v3738 = vld [vmem:[%s8 + $0x28] sm:$0xf]
        %v3739 = vld [vmem:[%s8 + $0x2c] sm:$0xf]
        %v3740 = vld [vmem:[%s8 + $0x30] sm:$0xf]
        %v3741 = vld [vmem:[%s8 + $0x34] sm:$0xf]
        %v3742 = vld [vmem:[%s8 + $0x38] sm:$0xf]
        %v3743 = vld [vmem:[%s8 + $0x3c] sm:$0xf]
        %v3744 = vld [vmem:[%s9] sm:$0x1]
        %v3746 = vlaneseq
        %v3747 = vshrl.u32 %v3746, 7
        %v3748 = vsub.s32 0, %v3747
        %v3749 = vrot.slane %v3744, %v3748
        %v3767 = vunpack.c.l.b16 %v3728
        %v3768 = vunpack.c.l.b16 %v3729
        %v3769 = vunpack.c.l.b16 %v3730
        %v3770 = vunpack.c.l.b16 %v3731
        %v3771 = vunpack.c.l.b16 %v3732
        %v3772 = vunpack.c.l.b16 %v3733
        %v3773 = vunpack.c.l.b16 %v3734
        %v3774 = vunpack.c.l.b16 %v3735
        %v3775 = vunpack.c.l.b16 %v3736
        %v3776 = vunpack.c.l.b16 %v3737
        %v3777 = vunpack.c.l.b16 %v3738
        %v3778 = vunpack.c.l.b16 %v3739
        %v3779 = vunpack.c.l.b16 %v3740
        %v3780 = vunpack.c.l.b16 %v3741
        %v3781 = vunpack.c.l.b16 %v3742
        %v3782 = vunpack.c.l.b16 %v3743
        %v3783 = vpack.c.b16 %v3768, %v3767
        %v3784 = vpack.c.b16 %v3770, %v3769
        %v3785 = vpack.c.b16 %v3772, %v3771
        %v3786 = vpack.c.b16 %v3774, %v3773
        %v3787 = vpack.c.b16 %v3776, %v3775
        %v3788 = vpack.c.b16 %v3778, %v3777
        %v3789 = vpack.c.b16 %v3780, %v3779
        %v3790 = vpack.c.b16 %v3782, %v3781
        %3799 = vmatprep.subr.bf16.mxu0 0
        %3800 = vmatpush1.bf16.msra.mxu0 %v3790
        %3801 = vmatprep.subr.bf16.mxu0 0
        %3802 = vmatpush1.bf16.msra.mxu0 %v3789
        %3803 = vmatprep.subr.bf16.mxu0 0
        %3804 = vmatpush1.bf16.msra.mxu0 %v3788
        %3805 = vmatprep.subr.bf16.mxu0 0
        %3806 = vmatpush1.bf16.msra.mxu0 %v3787
        %3807 = vmatprep.subr.bf16.mxu0 0
        %3808 = vmatpush1.bf16.msra.mxu0 %v3786
        %3809 = vmatprep.subr.bf16.mxu0 0
        %3810 = vmatpush1.bf16.msra.mxu0 %v3785
        %3811 = vmatprep.subr.bf16.mxu0 0
        %3812 = vmatpush1.bf16.msra.mxu0 %v3784
        %3813 = vmatprep.subr.bf16.mxu0 0
        %3814 = vmatpush1.bf16.msra.mxu0 %v3783
        %3815 = vmatprep.subr.bf16.mxu0 0
        %3816 = vmatpush2.bf16.msra.mxu0 0
        %3817 = vmatprep.subr.bf16.mxu0 0
        %3818 = vmatpush2.bf16.msra.mxu0 0
        %3819 = vmatprep.subr.bf16.mxu0 0
        %3820 = vmatpush2.bf16.msra.mxu0 0
        %3821 = vmatprep.subr.bf16.mxu0 0
        %3822 = vmatpush2.bf16.msra.mxu0 0
        %3823 = vmatprep.subr.bf16.mxu0 0
        %3824 = vmatpush2.bf16.msra.mxu0 0
        %3825 = vmatprep.subr.bf16.mxu0 0
        %3826 = vmatpush2.bf16.msra.mxu0 0
        %3827 = vmatprep.subr.bf16.mxu0 0
        %3828 = vmatpush2.bf16.msra.mxu0 0
        %3829 = vmatprep.subr.bf16.mxu0 0
        %3830 = vmatpush2.bf16.msra.mxu0 0
        %3831 = vmatprep.mubr.bf16.mxu0 0
        %3832 = vmatmul.mubr.bf16.gmra.mxu0 %v3727
        %v3833 = vpop.f32.mrf.mxu0
        %v3834 = vadd.f32 %v3749, %v3833
        %v3835 = vpop.f32.mrf.mxu0
        %v3836 = vpop.f32.mrf.mxu0
        %v3837 = vpop.f32.mrf.mxu0
        %3838 = vdwg.mxu0
        %v3839 = vmul.f32 %v3834, %v3834
        %3840 = vadd.xlane.f32.xlu0 %v3839
        %v3841 = vpop.xlane.xlu0 %3840
        %v3842 = vmax.f32 %v3841, 1e-24
        %v3843 = vrsqrt.pop %v3842
        %v3844 = vmul.f32 %v3834, %v3843
        %3845 = vst [vmem:[%s361] sm:$0xff] %v3844
        %3846 = vst [vmem:[#allocation4 + $0x8] sm:$0xff] 0.0
        %3847 = vst [vmem:[#allocation4 + $0x10] sm:$0xff] 0.0
        %3848 = vst [vmem:[#allocation4 + $0x18] sm:$0xff] 0.0
        %3849 = vst [vmem:[#allocation4 + $0x20] sm:$0xff] 0.0
        %3850 = vst [vmem:[#allocation4 + $0x28] sm:$0xff] 0.0
        %3851 = vst [vmem:[#allocation4 + $0x30] sm:$0xff] 0.0
        %3852 = vst [vmem:[#allocation4 + $0x38] sm:$0xff] 0.0
        %3853 = vst [vmem:[#allocation4 + $0x40] sm:$0xff] 0.0
        %3854 = vst [vmem:[#allocation4 + $0x48] sm:$0xff] 0.0
        %3855 = vst [vmem:[#allocation4 + $0x50] sm:$0xff] 0.0
        %3856 = vst [vmem:[#allocation4 + $0x58] sm:$0xff] 0.0
        %3857 = vst [vmem:[#allocation4 + $0x60] sm:$0xff] 0.0
        %3858 = vst [vmem:[#allocation4 + $0x68] sm:$0xff] 0.0
        %3859 = vst [vmem:[#allocation4 + $0x70] sm:$0xff] 0.0
        %3860 = vst [vmem:[#allocation4 + $0x78] sm:$0xff] 0.0
        %3861 = vst [vmem:[#allocation4] sm:$0xff] %v3844
        %v3862 = vld [vmem:[#allocation4] sm:$0xff]
        %v3863 = vld [vmem:[#allocation4 + $0x8] sm:$0xff]
        %v3864 = vld [vmem:[#allocation4 + $0x10] sm:$0xff]
        %v3865 = vld [vmem:[#allocation4 + $0x18] sm:$0xff]
        %v3866 = vld [vmem:[#allocation4 + $0x20] sm:$0xff]
        %v3867 = vld [vmem:[#allocation4 + $0x28] sm:$0xff]
        %v3868 = vld [vmem:[#allocation4 + $0x30] sm:$0xff]
        %v3869 = vld [vmem:[#allocation4 + $0x38] sm:$0xff]
        %v3870 = vld [vmem:[#allocation4 + $0x40] sm:$0xff]
        %v3871 = vld [vmem:[#allocation4 + $0x48] sm:$0xff]
        %v3872 = vld [vmem:[#allocation4 + $0x50] sm:$0xff]
        %v3873 = vld [vmem:[#allocation4 + $0x58] sm:$0xff]
        %v3874 = vld [vmem:[#allocation4 + $0x60] sm:$0xff]
        %v3875 = vld [vmem:[#allocation4 + $0x68] sm:$0xff]
        %v3876 = vld [vmem:[#allocation4 + $0x70] sm:$0xff]
        %v3877 = vld [vmem:[#allocation4 + $0x78] sm:$0xff]
        %3878 = vmatprep.subr.mxu0 0.0
        %3879 = vmatpush1.xpose.msra.mxu0 %v3877
        %3880 = vmatprep.subr.mxu0 0.0
        %3881 = vmatpush1.xpose.msra.mxu0 %v3876
        %3882 = vmatprep.subr.mxu0 0.0
        %3883 = vmatpush1.xpose.msra.mxu0 %v3875
        %3884 = vmatprep.subr.mxu0 0.0
        %3885 = vmatpush1.xpose.msra.mxu0 %v3874
        %3886 = vmatprep.subr.mxu0 0.0
        %3887 = vmatpush1.xpose.msra.mxu0 %v3873
        %3888 = vmatprep.subr.mxu0 0.0
        %3889 = vmatpush1.xpose.msra.mxu0 %v3872
        %3890 = vmatprep.subr.mxu0 0.0
        %3891 = vmatpush1.xpose.msra.mxu0 %v3871
        %3892 = vmatprep.subr.mxu0 0.0
        %3893 = vmatpush1.xpose.msra.mxu0 %v3870
        %3894 = vmatprep.subr.mxu0 0.0
        %3895 = vmatpush1.xpose.msra.mxu0 %v3869
        %3896 = vmatprep.subr.mxu0 0.0
        %3897 = vmatpush1.xpose.msra.mxu0 %v3868
        %3898 = vmatprep.subr.mxu0 0.0
        %3899 = vmatpush1.xpose.msra.mxu0 %v3867
        %3900 = vmatprep.subr.mxu0 0.0
        %3901 = vmatpush1.xpose.msra.mxu0 %v3866
        %3902 = vmatprep.subr.mxu0 0.0
        %3903 = vmatpush1.xpose.msra.mxu0 %v3865
        %3904 = vmatprep.subr.mxu0 0.0
        %3905 = vmatpush1.xpose.msra.mxu0 %v3864
        %3906 = vmatprep.subr.mxu0 0.0
        %3907 = vmatpush1.xpose.msra.mxu0 %v3863
        %3908 = vmatprep.subr.mxu0 0.0
        %3909 = vmatpush1.xpose.msra.mxu0 %v3862
        %3910 = vmatprep.subr.mxu0 0.0
        %3911 = vmatpush2.xpose.msra.mxu0 0.0
        %3912 = vmatprep.subr.mxu0 0.0
        %3913 = vmatpush2.xpose.msra.mxu0 0.0
        %3914 = vmatprep.subr.mxu0 0.0
        %3915 = vmatpush2.xpose.msra.mxu0 0.0
        %3916 = vmatprep.subr.mxu0 0.0
        %3917 = vmatpush2.xpose.msra.mxu0 0.0
        %3918 = vmatprep.subr.mxu0 0.0
        %3919 = vmatpush2.xpose.msra.mxu0 0.0
        %3920 = vmatprep.subr.mxu0 0.0
        %3921 = vmatpush2.xpose.msra.mxu0 0.0
        %3922 = vmatprep.subr.mxu0 0.0
        %3923 = vmatpush2.xpose.msra.mxu0 0.0
        %3924 = vmatprep.subr.mxu0 0.0
        %3925 = vmatpush2.xpose.msra.mxu0 0.0
        %3926 = vmatprep.subr.mxu0 0.0
        %3927 = vmatpush2.xpose.msra.mxu0 0.0
        %3928 = vmatprep.subr.mxu0 0.0
        %3929 = vmatpush2.xpose.msra.mxu0 0.0
        %3930 = vmatprep.subr.mxu0 0.0
        %3931 = vmatpush2.xpose.msra.mxu0 0.0
        %3932 = vmatprep.subr.mxu0 0.0
        %3933 = vmatpush2.xpose.msra.mxu0 0.0
        %3934 = vmatprep.subr.mxu0 0.0
        %3935 = vmatpush2.xpose.msra.mxu0 0.0
        %3936 = vmatprep.subr.mxu0 0.0
        %3937 = vmatpush2.xpose.msra.mxu0 0.0
        %3938 = vmatprep.subr.mxu0 0.0
        %3939 = vmatpush2.xpose.msra.mxu0 0.0
        %3940 = vmatprep.subr.mxu0 0.0
        %3941 = vmatpush2.xpose.msra.mxu0 0.0
        %3942 = vmatprep.mubr.f32.mxu0 0.0
        %3943 = vmatmul.mubr.f32.gmra.mxu0 %v3844
        %v3944 = vpop.f32.mrf.mxu0
        %v3945 = vadd.f32 1.0, %v3944
        %v3946 = vpop.f32.mrf.mxu0
        %3947 = vdwg.mxu0
        %v3948 = vmul.f32 %v3945, 0.5
        %3949 = vst [vmem:[%s368] sm:$0xff] %v3948
        %s3950 = sand.u32 %s237, 1
        %s3951 = scalar_lea.sflag [#allocation8], %s3950
        %s3952 = sand.u32 %s237, 1
        %s3953 = smul.addr %s3952, 8
        %s3954 = scalar_lea.vmem [#allocation7], %s3953
        %s3955 = sand.u32 %s263, 1
        %s3956 = scalar_lea.sflag [#allocation10], %s3955
        %s3957 = sand.u32 %s263, 1
        %s3958 = smul.addr %s3957, 8
        %s3959 = scalar_lea.vmem [#allocation9], %s3958
        // Predicated region
        $region57: #{cclusterer_forward.1} parent=55 // pred_check
          %p3960 = pneg %p247
        $region58: #{cclusterer_forward.1} parent=55 // pred_check_branch
          %3962 = sbr.rel (%p3960) target = $region60
        $region59: #{cclusterer_forward.1} parent=55 // pred_region
          %s3964 = ssub.s32 128, 128
          %3965 = vsyncadd %s3951, %s3964
          %s3966 = smul.addr %s35, 128
          %s3967 = scalar_lea.hbm %s10, %s3966
          %s3969 = sshll.u32 %s3954, 4
          %s3970 = int_to_ptr.vmem [resolvable:$true] %s3969
          %3972 = dma.vmem_to_hbm [thread:$0]  %s3970, 128, %s3967, %s3951
        $region60: #{cclusterer_forward.1} parent=55 // pred_fallthru
          _
        // Predicated region
        $region61: #{cclusterer_forward.1} parent=55 // pred_check
          %p3973 = pneg %p273
        $region62: #{cclusterer_forward.1} parent=55 // pred_check_branch
          %3975 = sbr.rel (%p3973) target = $region64
        $region63: #{cclusterer_forward.1} parent=55 // pred_region
          %s3977 = ssub.s32 128, 128
          %3978 = vsyncadd %s3956, %s3977
          %s3979 = smul.addr %s35, 128
          %s3980 = scalar_lea.hbm %s11, %s3979
          %s3982 = sshll.u32 %s3959, 4
          %s3983 = int_to_ptr.vmem [resolvable:$true] %s3982
          %3985 = dma.vmem_to_hbm [thread:$0]  %s3983, 128, %s3980, %s3956
        $region64: #{cclusterer_forward.1} parent=55 // pred_fallthru
          _
      $region56: #{cclusterer_forward.1} parent=5 // pred_fallthru
        _
      %p3986 = scmp.le.s32.totalorder 2, %s30
      // Predicated region
      $region65: #{cclusterer_forward.1} parent=5 // pred_check
        %p3987 = pneg %p3986
      $region66: #{cclusterer_forward.1} parent=5 // pred_check_branch
        %3989 = sbr.rel (%p3987) target = $region68
      $region67: #{cclusterer_forward.1} parent=5 // pred_region
        %s3990 = ssub.s32 %s30, 2
        // Predicated region
        $region69: #{cclusterer_forward.1} parent=67 // pred_check
          %p3991 = pneg %p253
        $region70: #{cclusterer_forward.1} parent=67 // pred_check_branch
          %3993 = sbr.rel (%p3991) target = $region72
        $region71: #{cclusterer_forward.1} parent=67 // pred_region
          %s3994 = sand.u32 %s238, 1
          %s3995 = scalar_lea.sflag [#allocation8], %s3994
          %s3996 = sand.u32 %s238, 1
          %s3997 = smul.addr %s3996, 8
          %s3998 = scalar_lea.vmem [#allocation7], %s3997
          %3999 = dma.done %s3995, 128
        $region72: #{cclusterer_forward.1} parent=67 // pred_fallthru
          _
        // Predicated region
        $region73: #{cclusterer_forward.1} parent=67 // pred_check
          %p4000 = pneg %p279
        $region74: #{cclusterer_forward.1} parent=67 // pred_check_branch
          %4002 = sbr.rel (%p4000) target = $region76
        $region75: #{cclusterer_forward.1} parent=67 // pred_region
          %s4003 = sand.u32 %s264, 1
          %s4004 = scalar_lea.sflag [#allocation10], %s4003
          %s4005 = sand.u32 %s264, 1
          %s4006 = smul.addr %s4005, 8
          %s4007 = scalar_lea.vmem [#allocation9], %s4006
          %4008 = dma.done %s4004, 128
        $region76: #{cclusterer_forward.1} parent=67 // pred_fallthru
          _
      $region68: #{cclusterer_forward.1} parent=5 // pred_fallthru
        _
    $region6: #{cclusterer_forward.1} parent=1 // loop_footer
      %s34 = sadd.s32 1, %s30
    $region7: #{cclusterer_forward.1} parent=1 // loop_footer_branch
      %29 = sbr.rel target = $region3
    $region8: #{cclusterer_forward.1} parent=1 // loop_exit
      _
    %4009 = vsyncpa [#allocation8], 1
    %s4010 = scalar_lea.sflag [#allocation8], 1
    %4011 = vsyncpa %s4010, 1
    %4012 = vsyncpa [#allocation10], 1
    %s4013 = scalar_lea.sflag [#allocation10], 1
    %4014 = vsyncpa %s4013, 1

</llo_original>
